<compile_context>
chip_gen: v6e
topology: v6e:2x2x1
jax: 0.10.0
libtpu: 0.0.40
codegen_flags: <defaults>
</compile_context>

<pallas_src>
import functools

import jax
import jax.numpy as jnp
from jax.experimental import pallas as pl
from jax.experimental.pallas import tpu as pltpu

_EXACT = jax.lax.Precision.HIGHEST  # exact one-hot selection through the MXU


def _shift_kernel(shift_ref, x_ref, o_ref, *, bb, c, h, w, pad, n):
    """Process one block of `bb` images.

    shift_ref : SMEM int32[2*n]         flat [sx0, sy0, sx1, sy1, ...]
    x_ref     : VMEM  [bb, c, h, w]     input block (any dtype, e.g. uint8/f32)
    o_ref     : VMEM f32[bb, c, h, w]   output block
    """
    step = pl.program_id(0)

    # Shift-independent iota planes, hoisted out of the per-image loop
    # (JAX does not CSE broadcast_in_dim inside loops).  h == w, so one pair
    # serves both the row- and column-selection matrices.
    src = jax.lax.broadcasted_iota(jnp.int32, (w, w), 0)  # value = row index
    dst = jax.lax.broadcasted_iota(jnp.int32, (w, w), 1)  # value = col index

    def body(bi, carry):
        b = step * bb + bi

        @pl.when(b < n)  # tail guard: last grid step may be partial
        def _():
            sx = shift_ref[2 * b]       # column shift, in [0, 2*pad]
            sy = shift_ref[2 * b + 1]   # row shift,    in [0, 2*pad]

            # Column selection: wxt[j, xo] = 1 iff j == clip(xo + sx - pad, 0, w-1)
            wxt = (src == jnp.clip(dst + (sx - pad), 0, w - 1)).astype(jnp.float32)
            # Row selection:    wyt[yo, i] = 1 iff i == clip(yo + sy - pad, 0, h-1)
            wyt = (dst == jnp.clip(src + (sy - pad), 0, h - 1)).astype(jnp.float32)

            # Per-channel 2D matmuls: no reshapes, no scratch copies; the MXU
            # has plenty of slack since the kernel is HBM-bandwidth bound.
            for ci in range(c):
                img = x_ref[bi, ci].astype(jnp.float32)           # (h, w)
                tmp = jnp.dot(img, wxt, precision=_EXACT,
                              preferred_element_type=jnp.float32)  # column shift
                out = jnp.dot(wyt, tmp, precision=_EXACT,
                              preferred_element_type=jnp.float32)  # row shift
                o_ref[bi, ci] = out

        return carry

    # Modest unroll: lets the scheduler overlap image i+1's one-hot/VPU work
    # with image i's MXU pops and stores without spilling the vreg file.
    jax.lax.fori_loop(0, bb, body, 0, unroll=min(2, bb))


def _pick_images_per_step(n, c, h, w, in_itemsize):
    """Images per grid step.

    Budget the double-buffered in+out blocks (2 * (in + out) bytes, computed
    on the *padded* VMEM layout: h -> mult of 8, w -> mult of 128) against
    ~24 MiB of the 32 MiB scoped-VMEM limit we request, which is safe on
    v5e/v6e (128 MiB physical) and v7x (64 MiB physical per TensorCore).
    Keep at least two grid steps when n >= 2 so the 'parallel' axis can be
    sharded across v7x's two TensorCores.
    """
    hp = ((h + 7) // 8) * 8
    wp = ((w + 127) // 128) * 128
    in_img = c * hp * wp * in_itemsize
    out_img = c * hp * wp * 4                      # output is f32
    per_img = 2 * (in_img + out_img)               # double-buffered in + out
    budget = 24 * 1024 * 1024
    bb = max(1, min(n, budget // per_img))
    if n >= 2:
        bb = min(bb, (n + 1) // 2)                 # >= 2 grid steps
    return int(bb)


def random_shifts_aug(x, key, pad):
    """JAX/Pallas equivalent of RandomShiftsAug(pad).forward(x).

    `x` may be any dtype (e.g. uint8 pixels); it is converted to float32
    inside the kernel, after the HBM->VMEM DMA, exactly like `x.float()`.
    """
    n, c, h, w = x.shape
    assert h == w

    # TODO(synk): torch.randint RNG stream is replaced by jax.random.randint
    # (same distribution, different bit stream).
    shift = jax.random.randint(key, (n, 2), 0, 2 * pad + 1, dtype=jnp.int32)

    bb = _pick_images_per_step(n, c, h, w, jnp.dtype(x.dtype).itemsize)
    grid = pl.cdiv(n, bb)
    kernel = functools.partial(_shift_kernel, bb=bb, c=c, h=h, w=w, pad=pad, n=n)

    return pl.pallas_call(
        kernel,
        out_shape=jax.ShapeDtypeStruct((n, c, h, w), jnp.float32),
        grid_spec=pltpu.PrefetchScalarGridSpec(
            num_scalar_prefetch=1,                 # flat int32 shifts -> SMEM
            grid=(grid,),
            in_specs=[
                pl.BlockSpec((bb, c, h, w), lambda i, s: (i, 0, 0, 0)),
            ],
            out_specs=pl.BlockSpec((bb, c, h, w), lambda i, s: (i, 0, 0, 0)),
        ),
        compiler_params=pltpu.CompilerParams(
            dimension_semantics=("parallel",),
            vmem_limit_bytes=32 * 1024 * 1024),
    )(shift.reshape(-1), x)


if __name__ == "__main__":
    import numpy as np

    key = jax.random.PRNGKey(0)
    kx, kshift = jax.random.split(key)

    pad = 4
    n, c, h, w = 2, 4, 16, 16
    x = jax.random.normal(kx, (n, c, h, w), dtype=jnp.float32)

    out = jax.block_until_ready(random_shifts_aug(x, kshift, pad))
    assert out.shape == (n, c, h, w) and out.dtype == jnp.float32

    # Reference: the grid points land exactly on pixel centres of the padded
    # image, so bilinear grid_sample reduces to an integer crop of the
    # replicate-padded image.
    shift_int = np.asarray(
        jax.random.randint(kshift, (n, 2), 0, 2 * pad + 1, dtype=jnp.int32))
    xp = np.pad(np.asarray(x), ((0, 0), (0, 0), (pad, pad), (pad, pad)),
                mode="edge")
    ref = np.stack([xp[b, :, sy:sy + h, sx:sx + w]
                    for b, (sx, sy) in enumerate(shift_int)])
    np.testing.assert_allclose(np.asarray(out), ref, atol=1e-5, rtol=1e-5)

    print("KERNEL_OK")
</pallas_src>

<mosaic_0001>
module attributes {stable_mosaic.version = 11 : i64} {
  func.func @_shift_kernel(%arg0: i32, %arg1: memref<4xi32, #tpu.memory_space<smem>>, %arg2: memref<1x4x16x16xf32, #tpu.memory_space<vmem>>, %arg3: memref<1x4x16x16xf32, #tpu.memory_space<vmem>>) attributes {dimension_semantics = [#tpu.dimension_semantics<parallel>], iteration_bounds = array<i64: 2>, scalar_prefetch = 1 : i64, scratch_operands = 0 : i64, tpu.core_type = #tpu.core_type<tc>, window_params = [{transform_indices = @transform_0, window_bounds = array<i64: 1, 4, 16, 16>}, {transform_indices = @transform_1, window_bounds = array<i64: 1, 4, 16, 16>}]} {
    %0 = tpu.iota {dimensions = array<i32: 0>} : vector<16x16xi32>
    %1 = tpu.iota {dimensions = array<i32: 1>} : vector<16x16xi32>
    %c0_i32 = arith.constant 0 : i32
    %c1_i32 = arith.constant 1 : i32
    %2 = arith.muli %arg0, %c1_i32 : i32
    %3 = arith.addi %2, %c0_i32 : i32
    %c2_i32 = arith.constant 2 : i32
    %4 = arith.cmpi slt, %3, %c2_i32 : i32
    %5 = arith.extui %4 : i1 to i32
    %c0_i32_0 = arith.constant 0 : i32
    %6 = arith.cmpi ne, %5, %c0_i32_0 : i32
    scf.if %6 {
      %c2_i32_2 = arith.constant 2 : i32
      %7 = arith.muli %c2_i32_2, %3 : i32
      %8 = arith.index_cast %7 : i32 to index
      %9 = memref.load %arg1[%8] : memref<4xi32, #tpu.memory_space<smem>>
      %c2_i32_3 = arith.constant 2 : i32
      %10 = arith.muli %c2_i32_3, %3 : i32
      %c1_i32_4 = arith.constant 1 : i32
      %11 = arith.addi %10, %c1_i32_4 : i32
      %12 = arith.index_cast %11 : i32 to index
      %13 = memref.load %arg1[%12] : memref<4xi32, #tpu.memory_space<smem>>
      %c4_i32 = arith.constant 4 : i32
      %14 = arith.subi %9, %c4_i32 : i32
      %15 = vector.broadcast %14 : i32 to vector<16x16xi32>
      %16 = arith.addi %1, %15 : vector<16x16xi32>
      %c0_i32_5 = arith.constant 0 : i32
      %c15_i32 = arith.constant 15 : i32
      %17 = vector.broadcast %c0_i32_5 : i32 to vector<16x16xi32>
      %18 = arith.maxsi %17, %16 : vector<16x16xi32>
      %19 = vector.broadcast %c15_i32 : i32 to vector<16x16xi32>
      %20 = arith.minsi %19, %18 : vector<16x16xi32>
      %21 = arith.cmpi eq, %0, %20 : vector<16x16xi32>
      %22 = arith.extui %21 : vector<16x16xi1> to vector<16x16xi32>
      %23 = arith.sitofp %22 : vector<16x16xi32> to vector<16x16xf32>
      %c4_i32_6 = arith.constant 4 : i32
      %24 = arith.subi %13, %c4_i32_6 : i32
      %25 = vector.broadcast %24 : i32 to vector<16x16xi32>
      %26 = arith.addi %0, %25 : vector<16x16xi32>
      %c0_i32_7 = arith.constant 0 : i32
      %c15_i32_8 = arith.constant 15 : i32
      %27 = vector.broadcast %c0_i32_7 : i32 to vector<16x16xi32>
      %28 = arith.maxsi %27, %26 : vector<16x16xi32>
      %29 = vector.broadcast %c15_i32_8 : i32 to vector<16x16xi32>
      %30 = arith.minsi %29, %28 : vector<16x16xi32>
      %31 = arith.cmpi eq, %1, %30 : vector<16x16xi32>
      %32 = arith.extui %31 : vector<16x16xi1> to vector<16x16xi32>
      %33 = arith.sitofp %32 : vector<16x16xi32> to vector<16x16xf32>
      %34 = arith.index_cast %c0_i32 : i32 to index
      %c0 = arith.constant 0 : index
      %c0_9 = arith.constant 0 : index
      %c0_10 = arith.constant 0 : index
      %35 = vector.load %arg2[%34, %c0, %c0_9, %c0_10] : memref<1x4x16x16xf32, #tpu.memory_space<vmem>>, vector<1x1x16x16xf32>
      %36 = vector.shape_cast %35 : vector<1x1x16x16xf32> to vector<16x16xf32>
      %cst = arith.constant dense<0.000000e+00> : vector<16x16xf32>
      %37 = tpu.matmul %36, %23, %cst {dimension_numbers = #tpu.dot_dimension_numbers<[1], [0], [0], [1], [0, 0, 1, 1], [], []>, precision = #tpu.contract_precision<fp32>} : vector<16x16xf32>, vector<16x16xf32>, vector<16x16xf32> -> vector<16x16xf32>
      %cst_11 = arith.constant dense<0.000000e+00> : vector<16x16xf32>
      %38 = tpu.matmul %33, %37, %cst_11 {dimension_numbers = #tpu.dot_dimension_numbers<[1], [0], [0], [1], [0, 0, 1, 1], [], []>, precision = #tpu.contract_precision<fp32>} : vector<16x16xf32>, vector<16x16xf32>, vector<16x16xf32> -> vector<16x16xf32>
      %39 = arith.index_cast %c0_i32 : i32 to index
      %c0_12 = arith.constant 0 : index
      %c0_13 = arith.constant 0 : index
      %c0_14 = arith.constant 0 : index
      %40 = vector.load %arg3[%39, %c0_12, %c0_13, %c0_14] : memref<1x4x16x16xf32, #tpu.memory_space<vmem>>, vector<1x1x16x16xf32>
      %41 = vector.shape_cast %40 : vector<1x1x16x16xf32> to vector<16x16xf32>
      %42 = vector.shape_cast %38 : vector<16x16xf32> to vector<1x1x16x16xf32>
      tpu.vector_store %arg3[%39, %c0_12, %c0_13, %c0_14], %42 {strides = array<i32>} : memref<1x4x16x16xf32, #tpu.memory_space<vmem>>, vector<1x1x16x16xf32>,
      %43 = arith.index_cast %c0_i32 : i32 to index
      %c1 = arith.constant 1 : index
      %c0_15 = arith.constant 0 : index
      %c0_16 = arith.constant 0 : index
      %44 = vector.load %arg2[%43, %c1, %c0_15, %c0_16] : memref<1x4x16x16xf32, #tpu.memory_space<vmem>>, vector<1x1x16x16xf32>
      %45 = vector.shape_cast %44 : vector<1x1x16x16xf32> to vector<16x16xf32>
      %cst_17 = arith.constant dense<0.000000e+00> : vector<16x16xf32>
      %46 = tpu.matmul %45, %23, %cst_17 {dimension_numbers = #tpu.dot_dimension_numbers<[1], [0], [0], [1], [0, 0, 1, 1], [], []>, precision = #tpu.contract_precision<fp32>} : vector<16x16xf32>, vector<16x16xf32>, vector<16x16xf32> -> vector<16x16xf32>
      %cst_18 = arith.constant dense<0.000000e+00> : vector<16x16xf32>
      %47 = tpu.matmul %33, %46, %cst_18 {dimension_numbers = #tpu.dot_dimension_numbers<[1], [0], [0], [1], [0, 0, 1, 1], [], []>, precision = #tpu.contract_precision<fp32>} : vector<16x16xf32>, vector<16x16xf32>, vector<16x16xf32> -> vector<16x16xf32>
      %48 = arith.index_cast %c0_i32 : i32 to index
      %c1_19 = arith.constant 1 : index
      %c0_20 = arith.constant 0 : index
      %c0_21 = arith.constant 0 : index
      %49 = vector.load %arg3[%48, %c1_19, %c0_20, %c0_21] : memref<1x4x16x16xf32, #tpu.memory_space<vmem>>, vector<1x1x16x16xf32>
      %50 = vector.shape_cast %49 : vector<1x1x16x16xf32> to vector<16x16xf32>
      %51 = vector.shape_cast %47 : vector<16x16xf32> to vector<1x1x16x16xf32>
      tpu.vector_store %arg3[%48, %c1_19, %c0_20, %c0_21], %51 {strides = array<i32>} : memref<1x4x16x16xf32, #tpu.memory_space<vmem>>, vector<1x1x16x16xf32>,
      %52 = arith.index_cast %c0_i32 : i32 to index
      %c2 = arith.constant 2 : index
      %c0_22 = arith.constant 0 : index
      %c0_23 = arith.constant 0 : index
      %53 = vector.load %arg2[%52, %c2, %c0_22, %c0_23] : memref<1x4x16x16xf32, #tpu.memory_space<vmem>>, vector<1x1x16x16xf32>
      %54 = vector.shape_cast %53 : vector<1x1x16x16xf32> to vector<16x16xf32>
      %cst_24 = arith.constant dense<0.000000e+00> : vector<16x16xf32>
      %55 = tpu.matmul %54, %23, %cst_24 {dimension_numbers = #tpu.dot_dimension_numbers<[1], [0], [0], [1], [0, 0, 1, 1], [], []>, precision = #tpu.contract_precision<fp32>} : vector<16x16xf32>, vector<16x16xf32>, vector<16x16xf32> -> vector<16x16xf32>
      %cst_25 = arith.constant dense<0.000000e+00> : vector<16x16xf32>
      %56 = tpu.matmul %33, %55, %cst_25 {dimension_numbers = #tpu.dot_dimension_numbers<[1], [0], [0], [1], [0, 0, 1, 1], [], []>, precision = #tpu.contract_precision<fp32>} : vector<16x16xf32>, vector<16x16xf32>, vector<16x16xf32> -> vector<16x16xf32>
      %57 = arith.index_cast %c0_i32 : i32 to index
      %c2_26 = arith.constant 2 : index
      %c0_27 = arith.constant 0 : index
      %c0_28 = arith.constant 0 : index
      %58 = vector.load %arg3[%57, %c2_26, %c0_27, %c0_28] : memref<1x4x16x16xf32, #tpu.memory_space<vmem>>, vector<1x1x16x16xf32>
      %59 = vector.shape_cast %58 : vector<1x1x16x16xf32> to vector<16x16xf32>
      %60 = vector.shape_cast %56 : vector<16x16xf32> to vector<1x1x16x16xf32>
      tpu.vector_store %arg3[%57, %c2_26, %c0_27, %c0_28], %60 {strides = array<i32>} : memref<1x4x16x16xf32, #tpu.memory_space<vmem>>, vector<1x1x16x16xf32>,
      %61 = arith.index_cast %c0_i32 : i32 to index
      %c3 = arith.constant 3 : index
      %c0_29 = arith.constant 0 : index
      %c0_30 = arith.constant 0 : index
      %62 = vector.load %arg2[%61, %c3, %c0_29, %c0_30] : memref<1x4x16x16xf32, #tpu.memory_space<vmem>>, vector<1x1x16x16xf32>
      %63 = vector.shape_cast %62 : vector<1x1x16x16xf32> to vector<16x16xf32>
      %cst_31 = arith.constant dense<0.000000e+00> : vector<16x16xf32>
      %64 = tpu.matmul %63, %23, %cst_31 {dimension_numbers = #tpu.dot_dimension_numbers<[1], [0], [0], [1], [0, 0, 1, 1], [], []>, precision = #tpu.contract_precision<fp32>} : vector<16x16xf32>, vector<16x16xf32>, vector<16x16xf32> -> vector<16x16xf32>
      %cst_32 = arith.constant dense<0.000000e+00> : vector<16x16xf32>
      %65 = tpu.matmul %33, %64, %cst_32 {dimension_numbers = #tpu.dot_dimension_numbers<[1], [0], [0], [1], [0, 0, 1, 1], [], []>, precision = #tpu.contract_precision<fp32>} : vector<16x16xf32>, vector<16x16xf32>, vector<16x16xf32> -> vector<16x16xf32>
      %66 = arith.index_cast %c0_i32 : i32 to index
      %c3_33 = arith.constant 3 : index
      %c0_34 = arith.constant 0 : index
      %c0_35 = arith.constant 0 : index
      %67 = vector.load %arg3[%66, %c3_33, %c0_34, %c0_35] : memref<1x4x16x16xf32, #tpu.memory_space<vmem>>, vector<1x1x16x16xf32>
      %68 = vector.shape_cast %67 : vector<1x1x16x16xf32> to vector<16x16xf32>
      %69 = vector.shape_cast %65 : vector<16x16xf32> to vector<1x1x16x16xf32>
      tpu.vector_store %arg3[%66, %c3_33, %c0_34, %c0_35], %69 {strides = array<i32>} : memref<1x4x16x16xf32, #tpu.memory_space<vmem>>, vector<1x1x16x16xf32>,
    } else {
    }
    %c1_i32_1 = arith.constant 1 : i32
    return
  }
  func.func @transform_0(%arg0: i32, %arg1: memref<4xi32, #tpu.memory_space<smem>>) -> (i32, i32, i32, i32) {
    %c0_i32 = arith.constant 0 : i32
    %c0_i32_0 = arith.constant 0 : i32
    %c0_i32_1 = arith.constant 0 : i32
    %c0_i32_2 = arith.constant 0 : i32
    return %arg0, %c0_i32, %c0_i32_0, %c0_i32_1 : i32, i32, i32, i32
  }
  func.func @transform_1(%arg0: i32, %arg1: memref<4xi32, #tpu.memory_space<smem>>) -> (i32, i32, i32, i32) {
    %c0_i32 = arith.constant 0 : i32
    %c0_i32_0 = arith.constant 0 : i32
    %c0_i32_1 = arith.constant 0 : i32
    %c0_i32_2 = arith.constant 0 : i32
    return %arg0, %c0_i32, %c0_i32_0, %c0_i32_1 : i32, i32, i32, i32
  }
}

</mosaic_0001>

<llo_original>
// kernel: tpu_custom_call.1
$region0: #{tpu_custom_call.1}
  #allocation0 [shape = 'u32[]', space=smem, size = 0x4, offset = 0x4, fixed_abs, tag = 'smem constant byte address 0x4 - core index']
  #allocation1 [shape = 'u32[144,128]{1,0:T(1,128)}', space=vmem, size = 0x12000, scoped, tag = 'internal scratch']
  #allocation2 [shape = 's32[1]{0}', space=sflag, size = 0x4, scoped, tag = 'scoped memory for tpu_custom_call.1']
  #allocation3 [shape = 'u8[512]{0}', space=smem, size = 0x200, scoped, tag = 'prefetched SMEM operand 0']
  %s0 = inlined_call_operand.hbm [shape: s32[4], index: 0, kind: input, shape index: {}]
  %s1 = inlined_call_operand.hbm [shape: f32[2,4,16,16], index: 1, kind: input, shape index: {}]
  %s2 = inlined_call_operand.hbm [shape: f32[2,4,16,16], index: 2, kind: output, shape index: {}]
  %s3 = sld [smem:[#allocation0]]
  $region45: #{tpu_custom_call.1} parent=0
    _
  %s5 = ssub.s32 1, %s3
  %s6 = scalar_select 0, %s5, %s3
  %8 = dma.hbm_to_smem %s0, 16, [#allocation3], [#allocation2]
  %9 = dma.done [#allocation2], 16
  %10 = sfence
  $region1: #{tpu_custom_call.1} parent=0
    #allocation4 [shape = 'u8[65536]{0}', space=vmem, size = 0x10000, scoped, tag = 'input window, operand 1']
    #allocation5 [shape = 's32[2]{0}', space=sflag, size = 0x8, scoped, tag = 'scoped memory for tpu_custom_call.1']
    #allocation6 [shape = 's32[2]{0}', space=sflag, size = 0x8, scoped, tag = 'scoped memory for tpu_custom_call.1']
    #allocation7 [shape = 'u8[65536]{0}', space=vmem, size = 0x10000, scoped, tag = 'output window, operand 0']
    %11 = vsyncpa [#allocation5], 0
    %s12 = scalar_lea.sflag [#allocation5], 1
    %13 = vsyncpa %s12, 0
    %14 = vsyncpa [#allocation6], 0
    %s15 = scalar_lea.sflag [#allocation6], 1
    %16 = vsyncpa %s15, 0
    loop: start=0, step=1, limit=4
    $region2: #{tpu_custom_call.1} parent=1 // loop_pre_header
      _
    $region3: #{tpu_custom_call.1} parent=1 // loop_header
      %s18 = sphi 0, %s22
      %p19 = scmp.ge.s32.totalorder %s18, 4
      %s28 = sphi 0, %s30
      %s31 = sphi 0, %s28
      %s32 = sphi 0, %s31
      %s48 = sphi 0, %s32
      %s54 = sphi 0, %s56
      %s57 = sphi 0, %s54
      %s58 = sphi 0, %s57
      %s74 = sphi 0, %s58
    $region4: #{tpu_custom_call.1} parent=1 // loop_header_branch
      %21 = sbr.rel (%p19) target = $region8
    $region5: #{tpu_custom_call.1} parent=1 // loop_body
      %s23 = ssub.s32 %s18, 1
      %s24 = ssub.s32 %s18, 2
      %s25 = sadd.s32 %s18, 1
      %s26 = ssub.s32 %s18, %s25
      %p27 = scmp.eq.s32.totalorder %s26, 0
      %s29 = sadd.s32 %s28, 1
      %s30 = scalar_select %p27, %s28, %s29
      %p33 = pneg %p27
      %p34 = scmp.eq.s32.totalorder %s18, 1
      %p35 = por %p33, %p34
      %p36 = scmp.ne.s32.totalorder %s28, %s31
      %p37 = scmp.eq.s32.totalorder %s18, 0
      %p38 = por %p36, %p37
      %p39 = scmp.ne.s32.totalorder %s28, %s31
      %p40 = scmp.eq.s32.totalorder %s23, 1
      %p41 = por %p39, %p40
      %p42 = scmp.ne.s32.totalorder %s31, %s32
      %p43 = scmp.eq.s32.totalorder %s23, 0
      %p44 = por %p42, %p43
      %p45 = scmp.ne.s32.totalorder %s31, %s32
      %p46 = scmp.eq.s32.totalorder %s24, 1
      %p47 = por %p45, %p46
      %p49 = scmp.ne.s32.totalorder %s32, %s48
      %p50 = scmp.eq.s32.totalorder %s24, 0
      %p51 = por %p49, %p50
      %s52 = ssub.s32 %s18, %s25
      %p53 = scmp.eq.s32.totalorder %s52, 0
      %s55 = sadd.s32 %s54, 1
      %s56 = scalar_select %p53, %s54, %s55
      %p59 = pneg %p53
      %p60 = scmp.eq.s32.totalorder %s18, 1
      %p61 = por %p59, %p60
      %p62 = scmp.ne.s32.totalorder %s54, %s57
      %p63 = scmp.eq.s32.totalorder %s18, 0
      %p64 = por %p62, %p63
      %p65 = scmp.ne.s32.totalorder %s54, %s57
      %p66 = scmp.eq.s32.totalorder %s23, 1
      %p67 = por %p65, %p66
      %p68 = scmp.ne.s32.totalorder %s57, %s58
      %p69 = scmp.eq.s32.totalorder %s23, 0
      %p70 = por %p68, %p69
      %p71 = scmp.ne.s32.totalorder %s57, %s58
      %p72 = scmp.eq.s32.totalorder %s24, 1
      %p73 = por %p71, %p72
      %p75 = scmp.ne.s32.totalorder %s58, %s74
      %p76 = scmp.eq.s32.totalorder %s24, 0
      %p77 = por %p75, %p76
      %p78 = scmp.le.s32.totalorder 1, %s18
      %p79 = scmp.lt.s32.totalorder %s18, 3
      %p80 = pnand %p78, %p79
      %p81 = pneg %p80
      // Predicated region
      $region9: #{tpu_custom_call.1} parent=5 // pred_check
        _
      $region10: #{tpu_custom_call.1} parent=5 // pred_check_branch
        %83 = sbr.rel (%p80) target = $region12
      $region11: #{tpu_custom_call.1} parent=5 // pred_region
        %s84 = ssub.s32 %s18, 1
      $region12: #{tpu_custom_call.1} parent=5 // pred_fallthru
        _
      %p85 = scmp.lt.s32.totalorder %s18, 2
      // Predicated region
      $region13: #{tpu_custom_call.1} parent=5 // pred_check
        %p86 = pneg %p85
      $region14: #{tpu_custom_call.1} parent=5 // pred_check_branch
        %88 = sbr.rel (%p86) target = $region16
      $region15: #{tpu_custom_call.1} parent=5 // pred_region
        // Predicated region
        $region17: #{tpu_custom_call.1} parent=15 // pred_check
          %p89 = pneg %p38
        $region18: #{tpu_custom_call.1} parent=15 // pred_check_branch
          %91 = sbr.rel (%p89) target = $region20
        $region19: #{tpu_custom_call.1} parent=15 // pred_region
          %s92 = sand.u32 %s28, 1
          %s93 = scalar_lea.sflag [#allocation5], %s92
          %s94 = sand.u32 %s28, 1
          %s95 = smul.addr %s94, 64
          %s96 = scalar_lea.vmem [#allocation4], %s95
          %s98 = ssub.s32 1024, 1024
          %99 = vsyncadd %s93, %s98
          %s100 = smul.addr %s18, 8
          %s101 = smul.addr %s100, 128
          %s102 = scalar_lea.hbm %s1, %s101
          %s103 = sshll.u32 %s96, 4
          %s104 = int_to_ptr.vmem [resolvable:$true] %s103
          %109 = dma.hbm_to_vmem [thread:$0]  %s102, 1024, %s104, %s93, 128, 128, 8
        $region20: #{tpu_custom_call.1} parent=15 // pred_fallthru
          _
      $region16: #{tpu_custom_call.1} parent=5 // pred_fallthru
        _
      %p110 = scmp.le.s32.totalorder 1, %s18
      %p111 = scmp.lt.s32.totalorder %s18, 3
      %p112 = pnand %p110, %p111
      %p113 = pneg %p112
      // Predicated region
      $region21: #{tpu_custom_call.1} parent=5 // pred_check
        _
      $region22: #{tpu_custom_call.1} parent=5 // pred_check_branch
        %115 = sbr.rel (%p112) target = $region24
      $region23: #{tpu_custom_call.1} parent=5 // pred_region
        %s116 = ssub.s32 %s18, 1
        %s117 = sand.u32 %s31, 1
        %s118 = scalar_lea.sflag [#allocation5], %s117
        %s119 = sand.u32 %s31, 1
        %s120 = smul.addr %s119, 64
        %s121 = scalar_lea.vmem [#allocation4], %s120
        // Predicated region
        $region25: #{tpu_custom_call.1} parent=23 // pred_check
          %p122 = pneg %p44
        $region26: #{tpu_custom_call.1} parent=23 // pred_check_branch
          %124 = sbr.rel (%p122) target = $region28
        $region27: #{tpu_custom_call.1} parent=23 // pred_region
          %125 = dma.done %s118, 1024
        $region28: #{tpu_custom_call.1} parent=23 // pred_fallthru
          _
        %s126 = sand.u32 %s31, 1
        %s127 = scalar_lea.sflag [#allocation5], %s126
        %s128 = sand.u32 %s31, 1
        %s129 = smul.addr %s128, 64
        %s130 = scalar_lea.vmem [#allocation4], %s129
        %p131 = pneg %p44
        %p132 = pneg %p41
        %p133 = pneg %p70
        %p134 = pneg %p67
        %s135 = sand.u32 %s57, 1
        %s136 = scalar_lea.sflag [#allocation6], %s135
        %s137 = sand.u32 %s57, 1
        %s138 = smul.addr %s137, 64
        %s139 = scalar_lea.vmem [#allocation7], %s138
        %v140 = vlaneseq
        %v141 = vshrl.u32 %v140, 7
        %v142 = vadd.s32 %v141, 8
        %v143 = vlaneseq
        %v144 = vand.u32 %v143, 127
        %p145 = scmp.lt.s32.totalorder %s23, 2
        // Predicated region
        $region29: #{tpu_custom_call.1} parent=23 // pred_check
          %p146 = pneg %p145
        $region30: #{tpu_custom_call.1} parent=23 // pred_check_branch
          %148 = sbr.rel (%p146) target = $region32
        $region31: #{tpu_custom_call.1} parent=23 // pred_region
          %s149 = smul.u32 %s23, 2
          %s150 = sld [smem:[#allocation3 + %s149]]
          %s151 = sadd.s32 %s149, 1
          %s152 = sld [smem:[#allocation3 + %s151]]
          %s153 = ssub.s32 %s150, 4
          %v154 = vstv %s153
          %v155 = vadd.s32 %v144, %v154
          %vm156 = vcmp.gt.s32.totalorder %v155, 0
          %v157 = vsel %vm156, %v155, 0
          %vm158 = vcmp.lt.s32.totalorder %v157, 15
          %v159 = vsel %vm158, %v157, 15
          %vm160 = vcmp.eq.s32.totalorder %v141, %v159
          %vm161 = vcmp.eq.s32.totalorder %v142, %v159
          %v162 = vsel %vm160, 1, 0
          %v163 = vsel %vm161, 1, 0
          %v164 = vcvt.s32.f32 %v162
          %v165 = vcvt.s32.f32 %v163
          %s166 = ssub.s32 %s152, 4
          %v167 = vstv %s166
          %v168 = vadd.s32 %v141, %v167
          %v169 = vadd.s32 %v142, %v167
          %vm170 = vcmp.gt.s32.totalorder %v168, 0
          %v171 = vsel %vm170, %v168, 0
          %vm172 = vcmp.gt.s32.totalorder %v169, 0
          %v173 = vsel %vm172, %v169, 0
          %vm174 = vcmp.lt.s32.totalorder %v171, 15
          %v175 = vsel %vm174, %v171, 15
          %vm176 = vcmp.lt.s32.totalorder %v173, 15
          %v177 = vsel %vm176, %v173, 15
          %vm178 = vcmp.eq.s32.totalorder %v144, %v175
          %vm179 = vcmp.eq.s32.totalorder %v144, %v177
          %v180 = vsel %vm178, 1, 0
          %v181 = vsel %vm179, 1, 0
          %v182 = vcvt.s32.f32 %v180
          %v183 = vcvt.s32.f32 %v181
          %v184 = vld [vmem:[%s121] sm:$0xff]
          %v185 = vld [vmem:[%s121 + $0x8] sm:$0xff]
          %vm186 = vcmask 130048
          %v188 = vsel %vm186, %v184, 0
          %v191 = vsel %vm186, %v185, 0
          %193 = vmatprep.subr.mxu0 0.0
          %194 = vmatpush1.msra.mxu0 0.0
          %195 = vmatprep.subr.mxu0 0.0
          %196 = vmatpush1.msra.mxu0 0.0
          %197 = vmatprep.subr.mxu0 0.0
          %198 = vmatpush1.msra.mxu0 0.0
          %199 = vmatprep.subr.mxu0 0.0
          %200 = vmatpush1.msra.mxu0 0.0
          %201 = vmatprep.subr.mxu0 0.0
          %202 = vmatpush1.msra.mxu0 0.0
          %203 = vmatprep.subr.mxu0 0.0
          %204 = vmatpush1.msra.mxu0 0.0
          %205 = vmatprep.subr.mxu0 0.0
          %206 = vmatpush1.msra.mxu0 0.0
          %207 = vmatprep.subr.mxu0 0.0
          %208 = vmatpush1.msra.mxu0 0.0
          %209 = vmatprep.subr.mxu0 0.0
          %210 = vmatpush1.msra.mxu0 0.0
          %211 = vmatprep.subr.mxu0 0.0
          %212 = vmatpush1.msra.mxu0 0.0
          %213 = vmatprep.subr.mxu0 0.0
          %214 = vmatpush1.msra.mxu0 0.0
          %215 = vmatprep.subr.mxu0 0.0
          %216 = vmatpush1.msra.mxu0 0.0
          %217 = vmatprep.subr.mxu0 0.0
          %218 = vmatpush1.msra.mxu0 0.0
          %219 = vmatprep.subr.mxu0 0.0
          %220 = vmatpush1.msra.mxu0 0.0
          %221 = vmatprep.subr.mxu0 0.0
          %v222 = vand.u32 %v165, 4294901760
          %223 = vmatpush1.msra.mxu0 %v222
          %224 = vmatprep.subr.mxu0 0.0
          %v225 = vand.u32 %v164, 4294901760
          %226 = vmatpush1.msra.mxu0 %v225
          %227 = vmatprep.subr.mxu0 0.0
          %228 = vmatpush2.msra.mxu0 0.0
          %229 = vmatprep.subr.mxu0 0.0
          %230 = vmatpush2.msra.mxu0 0.0
          %231 = vmatprep.subr.mxu0 0.0
          %232 = vmatpush2.msra.mxu0 0.0
          %233 = vmatprep.subr.mxu0 0.0
          %234 = vmatpush2.msra.mxu0 0.0
          %235 = vmatprep.subr.mxu0 0.0
          %236 = vmatpush2.msra.mxu0 0.0
          %237 = vmatprep.subr.mxu0 0.0
          %238 = vmatpush2.msra.mxu0 0.0
          %239 = vmatprep.subr.mxu0 0.0
          %240 = vmatpush2.msra.mxu0 0.0
          %241 = vmatprep.subr.mxu0 0.0
          %242 = vmatpush2.msra.mxu0 0.0
          %243 = vmatprep.subr.mxu0 0.0
          %244 = vmatpush2.msra.mxu0 0.0
          %245 = vmatprep.subr.mxu0 0.0
          %246 = vmatpush2.msra.mxu0 0.0
          %247 = vmatprep.subr.mxu0 0.0
          %248 = vmatpush2.msra.mxu0 0.0
          %249 = vmatprep.subr.mxu0 0.0
          %250 = vmatpush2.msra.mxu0 0.0
          %251 = vmatprep.subr.mxu0 0.0
          %252 = vmatpush2.msra.mxu0 0.0
          %253 = vmatprep.subr.mxu0 0.0
          %254 = vmatpush2.msra.mxu0 0.0
          %255 = vmatprep.subr.mxu0 0.0
          %256 = vmatpush2.msra.mxu0 0.0
          %257 = vmatprep.subr.mxu0 0.0
          %258 = vmatpush2.msra.mxu0 0.0
          %259 = vmatprep.mubr.f32.mxu0 0.0
          %v260 = vand.u32 %v188, 4294901760
          %v261 = vsub.f32 %v188, %v260
          %v262 = vand.u32 %v261, 4294901760
          %v263 = vsub.f32 %v261, %v262
          %v264 = vand.u32 %v263, 4294901760
          %265 = vmatmul.mubr.f32.gmra.mxu0 %v264
          %v266 = vpop.f32.mrf.mxu0
          %v267 = vadd.f32 0.0, %v266
          %v268 = vpop.f32.mrf.mxu0
          %269 = vmatprep.mubr.f32.mxu0 0.0
          %v270 = vand.u32 %v191, 4294901760
          %v271 = vsub.f32 %v191, %v270
          %v272 = vand.u32 %v271, 4294901760
          %v273 = vsub.f32 %v271, %v272
          %v274 = vand.u32 %v273, 4294901760
          %275 = vmatmul.mubr.f32.gmra.mxu0 %v274
          %v276 = vpop.f32.mrf.mxu0
          %v277 = vadd.f32 0.0, %v276
          %v278 = vpop.f32.mrf.mxu0
          %279 = vdwg.mxu0
          %280 = vmatprep.subr.mxu0 0.0
          %281 = vmatpush1.msra.mxu0 0.0
          %282 = vmatprep.subr.mxu0 0.0
          %283 = vmatpush1.msra.mxu0 0.0
          %284 = vmatprep.subr.mxu0 0.0
          %285 = vmatpush1.msra.mxu0 0.0
          %286 = vmatprep.subr.mxu0 0.0
          %287 = vmatpush1.msra.mxu0 0.0
          %288 = vmatprep.subr.mxu0 0.0
          %289 = vmatpush1.msra.mxu0 0.0
          %290 = vmatprep.subr.mxu0 0.0
          %291 = vmatpush1.msra.mxu0 0.0
          %292 = vmatprep.subr.mxu0 0.0
          %293 = vmatpush1.msra.mxu0 0.0
          %294 = vmatprep.subr.mxu0 0.0
          %295 = vmatpush1.msra.mxu0 0.0
          %296 = vmatprep.subr.mxu0 0.0
          %297 = vmatpush1.msra.mxu0 0.0
          %298 = vmatprep.subr.mxu0 0.0
          %299 = vmatpush1.msra.mxu0 0.0
          %300 = vmatprep.subr.mxu0 0.0
          %301 = vmatpush1.msra.mxu0 0.0
          %302 = vmatprep.subr.mxu0 0.0
          %303 = vmatpush1.msra.mxu0 0.0
          %304 = vmatprep.subr.mxu0 0.0
          %305 = vmatpush1.msra.mxu0 0.0
          %306 = vmatprep.subr.mxu0 0.0
          %307 = vmatpush1.msra.mxu0 0.0
          %308 = vmatprep.subr.mxu0 0.0
          %v309 = vand.u32 %v165, 4294901760
          %v310 = vsub.f32 %v165, %v309
          %v311 = vand.u32 %v310, 4294901760
          %v312 = vsub.f32 %v310, %v311
          %v313 = vand.u32 %v312, 4294901760
          %314 = vmatpush1.msra.mxu0 %v313
          %315 = vmatprep.subr.mxu0 0.0
          %v316 = vand.u32 %v164, 4294901760
          %v317 = vsub.f32 %v164, %v316
          %v318 = vand.u32 %v317, 4294901760
          %v319 = vsub.f32 %v317, %v318
          %v320 = vand.u32 %v319, 4294901760
          %321 = vmatpush1.msra.mxu0 %v320
          %322 = vmatprep.subr.mxu0 0.0
          %323 = vmatpush2.msra.mxu0 0.0
          %324 = vmatprep.subr.mxu0 0.0
          %325 = vmatpush2.msra.mxu0 0.0
          %326 = vmatprep.subr.mxu0 0.0
          %327 = vmatpush2.msra.mxu0 0.0
          %328 = vmatprep.subr.mxu0 0.0
          %329 = vmatpush2.msra.mxu0 0.0
          %330 = vmatprep.subr.mxu0 0.0
          %331 = vmatpush2.msra.mxu0 0.0
          %332 = vmatprep.subr.mxu0 0.0
          %333 = vmatpush2.msra.mxu0 0.0
          %334 = vmatprep.subr.mxu0 0.0
          %335 = vmatpush2.msra.mxu0 0.0
          %336 = vmatprep.subr.mxu0 0.0
          %337 = vmatpush2.msra.mxu0 0.0
          %338 = vmatprep.subr.mxu0 0.0
          %339 = vmatpush2.msra.mxu0 0.0
          %340 = vmatprep.subr.mxu0 0.0
          %341 = vmatpush2.msra.mxu0 0.0
          %342 = vmatprep.subr.mxu0 0.0
          %343 = vmatpush2.msra.mxu0 0.0
          %344 = vmatprep.subr.mxu0 0.0
          %345 = vmatpush2.msra.mxu0 0.0
          %346 = vmatprep.subr.mxu0 0.0
          %347 = vmatpush2.msra.mxu0 0.0
          %348 = vmatprep.subr.mxu0 0.0
          %349 = vmatpush2.msra.mxu0 0.0
          %350 = vmatprep.subr.mxu0 0.0
          %351 = vmatpush2.msra.mxu0 0.0
          %352 = vmatprep.subr.mxu0 0.0
          %353 = vmatpush2.msra.mxu0 0.0
          %354 = vmatprep.mubr.f32.mxu0 0.0
          %v355 = vand.u32 %v188, 4294901760
          %356 = vmatmul.mubr.f32.gmra.mxu0 %v355
          %v357 = vpop.f32.mrf.mxu0
          %v358 = vadd.f32 %v267, %v357
          %v359 = vpop.f32.mrf.mxu0
          %360 = vmatprep.mubr.f32.mxu0 0.0
          %v361 = vand.u32 %v191, 4294901760
          %362 = vmatmul.mubr.f32.gmra.mxu0 %v361
          %v363 = vpop.f32.mrf.mxu0
          %v364 = vadd.f32 %v277, %v363
          %v365 = vpop.f32.mrf.mxu0
          %366 = vdwg.mxu0
          %367 = vmatprep.subr.mxu0 0.0
          %368 = vmatpush1.msra.mxu0 0.0
          %369 = vmatprep.subr.mxu0 0.0
          %370 = vmatpush1.msra.mxu0 0.0
          %371 = vmatprep.subr.mxu0 0.0
          %372 = vmatpush1.msra.mxu0 0.0
          %373 = vmatprep.subr.mxu0 0.0
          %374 = vmatpush1.msra.mxu0 0.0
          %375 = vmatprep.subr.mxu0 0.0
          %376 = vmatpush1.msra.mxu0 0.0
          %377 = vmatprep.subr.mxu0 0.0
          %378 = vmatpush1.msra.mxu0 0.0
          %379 = vmatprep.subr.mxu0 0.0
          %380 = vmatpush1.msra.mxu0 0.0
          %381 = vmatprep.subr.mxu0 0.0
          %382 = vmatpush1.msra.mxu0 0.0
          %383 = vmatprep.subr.mxu0 0.0
          %384 = vmatpush1.msra.mxu0 0.0
          %385 = vmatprep.subr.mxu0 0.0
          %386 = vmatpush1.msra.mxu0 0.0
          %387 = vmatprep.subr.mxu0 0.0
          %388 = vmatpush1.msra.mxu0 0.0
          %389 = vmatprep.subr.mxu0 0.0
          %390 = vmatpush1.msra.mxu0 0.0
          %391 = vmatprep.subr.mxu0 0.0
          %392 = vmatpush1.msra.mxu0 0.0
          %393 = vmatprep.subr.mxu0 0.0
          %394 = vmatpush1.msra.mxu0 0.0
          %395 = vmatprep.subr.mxu0 0.0
          %v396 = vand.u32 %v165, 4294901760
          %v397 = vsub.f32 %v165, %v396
          %398 = vmatpush1.msra.mxu0 %v397
          %399 = vmatprep.subr.mxu0 0.0
          %v400 = vand.u32 %v164, 4294901760
          %v401 = vsub.f32 %v164, %v400
          %402 = vmatpush1.msra.mxu0 %v401
          %403 = vmatprep.subr.mxu0 0.0
          %404 = vmatpush2.msra.mxu0 0.0
          %405 = vmatprep.subr.mxu0 0.0
          %406 = vmatpush2.msra.mxu0 0.0
          %407 = vmatprep.subr.mxu0 0.0
          %408 = vmatpush2.msra.mxu0 0.0
          %409 = vmatprep.subr.mxu0 0.0
          %410 = vmatpush2.msra.mxu0 0.0
          %411 = vmatprep.subr.mxu0 0.0
          %412 = vmatpush2.msra.mxu0 0.0
          %413 = vmatprep.subr.mxu0 0.0
          %414 = vmatpush2.msra.mxu0 0.0
          %415 = vmatprep.subr.mxu0 0.0
          %416 = vmatpush2.msra.mxu0 0.0
          %417 = vmatprep.subr.mxu0 0.0
          %418 = vmatpush2.msra.mxu0 0.0
          %419 = vmatprep.subr.mxu0 0.0
          %420 = vmatpush2.msra.mxu0 0.0
          %421 = vmatprep.subr.mxu0 0.0
          %422 = vmatpush2.msra.mxu0 0.0
          %423 = vmatprep.subr.mxu0 0.0
          %424 = vmatpush2.msra.mxu0 0.0
          %425 = vmatprep.subr.mxu0 0.0
          %426 = vmatpush2.msra.mxu0 0.0
          %427 = vmatprep.subr.mxu0 0.0
          %428 = vmatpush2.msra.mxu0 0.0
          %429 = vmatprep.subr.mxu0 0.0
          %430 = vmatpush2.msra.mxu0 0.0
          %431 = vmatprep.subr.mxu0 0.0
          %432 = vmatpush2.msra.mxu0 0.0
          %433 = vmatprep.subr.mxu0 0.0
          %434 = vmatpush2.msra.mxu0 0.0
          %435 = vmatprep.mubr.f32.mxu0 0.0
          %v436 = vand.u32 %v188, 4294901760
          %v437 = vsub.f32 %v188, %v436
          %438 = vmatmul.mubr.f32.gmra.mxu0 %v437
          %v439 = vpop.f32.mrf.mxu0
          %v440 = vadd.f32 %v358, %v439
          %v441 = vpop.f32.mrf.mxu0
          %442 = vmatprep.mubr.f32.mxu0 0.0
          %v443 = vand.u32 %v191, 4294901760
          %v444 = vsub.f32 %v191, %v443
          %445 = vmatmul.mubr.f32.gmra.mxu0 %v444
          %v446 = vpop.f32.mrf.mxu0
          %v447 = vadd.f32 %v364, %v446
          %v448 = vpop.f32.mrf.mxu0
          %449 = vdwg.mxu0
          %450 = vmatprep.subr.mxu0 0.0
          %451 = vmatpush1.msra.mxu0 0.0
          %452 = vmatprep.subr.mxu0 0.0
          %453 = vmatpush1.msra.mxu0 0.0
          %454 = vmatprep.subr.mxu0 0.0
          %455 = vmatpush1.msra.mxu0 0.0
          %456 = vmatprep.subr.mxu0 0.0
          %457 = vmatpush1.msra.mxu0 0.0
          %458 = vmatprep.subr.mxu0 0.0
          %459 = vmatpush1.msra.mxu0 0.0
          %460 = vmatprep.subr.mxu0 0.0
          %461 = vmatpush1.msra.mxu0 0.0
          %462 = vmatprep.subr.mxu0 0.0
          %463 = vmatpush1.msra.mxu0 0.0
          %464 = vmatprep.subr.mxu0 0.0
          %465 = vmatpush1.msra.mxu0 0.0
          %466 = vmatprep.subr.mxu0 0.0
          %467 = vmatpush1.msra.mxu0 0.0
          %468 = vmatprep.subr.mxu0 0.0
          %469 = vmatpush1.msra.mxu0 0.0
          %470 = vmatprep.subr.mxu0 0.0
          %471 = vmatpush1.msra.mxu0 0.0
          %472 = vmatprep.subr.mxu0 0.0
          %473 = vmatpush1.msra.mxu0 0.0
          %474 = vmatprep.subr.mxu0 0.0
          %475 = vmatpush1.msra.mxu0 0.0
          %476 = vmatprep.subr.mxu0 0.0
          %477 = vmatpush1.msra.mxu0 0.0
          %478 = vmatprep.subr.mxu0 0.0
          %v479 = vand.u32 %v165, 4294901760
          %480 = vmatpush1.msra.mxu0 %v479
          %481 = vmatprep.subr.mxu0 0.0
          %v482 = vand.u32 %v164, 4294901760
          %483 = vmatpush1.msra.mxu0 %v482
          %484 = vmatprep.subr.mxu0 0.0
          %485 = vmatpush2.msra.mxu0 0.0
          %486 = vmatprep.subr.mxu0 0.0
          %487 = vmatpush2.msra.mxu0 0.0
          %488 = vmatprep.subr.mxu0 0.0
          %489 = vmatpush2.msra.mxu0 0.0
          %490 = vmatprep.subr.mxu0 0.0
          %491 = vmatpush2.msra.mxu0 0.0
          %492 = vmatprep.subr.mxu0 0.0
          %493 = vmatpush2.msra.mxu0 0.0
          %494 = vmatprep.subr.mxu0 0.0
          %495 = vmatpush2.msra.mxu0 0.0
          %496 = vmatprep.subr.mxu0 0.0
          %497 = vmatpush2.msra.mxu0 0.0
          %498 = vmatprep.subr.mxu0 0.0
          %499 = vmatpush2.msra.mxu0 0.0
          %500 = vmatprep.subr.mxu0 0.0
          %501 = vmatpush2.msra.mxu0 0.0
          %502 = vmatprep.subr.mxu0 0.0
          %503 = vmatpush2.msra.mxu0 0.0
          %504 = vmatprep.subr.mxu0 0.0
          %505 = vmatpush2.msra.mxu0 0.0
          %506 = vmatprep.subr.mxu0 0.0
          %507 = vmatpush2.msra.mxu0 0.0
          %508 = vmatprep.subr.mxu0 0.0
          %509 = vmatpush2.msra.mxu0 0.0
          %510 = vmatprep.subr.mxu0 0.0
          %511 = vmatpush2.msra.mxu0 0.0
          %512 = vmatprep.subr.mxu0 0.0
          %513 = vmatpush2.msra.mxu0 0.0
          %514 = vmatprep.subr.mxu0 0.0
          %515 = vmatpush2.msra.mxu0 0.0
          %516 = vmatprep.mubr.f32.mxu0 0.0
          %v517 = vand.u32 %v188, 4294901760
          %v518 = vsub.f32 %v188, %v517
          %v519 = vand.u32 %v518, 4294901760
          %520 = vmatmul.mubr.f32.gmra.mxu0 %v519
          %v521 = vpop.f32.mrf.mxu0
          %v522 = vadd.f32 %v440, %v521
          %v523 = vpop.f32.mrf.mxu0
          %524 = vmatprep.mubr.f32.mxu0 0.0
          %v525 = vand.u32 %v191, 4294901760
          %v526 = vsub.f32 %v191, %v525
          %v527 = vand.u32 %v526, 4294901760
          %528 = vmatmul.mubr.f32.gmra.mxu0 %v527
          %v529 = vpop.f32.mrf.mxu0
          %v530 = vadd.f32 %v447, %v529
          %v531 = vpop.f32.mrf.mxu0
          %532 = vdwg.mxu0
          %533 = vmatprep.subr.mxu0 0.0
          %534 = vmatpush1.msra.mxu0 0.0
          %535 = vmatprep.subr.mxu0 0.0
          %536 = vmatpush1.msra.mxu0 0.0
          %537 = vmatprep.subr.mxu0 0.0
          %538 = vmatpush1.msra.mxu0 0.0
          %539 = vmatprep.subr.mxu0 0.0
          %540 = vmatpush1.msra.mxu0 0.0
          %541 = vmatprep.subr.mxu0 0.0
          %542 = vmatpush1.msra.mxu0 0.0
          %543 = vmatprep.subr.mxu0 0.0
          %544 = vmatpush1.msra.mxu0 0.0
          %545 = vmatprep.subr.mxu0 0.0
          %546 = vmatpush1.msra.mxu0 0.0
          %547 = vmatprep.subr.mxu0 0.0
          %548 = vmatpush1.msra.mxu0 0.0
          %549 = vmatprep.subr.mxu0 0.0
          %550 = vmatpush1.msra.mxu0 0.0
          %551 = vmatprep.subr.mxu0 0.0
          %552 = vmatpush1.msra.mxu0 0.0
          %553 = vmatprep.subr.mxu0 0.0
          %554 = vmatpush1.msra.mxu0 0.0
          %555 = vmatprep.subr.mxu0 0.0
          %556 = vmatpush1.msra.mxu0 0.0
          %557 = vmatprep.subr.mxu0 0.0
          %558 = vmatpush1.msra.mxu0 0.0
          %559 = vmatprep.subr.mxu0 0.0
          %560 = vmatpush1.msra.mxu0 0.0
          %561 = vmatprep.subr.mxu0 0.0
          %v562 = vand.u32 %v165, 4294901760
          %v563 = vsub.f32 %v165, %v562
          %v564 = vand.u32 %v563, 4294901760
          %565 = vmatpush1.msra.mxu0 %v564
          %566 = vmatprep.subr.mxu0 0.0
          %v567 = vand.u32 %v164, 4294901760
          %v568 = vsub.f32 %v164, %v567
          %v569 = vand.u32 %v568, 4294901760
          %570 = vmatpush1.msra.mxu0 %v569
          %571 = vmatprep.subr.mxu0 0.0
          %572 = vmatpush2.msra.mxu0 0.0
          %573 = vmatprep.subr.mxu0 0.0
          %574 = vmatpush2.msra.mxu0 0.0
          %575 = vmatprep.subr.mxu0 0.0
          %576 = vmatpush2.msra.mxu0 0.0
          %577 = vmatprep.subr.mxu0 0.0
          %578 = vmatpush2.msra.mxu0 0.0
          %579 = vmatprep.subr.mxu0 0.0
          %580 = vmatpush2.msra.mxu0 0.0
          %581 = vmatprep.subr.mxu0 0.0
          %582 = vmatpush2.msra.mxu0 0.0
          %583 = vmatprep.subr.mxu0 0.0
          %584 = vmatpush2.msra.mxu0 0.0
          %585 = vmatprep.subr.mxu0 0.0
          %586 = vmatpush2.msra.mxu0 0.0
          %587 = vmatprep.subr.mxu0 0.0
          %588 = vmatpush2.msra.mxu0 0.0
          %589 = vmatprep.subr.mxu0 0.0
          %590 = vmatpush2.msra.mxu0 0.0
          %591 = vmatprep.subr.mxu0 0.0
          %592 = vmatpush2.msra.mxu0 0.0
          %593 = vmatprep.subr.mxu0 0.0
          %594 = vmatpush2.msra.mxu0 0.0
          %595 = vmatprep.subr.mxu0 0.0
          %596 = vmatpush2.msra.mxu0 0.0
          %597 = vmatprep.subr.mxu0 0.0
          %598 = vmatpush2.msra.mxu0 0.0
          %599 = vmatprep.subr.mxu0 0.0
          %600 = vmatpush2.msra.mxu0 0.0
          %601 = vmatprep.subr.mxu0 0.0
          %602 = vmatpush2.msra.mxu0 0.0
          %603 = vmatprep.mubr.f32.mxu0 0.0
          %v604 = vand.u32 %v188, 4294901760
          %605 = vmatmul.mubr.f32.gmra.mxu0 %v604
          %v606 = vpop.f32.mrf.mxu0
          %v607 = vadd.f32 %v522, %v606
          %v608 = vpop.f32.mrf.mxu0
          %609 = vmatprep.mubr.f32.mxu0 0.0
          %v610 = vand.u32 %v191, 4294901760
          %611 = vmatmul.mubr.f32.gmra.mxu0 %v610
          %v612 = vpop.f32.mrf.mxu0
          %v613 = vadd.f32 %v530, %v612
          %v614 = vpop.f32.mrf.mxu0
          %615 = vdwg.mxu0
          %616 = vmatprep.subr.mxu0 0.0
          %617 = vmatpush1.msra.mxu0 0.0
          %618 = vmatprep.subr.mxu0 0.0
          %619 = vmatpush1.msra.mxu0 0.0
          %620 = vmatprep.subr.mxu0 0.0
          %621 = vmatpush1.msra.mxu0 0.0
          %622 = vmatprep.subr.mxu0 0.0
          %623 = vmatpush1.msra.mxu0 0.0
          %624 = vmatprep.subr.mxu0 0.0
          %625 = vmatpush1.msra.mxu0 0.0
          %626 = vmatprep.subr.mxu0 0.0
          %627 = vmatpush1.msra.mxu0 0.0
          %628 = vmatprep.subr.mxu0 0.0
          %629 = vmatpush1.msra.mxu0 0.0
          %630 = vmatprep.subr.mxu0 0.0
          %631 = vmatpush1.msra.mxu0 0.0
          %632 = vmatprep.subr.mxu0 0.0
          %633 = vmatpush1.msra.mxu0 0.0
          %634 = vmatprep.subr.mxu0 0.0
          %635 = vmatpush1.msra.mxu0 0.0
          %636 = vmatprep.subr.mxu0 0.0
          %637 = vmatpush1.msra.mxu0 0.0
          %638 = vmatprep.subr.mxu0 0.0
          %639 = vmatpush1.msra.mxu0 0.0
          %640 = vmatprep.subr.mxu0 0.0
          %641 = vmatpush1.msra.mxu0 0.0
          %642 = vmatprep.subr.mxu0 0.0
          %643 = vmatpush1.msra.mxu0 0.0
          %644 = vmatprep.subr.mxu0 0.0
          %v645 = vand.u32 %v165, 4294901760
          %646 = vmatpush1.msra.mxu0 %v645
          %647 = vmatprep.subr.mxu0 0.0
          %v648 = vand.u32 %v164, 4294901760
          %649 = vmatpush1.msra.mxu0 %v648
          %650 = vmatprep.subr.mxu0 0.0
          %651 = vmatpush2.msra.mxu0 0.0
          %652 = vmatprep.subr.mxu0 0.0
          %653 = vmatpush2.msra.mxu0 0.0
          %654 = vmatprep.subr.mxu0 0.0
          %655 = vmatpush2.msra.mxu0 0.0
          %656 = vmatprep.subr.mxu0 0.0
          %657 = vmatpush2.msra.mxu0 0.0
          %658 = vmatprep.subr.mxu0 0.0
          %659 = vmatpush2.msra.mxu0 0.0
          %660 = vmatprep.subr.mxu0 0.0
          %661 = vmatpush2.msra.mxu0 0.0
          %662 = vmatprep.subr.mxu0 0.0
          %663 = vmatpush2.msra.mxu0 0.0
          %664 = vmatprep.subr.mxu0 0.0
          %665 = vmatpush2.msra.mxu0 0.0
          %666 = vmatprep.subr.mxu0 0.0
          %667 = vmatpush2.msra.mxu0 0.0
          %668 = vmatprep.subr.mxu0 0.0
          %669 = vmatpush2.msra.mxu0 0.0
          %670 = vmatprep.subr.mxu0 0.0
          %671 = vmatpush2.msra.mxu0 0.0
          %672 = vmatprep.subr.mxu0 0.0
          %673 = vmatpush2.msra.mxu0 0.0
          %674 = vmatprep.subr.mxu0 0.0
          %675 = vmatpush2.msra.mxu0 0.0
          %676 = vmatprep.subr.mxu0 0.0
          %677 = vmatpush2.msra.mxu0 0.0
          %678 = vmatprep.subr.mxu0 0.0
          %679 = vmatpush2.msra.mxu0 0.0
          %680 = vmatprep.subr.mxu0 0.0
          %681 = vmatpush2.msra.mxu0 0.0
          %682 = vmatprep.mubr.f32.mxu0 0.0
          %v683 = vand.u32 %v188, 4294901760
          %684 = vmatmul.mubr.f32.gmra.mxu0 %v683
          %v685 = vpop.f32.mrf.mxu0
          %v686 = vadd.f32 %v607, %v685
          %v687 = vpop.f32.mrf.mxu0
          %688 = vmatprep.mubr.f32.mxu0 0.0
          %v689 = vand.u32 %v191, 4294901760
          %690 = vmatmul.mubr.f32.gmra.mxu0 %v689
          %v691 = vpop.f32.mrf.mxu0
          %v692 = vadd.f32 %v613, %v691
          %v693 = vpop.f32.mrf.mxu0
          %694 = vdwg.mxu0
          %v696 = vsel %vm186, %v182, 0
          %v699 = vsel %vm186, %v183, 0
          %701 = vmatprep.subr.mxu0 0.0
          %702 = vmatpush1.msra.mxu0 0.0
          %703 = vmatprep.subr.mxu0 0.0
          %704 = vmatpush1.msra.mxu0 0.0
          %705 = vmatprep.subr.mxu0 0.0
          %706 = vmatpush1.msra.mxu0 0.0
          %707 = vmatprep.subr.mxu0 0.0
          %708 = vmatpush1.msra.mxu0 0.0
          %709 = vmatprep.subr.mxu0 0.0
          %710 = vmatpush1.msra.mxu0 0.0
          %711 = vmatprep.subr.mxu0 0.0
          %712 = vmatpush1.msra.mxu0 0.0
          %713 = vmatprep.subr.mxu0 0.0
          %714 = vmatpush1.msra.mxu0 0.0
          %715 = vmatprep.subr.mxu0 0.0
          %716 = vmatpush1.msra.mxu0 0.0
          %717 = vmatprep.subr.mxu0 0.0
          %718 = vmatpush1.msra.mxu0 0.0
          %719 = vmatprep.subr.mxu0 0.0
          %720 = vmatpush1.msra.mxu0 0.0
          %721 = vmatprep.subr.mxu0 0.0
          %722 = vmatpush1.msra.mxu0 0.0
          %723 = vmatprep.subr.mxu0 0.0
          %724 = vmatpush1.msra.mxu0 0.0
          %725 = vmatprep.subr.mxu0 0.0
          %726 = vmatpush1.msra.mxu0 0.0
          %727 = vmatprep.subr.mxu0 0.0
          %728 = vmatpush1.msra.mxu0 0.0
          %729 = vmatprep.subr.mxu0 0.0
          %v730 = vand.u32 %v692, 4294901760
          %731 = vmatpush1.msra.mxu0 %v730
          %732 = vmatprep.subr.mxu0 0.0
          %v733 = vand.u32 %v686, 4294901760
          %734 = vmatpush1.msra.mxu0 %v733
          %735 = vmatprep.subr.mxu0 0.0
          %736 = vmatpush2.msra.mxu0 0.0
          %737 = vmatprep.subr.mxu0 0.0
          %738 = vmatpush2.msra.mxu0 0.0
          %739 = vmatprep.subr.mxu0 0.0
          %740 = vmatpush2.msra.mxu0 0.0
          %741 = vmatprep.subr.mxu0 0.0
          %742 = vmatpush2.msra.mxu0 0.0
          %743 = vmatprep.subr.mxu0 0.0
          %744 = vmatpush2.msra.mxu0 0.0
          %745 = vmatprep.subr.mxu0 0.0
          %746 = vmatpush2.msra.mxu0 0.0
          %747 = vmatprep.subr.mxu0 0.0
          %748 = vmatpush2.msra.mxu0 0.0
          %749 = vmatprep.subr.mxu0 0.0
          %750 = vmatpush2.msra.mxu0 0.0
          %751 = vmatprep.subr.mxu0 0.0
          %752 = vmatpush2.msra.mxu0 0.0
          %753 = vmatprep.subr.mxu0 0.0
          %754 = vmatpush2.msra.mxu0 0.0
          %755 = vmatprep.subr.mxu0 0.0
          %756 = vmatpush2.msra.mxu0 0.0
          %757 = vmatprep.subr.mxu0 0.0
          %758 = vmatpush2.msra.mxu0 0.0
          %759 = vmatprep.subr.mxu0 0.0
          %760 = vmatpush2.msra.mxu0 0.0
          %761 = vmatprep.subr.mxu0 0.0
          %762 = vmatpush2.msra.mxu0 0.0
          %763 = vmatprep.subr.mxu0 0.0
          %764 = vmatpush2.msra.mxu0 0.0
          %765 = vmatprep.subr.mxu0 0.0
          %766 = vmatpush2.msra.mxu0 0.0
          %767 = vmatprep.mubr.f32.mxu0 0.0
          %v768 = vand.u32 %v696, 4294901760
          %v769 = vsub.f32 %v696, %v768
          %v770 = vand.u32 %v769, 4294901760
          %v771 = vsub.f32 %v769, %v770
          %v772 = vand.u32 %v771, 4294901760
          %773 = vmatmul.mubr.f32.gmra.mxu0 %v772
          %v774 = vpop.f32.mrf.mxu0
          %v775 = vadd.f32 0.0, %v774
          %v776 = vpop.f32.mrf.mxu0
          %777 = vmatprep.mubr.f32.mxu0 0.0
          %v778 = vand.u32 %v699, 4294901760
          %v779 = vsub.f32 %v699, %v778
          %v780 = vand.u32 %v779, 4294901760
          %v781 = vsub.f32 %v779, %v780
          %v782 = vand.u32 %v781, 4294901760
          %783 = vmatmul.mubr.f32.gmra.mxu0 %v782
          %v784 = vpop.f32.mrf.mxu0
          %v785 = vadd.f32 0.0, %v784
          %v786 = vpop.f32.mrf.mxu0
          %787 = vdwg.mxu0
          %788 = vmatprep.subr.mxu0 0.0
          %789 = vmatpush1.msra.mxu0 0.0
          %790 = vmatprep.subr.mxu0 0.0
          %791 = vmatpush1.msra.mxu0 0.0
          %792 = vmatprep.subr.mxu0 0.0
          %793 = vmatpush1.msra.mxu0 0.0
          %794 = vmatprep.subr.mxu0 0.0
          %795 = vmatpush1.msra.mxu0 0.0
          %796 = vmatprep.subr.mxu0 0.0
          %797 = vmatpush1.msra.mxu0 0.0
          %798 = vmatprep.subr.mxu0 0.0
          %799 = vmatpush1.msra.mxu0 0.0
          %800 = vmatprep.subr.mxu0 0.0
          %801 = vmatpush1.msra.mxu0 0.0
          %802 = vmatprep.subr.mxu0 0.0
          %803 = vmatpush1.msra.mxu0 0.0
          %804 = vmatprep.subr.mxu0 0.0
          %805 = vmatpush1.msra.mxu0 0.0
          %806 = vmatprep.subr.mxu0 0.0
          %807 = vmatpush1.msra.mxu0 0.0
          %808 = vmatprep.subr.mxu0 0.0
          %809 = vmatpush1.msra.mxu0 0.0
          %810 = vmatprep.subr.mxu0 0.0
          %811 = vmatpush1.msra.mxu0 0.0
          %812 = vmatprep.subr.mxu0 0.0
          %813 = vmatpush1.msra.mxu0 0.0
          %814 = vmatprep.subr.mxu0 0.0
          %815 = vmatpush1.msra.mxu0 0.0
          %816 = vmatprep.subr.mxu0 0.0
          %v817 = vand.u32 %v692, 4294901760
          %v818 = vsub.f32 %v692, %v817
          %v819 = vand.u32 %v818, 4294901760
          %v820 = vsub.f32 %v818, %v819
          %v821 = vand.u32 %v820, 4294901760
          %822 = vmatpush1.msra.mxu0 %v821
          %823 = vmatprep.subr.mxu0 0.0
          %v824 = vand.u32 %v686, 4294901760
          %v825 = vsub.f32 %v686, %v824
          %v826 = vand.u32 %v825, 4294901760
          %v827 = vsub.f32 %v825, %v826
          %v828 = vand.u32 %v827, 4294901760
          %829 = vmatpush1.msra.mxu0 %v828
          %830 = vmatprep.subr.mxu0 0.0
          %831 = vmatpush2.msra.mxu0 0.0
          %832 = vmatprep.subr.mxu0 0.0
          %833 = vmatpush2.msra.mxu0 0.0
          %834 = vmatprep.subr.mxu0 0.0
          %835 = vmatpush2.msra.mxu0 0.0
          %836 = vmatprep.subr.mxu0 0.0
          %837 = vmatpush2.msra.mxu0 0.0
          %838 = vmatprep.subr.mxu0 0.0
          %839 = vmatpush2.msra.mxu0 0.0
          %840 = vmatprep.subr.mxu0 0.0
          %841 = vmatpush2.msra.mxu0 0.0
          %842 = vmatprep.subr.mxu0 0.0
          %843 = vmatpush2.msra.mxu0 0.0
          %844 = vmatprep.subr.mxu0 0.0
          %845 = vmatpush2.msra.mxu0 0.0
          %846 = vmatprep.subr.mxu0 0.0
          %847 = vmatpush2.msra.mxu0 0.0
          %848 = vmatprep.subr.mxu0 0.0
          %849 = vmatpush2.msra.mxu0 0.0
          %850 = vmatprep.subr.mxu0 0.0
          %851 = vmatpush2.msra.mxu0 0.0
          %852 = vmatprep.subr.mxu0 0.0
          %853 = vmatpush2.msra.mxu0 0.0
          %854 = vmatprep.subr.mxu0 0.0
          %855 = vmatpush2.msra.mxu0 0.0
          %856 = vmatprep.subr.mxu0 0.0
          %857 = vmatpush2.msra.mxu0 0.0
          %858 = vmatprep.subr.mxu0 0.0
          %859 = vmatpush2.msra.mxu0 0.0
          %860 = vmatprep.subr.mxu0 0.0
          %861 = vmatpush2.msra.mxu0 0.0
          %862 = vmatprep.mubr.f32.mxu0 0.0
          %v863 = vand.u32 %v696, 4294901760
          %864 = vmatmul.mubr.f32.gmra.mxu0 %v863
          %v865 = vpop.f32.mrf.mxu0
          %v866 = vadd.f32 %v775, %v865
          %v867 = vpop.f32.mrf.mxu0
          %868 = vmatprep.mubr.f32.mxu0 0.0
          %v869 = vand.u32 %v699, 4294901760
          %870 = vmatmul.mubr.f32.gmra.mxu0 %v869
          %v871 = vpop.f32.mrf.mxu0
          %v872 = vadd.f32 %v785, %v871
          %v873 = vpop.f32.mrf.mxu0
          %874 = vdwg.mxu0
          %875 = vmatprep.subr.mxu0 0.0
          %876 = vmatpush1.msra.mxu0 0.0
          %877 = vmatprep.subr.mxu0 0.0
          %878 = vmatpush1.msra.mxu0 0.0
          %879 = vmatprep.subr.mxu0 0.0
          %880 = vmatpush1.msra.mxu0 0.0
          %881 = vmatprep.subr.mxu0 0.0
          %882 = vmatpush1.msra.mxu0 0.0
          %883 = vmatprep.subr.mxu0 0.0
          %884 = vmatpush1.msra.mxu0 0.0
          %885 = vmatprep.subr.mxu0 0.0
          %886 = vmatpush1.msra.mxu0 0.0
          %887 = vmatprep.subr.mxu0 0.0
          %888 = vmatpush1.msra.mxu0 0.0
          %889 = vmatprep.subr.mxu0 0.0
          %890 = vmatpush1.msra.mxu0 0.0
          %891 = vmatprep.subr.mxu0 0.0
          %892 = vmatpush1.msra.mxu0 0.0
          %893 = vmatprep.subr.mxu0 0.0
          %894 = vmatpush1.msra.mxu0 0.0
          %895 = vmatprep.subr.mxu0 0.0
          %896 = vmatpush1.msra.mxu0 0.0
          %897 = vmatprep.subr.mxu0 0.0
          %898 = vmatpush1.msra.mxu0 0.0
          %899 = vmatprep.subr.mxu0 0.0
          %900 = vmatpush1.msra.mxu0 0.0
          %901 = vmatprep.subr.mxu0 0.0
          %902 = vmatpush1.msra.mxu0 0.0
          %903 = vmatprep.subr.mxu0 0.0
          %v904 = vand.u32 %v692, 4294901760
          %v905 = vsub.f32 %v692, %v904
          %906 = vmatpush1.msra.mxu0 %v905
          %907 = vmatprep.subr.mxu0 0.0
          %v908 = vand.u32 %v686, 4294901760
          %v909 = vsub.f32 %v686, %v908
          %910 = vmatpush1.msra.mxu0 %v909
          %911 = vmatprep.subr.mxu0 0.0
          %912 = vmatpush2.msra.mxu0 0.0
          %913 = vmatprep.subr.mxu0 0.0
          %914 = vmatpush2.msra.mxu0 0.0
          %915 = vmatprep.subr.mxu0 0.0
          %916 = vmatpush2.msra.mxu0 0.0
          %917 = vmatprep.subr.mxu0 0.0
          %918 = vmatpush2.msra.mxu0 0.0
          %919 = vmatprep.subr.mxu0 0.0
          %920 = vmatpush2.msra.mxu0 0.0
          %921 = vmatprep.subr.mxu0 0.0
          %922 = vmatpush2.msra.mxu0 0.0
          %923 = vmatprep.subr.mxu0 0.0
          %924 = vmatpush2.msra.mxu0 0.0
          %925 = vmatprep.subr.mxu0 0.0
          %926 = vmatpush2.msra.mxu0 0.0
          %927 = vmatprep.subr.mxu0 0.0
          %928 = vmatpush2.msra.mxu0 0.0
          %929 = vmatprep.subr.mxu0 0.0
          %930 = vmatpush2.msra.mxu0 0.0
          %931 = vmatprep.subr.mxu0 0.0
          %932 = vmatpush2.msra.mxu0 0.0
          %933 = vmatprep.subr.mxu0 0.0
          %934 = vmatpush2.msra.mxu0 0.0
          %935 = vmatprep.subr.mxu0 0.0
          %936 = vmatpush2.msra.mxu0 0.0
          %937 = vmatprep.subr.mxu0 0.0
          %938 = vmatpush2.msra.mxu0 0.0
          %939 = vmatprep.subr.mxu0 0.0
          %940 = vmatpush2.msra.mxu0 0.0
          %941 = vmatprep.subr.mxu0 0.0
          %942 = vmatpush2.msra.mxu0 0.0
          %943 = vmatprep.mubr.f32.mxu0 0.0
          %v944 = vand.u32 %v696, 4294901760
          %v945 = vsub.f32 %v696, %v944
          %946 = vmatmul.mubr.f32.gmra.mxu0 %v945
          %v947 = vpop.f32.mrf.mxu0
          %v948 = vadd.f32 %v866, %v947
          %v949 = vpop.f32.mrf.mxu0
          %950 = vmatprep.mubr.f32.mxu0 0.0
          %v951 = vand.u32 %v699, 4294901760
          %v952 = vsub.f32 %v699, %v951
          %953 = vmatmul.mubr.f32.gmra.mxu0 %v952
          %v954 = vpop.f32.mrf.mxu0
          %v955 = vadd.f32 %v872, %v954
          %v956 = vpop.f32.mrf.mxu0
          %957 = vdwg.mxu0
          %958 = vmatprep.subr.mxu0 0.0
          %959 = vmatpush1.msra.mxu0 0.0
          %960 = vmatprep.subr.mxu0 0.0
          %961 = vmatpush1.msra.mxu0 0.0
          %962 = vmatprep.subr.mxu0 0.0
          %963 = vmatpush1.msra.mxu0 0.0
          %964 = vmatprep.subr.mxu0 0.0
          %965 = vmatpush1.msra.mxu0 0.0
          %966 = vmatprep.subr.mxu0 0.0
          %967 = vmatpush1.msra.mxu0 0.0
          %968 = vmatprep.subr.mxu0 0.0
          %969 = vmatpush1.msra.mxu0 0.0
          %970 = vmatprep.subr.mxu0 0.0
          %971 = vmatpush1.msra.mxu0 0.0
          %972 = vmatprep.subr.mxu0 0.0
          %973 = vmatpush1.msra.mxu0 0.0
          %974 = vmatprep.subr.mxu0 0.0
          %975 = vmatpush1.msra.mxu0 0.0
          %976 = vmatprep.subr.mxu0 0.0
          %977 = vmatpush1.msra.mxu0 0.0
          %978 = vmatprep.subr.mxu0 0.0
          %979 = vmatpush1.msra.mxu0 0.0
          %980 = vmatprep.subr.mxu0 0.0
          %981 = vmatpush1.msra.mxu0 0.0
          %982 = vmatprep.subr.mxu0 0.0
          %983 = vmatpush1.msra.mxu0 0.0
          %984 = vmatprep.subr.mxu0 0.0
          %985 = vmatpush1.msra.mxu0 0.0
          %986 = vmatprep.subr.mxu0 0.0
          %v987 = vand.u32 %v692, 4294901760
          %988 = vmatpush1.msra.mxu0 %v987
          %989 = vmatprep.subr.mxu0 0.0
          %v990 = vand.u32 %v686, 4294901760
          %991 = vmatpush1.msra.mxu0 %v990
          %992 = vmatprep.subr.mxu0 0.0
          %993 = vmatpush2.msra.mxu0 0.0
          %994 = vmatprep.subr.mxu0 0.0
          %995 = vmatpush2.msra.mxu0 0.0
          %996 = vmatprep.subr.mxu0 0.0
          %997 = vmatpush2.msra.mxu0 0.0
          %998 = vmatprep.subr.mxu0 0.0
          %999 = vmatpush2.msra.mxu0 0.0
          %1000 = vmatprep.subr.mxu0 0.0
          %1001 = vmatpush2.msra.mxu0 0.0
          %1002 = vmatprep.subr.mxu0 0.0
          %1003 = vmatpush2.msra.mxu0 0.0
          %1004 = vmatprep.subr.mxu0 0.0
          %1005 = vmatpush2.msra.mxu0 0.0
          %1006 = vmatprep.subr.mxu0 0.0
          %1007 = vmatpush2.msra.mxu0 0.0
          %1008 = vmatprep.subr.mxu0 0.0
          %1009 = vmatpush2.msra.mxu0 0.0
          %1010 = vmatprep.subr.mxu0 0.0
          %1011 = vmatpush2.msra.mxu0 0.0
          %1012 = vmatprep.subr.mxu0 0.0
          %1013 = vmatpush2.msra.mxu0 0.0
          %1014 = vmatprep.subr.mxu0 0.0
          %1015 = vmatpush2.msra.mxu0 0.0
          %1016 = vmatprep.subr.mxu0 0.0
          %1017 = vmatpush2.msra.mxu0 0.0
          %1018 = vmatprep.subr.mxu0 0.0
          %1019 = vmatpush2.msra.mxu0 0.0
          %1020 = vmatprep.subr.mxu0 0.0
          %1021 = vmatpush2.msra.mxu0 0.0
          %1022 = vmatprep.subr.mxu0 0.0
          %1023 = vmatpush2.msra.mxu0 0.0
          %1024 = vmatprep.mubr.f32.mxu0 0.0
          %v1025 = vand.u32 %v696, 4294901760
          %v1026 = vsub.f32 %v696, %v1025
          %v1027 = vand.u32 %v1026, 4294901760
          %1028 = vmatmul.mubr.f32.gmra.mxu0 %v1027
          %v1029 = vpop.f32.mrf.mxu0
          %v1030 = vadd.f32 %v948, %v1029
          %v1031 = vpop.f32.mrf.mxu0
          %1032 = vmatprep.mubr.f32.mxu0 0.0
          %v1033 = vand.u32 %v699, 4294901760
          %v1034 = vsub.f32 %v699, %v1033
          %v1035 = vand.u32 %v1034, 4294901760
          %1036 = vmatmul.mubr.f32.gmra.mxu0 %v1035
          %v1037 = vpop.f32.mrf.mxu0
          %v1038 = vadd.f32 %v955, %v1037
          %v1039 = vpop.f32.mrf.mxu0
          %1040 = vdwg.mxu0
          %1041 = vmatprep.subr.mxu0 0.0
          %1042 = vmatpush1.msra.mxu0 0.0
          %1043 = vmatprep.subr.mxu0 0.0
          %1044 = vmatpush1.msra.mxu0 0.0
          %1045 = vmatprep.subr.mxu0 0.0
          %1046 = vmatpush1.msra.mxu0 0.0
          %1047 = vmatprep.subr.mxu0 0.0
          %1048 = vmatpush1.msra.mxu0 0.0
          %1049 = vmatprep.subr.mxu0 0.0
          %1050 = vmatpush1.msra.mxu0 0.0
          %1051 = vmatprep.subr.mxu0 0.0
          %1052 = vmatpush1.msra.mxu0 0.0
          %1053 = vmatprep.subr.mxu0 0.0
          %1054 = vmatpush1.msra.mxu0 0.0
          %1055 = vmatprep.subr.mxu0 0.0
          %1056 = vmatpush1.msra.mxu0 0.0
          %1057 = vmatprep.subr.mxu0 0.0
          %1058 = vmatpush1.msra.mxu0 0.0
          %1059 = vmatprep.subr.mxu0 0.0
          %1060 = vmatpush1.msra.mxu0 0.0
          %1061 = vmatprep.subr.mxu0 0.0
          %1062 = vmatpush1.msra.mxu0 0.0
          %1063 = vmatprep.subr.mxu0 0.0
          %1064 = vmatpush1.msra.mxu0 0.0
          %1065 = vmatprep.subr.mxu0 0.0
          %1066 = vmatpush1.msra.mxu0 0.0
          %1067 = vmatprep.subr.mxu0 0.0
          %1068 = vmatpush1.msra.mxu0 0.0
          %1069 = vmatprep.subr.mxu0 0.0
          %v1070 = vand.u32 %v692, 4294901760
          %v1071 = vsub.f32 %v692, %v1070
          %v1072 = vand.u32 %v1071, 4294901760
          %1073 = vmatpush1.msra.mxu0 %v1072
          %1074 = vmatprep.subr.mxu0 0.0
          %v1075 = vand.u32 %v686, 4294901760
          %v1076 = vsub.f32 %v686, %v1075
          %v1077 = vand.u32 %v1076, 4294901760
          %1078 = vmatpush1.msra.mxu0 %v1077
          %1079 = vmatprep.subr.mxu0 0.0
          %1080 = vmatpush2.msra.mxu0 0.0
          %1081 = vmatprep.subr.mxu0 0.0
          %1082 = vmatpush2.msra.mxu0 0.0
          %1083 = vmatprep.subr.mxu0 0.0
          %1084 = vmatpush2.msra.mxu0 0.0
          %1085 = vmatprep.subr.mxu0 0.0
          %1086 = vmatpush2.msra.mxu0 0.0
          %1087 = vmatprep.subr.mxu0 0.0
          %1088 = vmatpush2.msra.mxu0 0.0
          %1089 = vmatprep.subr.mxu0 0.0
          %1090 = vmatpush2.msra.mxu0 0.0
          %1091 = vmatprep.subr.mxu0 0.0
          %1092 = vmatpush2.msra.mxu0 0.0
          %1093 = vmatprep.subr.mxu0 0.0
          %1094 = vmatpush2.msra.mxu0 0.0
          %1095 = vmatprep.subr.mxu0 0.0
          %1096 = vmatpush2.msra.mxu0 0.0
          %1097 = vmatprep.subr.mxu0 0.0
          %1098 = vmatpush2.msra.mxu0 0.0
          %1099 = vmatprep.subr.mxu0 0.0
          %1100 = vmatpush2.msra.mxu0 0.0
          %1101 = vmatprep.subr.mxu0 0.0
          %1102 = vmatpush2.msra.mxu0 0.0
          %1103 = vmatprep.subr.mxu0 0.0
          %1104 = vmatpush2.msra.mxu0 0.0
          %1105 = vmatprep.subr.mxu0 0.0
          %1106 = vmatpush2.msra.mxu0 0.0
          %1107 = vmatprep.subr.mxu0 0.0
          %1108 = vmatpush2.msra.mxu0 0.0
          %1109 = vmatprep.subr.mxu0 0.0
          %1110 = vmatpush2.msra.mxu0 0.0
          %1111 = vmatprep.mubr.f32.mxu0 0.0
          %v1112 = vand.u32 %v696, 4294901760
          %1113 = vmatmul.mubr.f32.gmra.mxu0 %v1112
          %v1114 = vpop.f32.mrf.mxu0
          %v1115 = vadd.f32 %v1030, %v1114
          %v1116 = vpop.f32.mrf.mxu0
          %1117 = vmatprep.mubr.f32.mxu0 0.0
          %v1118 = vand.u32 %v699, 4294901760
          %1119 = vmatmul.mubr.f32.gmra.mxu0 %v1118
          %v1120 = vpop.f32.mrf.mxu0
          %v1121 = vadd.f32 %v1038, %v1120
          %v1122 = vpop.f32.mrf.mxu0
          %1123 = vdwg.mxu0
          %1124 = vmatprep.subr.mxu0 0.0
          %1125 = vmatpush1.msra.mxu0 0.0
          %1126 = vmatprep.subr.mxu0 0.0
          %1127 = vmatpush1.msra.mxu0 0.0
          %1128 = vmatprep.subr.mxu0 0.0
          %1129 = vmatpush1.msra.mxu0 0.0
          %1130 = vmatprep.subr.mxu0 0.0
          %1131 = vmatpush1.msra.mxu0 0.0
          %1132 = vmatprep.subr.mxu0 0.0
          %1133 = vmatpush1.msra.mxu0 0.0
          %1134 = vmatprep.subr.mxu0 0.0
          %1135 = vmatpush1.msra.mxu0 0.0
          %1136 = vmatprep.subr.mxu0 0.0
          %1137 = vmatpush1.msra.mxu0 0.0
          %1138 = vmatprep.subr.mxu0 0.0
          %1139 = vmatpush1.msra.mxu0 0.0
          %1140 = vmatprep.subr.mxu0 0.0
          %1141 = vmatpush1.msra.mxu0 0.0
          %1142 = vmatprep.subr.mxu0 0.0
          %1143 = vmatpush1.msra.mxu0 0.0
          %1144 = vmatprep.subr.mxu0 0.0
          %1145 = vmatpush1.msra.mxu0 0.0
          %1146 = vmatprep.subr.mxu0 0.0
          %1147 = vmatpush1.msra.mxu0 0.0
          %1148 = vmatprep.subr.mxu0 0.0
          %1149 = vmatpush1.msra.mxu0 0.0
          %1150 = vmatprep.subr.mxu0 0.0
          %1151 = vmatpush1.msra.mxu0 0.0
          %1152 = vmatprep.subr.mxu0 0.0
          %v1153 = vand.u32 %v692, 4294901760
          %1154 = vmatpush1.msra.mxu0 %v1153
          %1155 = vmatprep.subr.mxu0 0.0
          %v1156 = vand.u32 %v686, 4294901760
          %1157 = vmatpush1.msra.mxu0 %v1156
          %1158 = vmatprep.subr.mxu0 0.0
          %1159 = vmatpush2.msra.mxu0 0.0
          %1160 = vmatprep.subr.mxu0 0.0
          %1161 = vmatpush2.msra.mxu0 0.0
          %1162 = vmatprep.subr.mxu0 0.0
          %1163 = vmatpush2.msra.mxu0 0.0
          %1164 = vmatprep.subr.mxu0 0.0
          %1165 = vmatpush2.msra.mxu0 0.0
          %1166 = vmatprep.subr.mxu0 0.0
          %1167 = vmatpush2.msra.mxu0 0.0
          %1168 = vmatprep.subr.mxu0 0.0
          %1169 = vmatpush2.msra.mxu0 0.0
          %1170 = vmatprep.subr.mxu0 0.0
          %1171 = vmatpush2.msra.mxu0 0.0
          %1172 = vmatprep.subr.mxu0 0.0
          %1173 = vmatpush2.msra.mxu0 0.0
          %1174 = vmatprep.subr.mxu0 0.0
          %1175 = vmatpush2.msra.mxu0 0.0
          %1176 = vmatprep.subr.mxu0 0.0
          %1177 = vmatpush2.msra.mxu0 0.0
          %1178 = vmatprep.subr.mxu0 0.0
          %1179 = vmatpush2.msra.mxu0 0.0
          %1180 = vmatprep.subr.mxu0 0.0
          %1181 = vmatpush2.msra.mxu0 0.0
          %1182 = vmatprep.subr.mxu0 0.0
          %1183 = vmatpush2.msra.mxu0 0.0
          %1184 = vmatprep.subr.mxu0 0.0
          %1185 = vmatpush2.msra.mxu0 0.0
          %1186 = vmatprep.subr.mxu0 0.0
          %1187 = vmatpush2.msra.mxu0 0.0
          %1188 = vmatprep.subr.mxu0 0.0
          %1189 = vmatpush2.msra.mxu0 0.0
          %1190 = vmatprep.mubr.f32.mxu0 0.0
          %v1191 = vand.u32 %v696, 4294901760
          %1192 = vmatmul.mubr.f32.gmra.mxu0 %v1191
          %v1193 = vpop.f32.mrf.mxu0
          %v1194 = vadd.f32 %v1115, %v1193
          %v1195 = vpop.f32.mrf.mxu0
          %1196 = vmatprep.mubr.f32.mxu0 0.0
          %v1197 = vand.u32 %v699, 4294901760
          %1198 = vmatmul.mubr.f32.gmra.mxu0 %v1197
          %v1199 = vpop.f32.mrf.mxu0
          %v1200 = vadd.f32 %v1121, %v1199
          %v1201 = vpop.f32.mrf.mxu0
          %1202 = vdwg.mxu0
          %1203 = vst.msk [vmem:[%s139] sm:$0xff] %vm186, %v1194
          %1204 = vst.msk [vmem:[%s139 + $0x8] sm:$0xff] %vm186, %v1200
          %s1205 = scalar_lea.vmem %s121, 16 [#allocation4]
          %v1206 = vld [vmem:[%s1205] sm:$0xff]
          %v1207 = vld [vmem:[%s1205 + $0x8] sm:$0xff]
          %v1209 = vsel %vm186, %v1206, 0
          %v1212 = vsel %vm186, %v1207, 0
          %1214 = vmatprep.subr.mxu0 0.0
          %1215 = vmatpush1.msra.mxu0 0.0
          %1216 = vmatprep.subr.mxu0 0.0
          %1217 = vmatpush1.msra.mxu0 0.0
          %1218 = vmatprep.subr.mxu0 0.0
          %1219 = vmatpush1.msra.mxu0 0.0
          %1220 = vmatprep.subr.mxu0 0.0
          %1221 = vmatpush1.msra.mxu0 0.0
          %1222 = vmatprep.subr.mxu0 0.0
          %1223 = vmatpush1.msra.mxu0 0.0
          %1224 = vmatprep.subr.mxu0 0.0
          %1225 = vmatpush1.msra.mxu0 0.0
          %1226 = vmatprep.subr.mxu0 0.0
          %1227 = vmatpush1.msra.mxu0 0.0
          %1228 = vmatprep.subr.mxu0 0.0
          %1229 = vmatpush1.msra.mxu0 0.0
          %1230 = vmatprep.subr.mxu0 0.0
          %1231 = vmatpush1.msra.mxu0 0.0
          %1232 = vmatprep.subr.mxu0 0.0
          %1233 = vmatpush1.msra.mxu0 0.0
          %1234 = vmatprep.subr.mxu0 0.0
          %1235 = vmatpush1.msra.mxu0 0.0
          %1236 = vmatprep.subr.mxu0 0.0
          %1237 = vmatpush1.msra.mxu0 0.0
          %1238 = vmatprep.subr.mxu0 0.0
          %1239 = vmatpush1.msra.mxu0 0.0
          %1240 = vmatprep.subr.mxu0 0.0
          %1241 = vmatpush1.msra.mxu0 0.0
          %1242 = vmatprep.subr.mxu0 0.0
          %v1243 = vand.u32 %v165, 4294901760
          %1244 = vmatpush1.msra.mxu0 %v1243
          %1245 = vmatprep.subr.mxu0 0.0
          %v1246 = vand.u32 %v164, 4294901760
          %1247 = vmatpush1.msra.mxu0 %v1246
          %1248 = vmatprep.subr.mxu0 0.0
          %1249 = vmatpush2.msra.mxu0 0.0
          %1250 = vmatprep.subr.mxu0 0.0
          %1251 = vmatpush2.msra.mxu0 0.0
          %1252 = vmatprep.subr.mxu0 0.0
          %1253 = vmatpush2.msra.mxu0 0.0
          %1254 = vmatprep.subr.mxu0 0.0
          %1255 = vmatpush2.msra.mxu0 0.0
          %1256 = vmatprep.subr.mxu0 0.0
          %1257 = vmatpush2.msra.mxu0 0.0
          %1258 = vmatprep.subr.mxu0 0.0
          %1259 = vmatpush2.msra.mxu0 0.0
          %1260 = vmatprep.subr.mxu0 0.0
          %1261 = vmatpush2.msra.mxu0 0.0
          %1262 = vmatprep.subr.mxu0 0.0
          %1263 = vmatpush2.msra.mxu0 0.0
          %1264 = vmatprep.subr.mxu0 0.0
          %1265 = vmatpush2.msra.mxu0 0.0
          %1266 = vmatprep.subr.mxu0 0.0
          %1267 = vmatpush2.msra.mxu0 0.0
          %1268 = vmatprep.subr.mxu0 0.0
          %1269 = vmatpush2.msra.mxu0 0.0
          %1270 = vmatprep.subr.mxu0 0.0
          %1271 = vmatpush2.msra.mxu0 0.0
          %1272 = vmatprep.subr.mxu0 0.0
          %1273 = vmatpush2.msra.mxu0 0.0
          %1274 = vmatprep.subr.mxu0 0.0
          %1275 = vmatpush2.msra.mxu0 0.0
          %1276 = vmatprep.subr.mxu0 0.0
          %1277 = vmatpush2.msra.mxu0 0.0
          %1278 = vmatprep.subr.mxu0 0.0
          %1279 = vmatpush2.msra.mxu0 0.0
          %1280 = vmatprep.mubr.f32.mxu0 0.0
          %v1281 = vand.u32 %v1209, 4294901760
          %v1282 = vsub.f32 %v1209, %v1281
          %v1283 = vand.u32 %v1282, 4294901760
          %v1284 = vsub.f32 %v1282, %v1283
          %v1285 = vand.u32 %v1284, 4294901760
          %1286 = vmatmul.mubr.f32.gmra.mxu0 %v1285
          %v1287 = vpop.f32.mrf.mxu0
          %v1288 = vadd.f32 0.0, %v1287
          %v1289 = vpop.f32.mrf.mxu0
          %1290 = vmatprep.mubr.f32.mxu0 0.0
          %v1291 = vand.u32 %v1212, 4294901760
          %v1292 = vsub.f32 %v1212, %v1291
          %v1293 = vand.u32 %v1292, 4294901760
          %v1294 = vsub.f32 %v1292, %v1293
          %v1295 = vand.u32 %v1294, 4294901760
          %1296 = vmatmul.mubr.f32.gmra.mxu0 %v1295
          %v1297 = vpop.f32.mrf.mxu0
          %v1298 = vadd.f32 0.0, %v1297
          %v1299 = vpop.f32.mrf.mxu0
          %1300 = vdwg.mxu0
          %1301 = vmatprep.subr.mxu0 0.0
          %1302 = vmatpush1.msra.mxu0 0.0
          %1303 = vmatprep.subr.mxu0 0.0
          %1304 = vmatpush1.msra.mxu0 0.0
          %1305 = vmatprep.subr.mxu0 0.0
          %1306 = vmatpush1.msra.mxu0 0.0
          %1307 = vmatprep.subr.mxu0 0.0
          %1308 = vmatpush1.msra.mxu0 0.0
          %1309 = vmatprep.subr.mxu0 0.0
          %1310 = vmatpush1.msra.mxu0 0.0
          %1311 = vmatprep.subr.mxu0 0.0
          %1312 = vmatpush1.msra.mxu0 0.0
          %1313 = vmatprep.subr.mxu0 0.0
          %1314 = vmatpush1.msra.mxu0 0.0
          %1315 = vmatprep.subr.mxu0 0.0
          %1316 = vmatpush1.msra.mxu0 0.0
          %1317 = vmatprep.subr.mxu0 0.0
          %1318 = vmatpush1.msra.mxu0 0.0
          %1319 = vmatprep.subr.mxu0 0.0
          %1320 = vmatpush1.msra.mxu0 0.0
          %1321 = vmatprep.subr.mxu0 0.0
          %1322 = vmatpush1.msra.mxu0 0.0
          %1323 = vmatprep.subr.mxu0 0.0
          %1324 = vmatpush1.msra.mxu0 0.0
          %1325 = vmatprep.subr.mxu0 0.0
          %1326 = vmatpush1.msra.mxu0 0.0
          %1327 = vmatprep.subr.mxu0 0.0
          %1328 = vmatpush1.msra.mxu0 0.0
          %1329 = vmatprep.subr.mxu0 0.0
          %v1330 = vand.u32 %v165, 4294901760
          %v1331 = vsub.f32 %v165, %v1330
          %v1332 = vand.u32 %v1331, 4294901760
          %v1333 = vsub.f32 %v1331, %v1332
          %v1334 = vand.u32 %v1333, 4294901760
          %1335 = vmatpush1.msra.mxu0 %v1334
          %1336 = vmatprep.subr.mxu0 0.0
          %v1337 = vand.u32 %v164, 4294901760
          %v1338 = vsub.f32 %v164, %v1337
          %v1339 = vand.u32 %v1338, 4294901760
          %v1340 = vsub.f32 %v1338, %v1339
          %v1341 = vand.u32 %v1340, 4294901760
          %1342 = vmatpush1.msra.mxu0 %v1341
          %1343 = vmatprep.subr.mxu0 0.0
          %1344 = vmatpush2.msra.mxu0 0.0
          %1345 = vmatprep.subr.mxu0 0.0
          %1346 = vmatpush2.msra.mxu0 0.0
          %1347 = vmatprep.subr.mxu0 0.0
          %1348 = vmatpush2.msra.mxu0 0.0
          %1349 = vmatprep.subr.mxu0 0.0
          %1350 = vmatpush2.msra.mxu0 0.0
          %1351 = vmatprep.subr.mxu0 0.0
          %1352 = vmatpush2.msra.mxu0 0.0
          %1353 = vmatprep.subr.mxu0 0.0
          %1354 = vmatpush2.msra.mxu0 0.0
          %1355 = vmatprep.subr.mxu0 0.0
          %1356 = vmatpush2.msra.mxu0 0.0
          %1357 = vmatprep.subr.mxu0 0.0
          %1358 = vmatpush2.msra.mxu0 0.0
          %1359 = vmatprep.subr.mxu0 0.0
          %1360 = vmatpush2.msra.mxu0 0.0
          %1361 = vmatprep.subr.mxu0 0.0
          %1362 = vmatpush2.msra.mxu0 0.0
          %1363 = vmatprep.subr.mxu0 0.0
          %1364 = vmatpush2.msra.mxu0 0.0
          %1365 = vmatprep.subr.mxu0 0.0
          %1366 = vmatpush2.msra.mxu0 0.0
          %1367 = vmatprep.subr.mxu0 0.0
          %1368 = vmatpush2.msra.mxu0 0.0
          %1369 = vmatprep.subr.mxu0 0.0
          %1370 = vmatpush2.msra.mxu0 0.0
          %1371 = vmatprep.subr.mxu0 0.0
          %1372 = vmatpush2.msra.mxu0 0.0
          %1373 = vmatprep.subr.mxu0 0.0
          %1374 = vmatpush2.msra.mxu0 0.0
          %1375 = vmatprep.mubr.f32.mxu0 0.0
          %v1376 = vand.u32 %v1209, 4294901760
          %1377 = vmatmul.mubr.f32.gmra.mxu0 %v1376
          %v1378 = vpop.f32.mrf.mxu0
          %v1379 = vadd.f32 %v1288, %v1378
          %v1380 = vpop.f32.mrf.mxu0
          %1381 = vmatprep.mubr.f32.mxu0 0.0
          %v1382 = vand.u32 %v1212, 4294901760
          %1383 = vmatmul.mubr.f32.gmra.mxu0 %v1382
          %v1384 = vpop.f32.mrf.mxu0
          %v1385 = vadd.f32 %v1298, %v1384
          %v1386 = vpop.f32.mrf.mxu0
          %1387 = vdwg.mxu0
          %1388 = vmatprep.subr.mxu0 0.0
          %1389 = vmatpush1.msra.mxu0 0.0
          %1390 = vmatprep.subr.mxu0 0.0
          %1391 = vmatpush1.msra.mxu0 0.0
          %1392 = vmatprep.subr.mxu0 0.0
          %1393 = vmatpush1.msra.mxu0 0.0
          %1394 = vmatprep.subr.mxu0 0.0
          %1395 = vmatpush1.msra.mxu0 0.0
          %1396 = vmatprep.subr.mxu0 0.0
          %1397 = vmatpush1.msra.mxu0 0.0
          %1398 = vmatprep.subr.mxu0 0.0
          %1399 = vmatpush1.msra.mxu0 0.0
          %1400 = vmatprep.subr.mxu0 0.0
          %1401 = vmatpush1.msra.mxu0 0.0
          %1402 = vmatprep.subr.mxu0 0.0
          %1403 = vmatpush1.msra.mxu0 0.0
          %1404 = vmatprep.subr.mxu0 0.0
          %1405 = vmatpush1.msra.mxu0 0.0
          %1406 = vmatprep.subr.mxu0 0.0
          %1407 = vmatpush1.msra.mxu0 0.0
          %1408 = vmatprep.subr.mxu0 0.0
          %1409 = vmatpush1.msra.mxu0 0.0
          %1410 = vmatprep.subr.mxu0 0.0
          %1411 = vmatpush1.msra.mxu0 0.0
          %1412 = vmatprep.subr.mxu0 0.0
          %1413 = vmatpush1.msra.mxu0 0.0
          %1414 = vmatprep.subr.mxu0 0.0
          %1415 = vmatpush1.msra.mxu0 0.0
          %1416 = vmatprep.subr.mxu0 0.0
          %v1417 = vand.u32 %v165, 4294901760
          %v1418 = vsub.f32 %v165, %v1417
          %1419 = vmatpush1.msra.mxu0 %v1418
          %1420 = vmatprep.subr.mxu0 0.0
          %v1421 = vand.u32 %v164, 4294901760
          %v1422 = vsub.f32 %v164, %v1421
          %1423 = vmatpush1.msra.mxu0 %v1422
          %1424 = vmatprep.subr.mxu0 0.0
          %1425 = vmatpush2.msra.mxu0 0.0
          %1426 = vmatprep.subr.mxu0 0.0
          %1427 = vmatpush2.msra.mxu0 0.0
          %1428 = vmatprep.subr.mxu0 0.0
          %1429 = vmatpush2.msra.mxu0 0.0
          %1430 = vmatprep.subr.mxu0 0.0
          %1431 = vmatpush2.msra.mxu0 0.0
          %1432 = vmatprep.subr.mxu0 0.0
          %1433 = vmatpush2.msra.mxu0 0.0
          %1434 = vmatprep.subr.mxu0 0.0
          %1435 = vmatpush2.msra.mxu0 0.0
          %1436 = vmatprep.subr.mxu0 0.0
          %1437 = vmatpush2.msra.mxu0 0.0
          %1438 = vmatprep.subr.mxu0 0.0
          %1439 = vmatpush2.msra.mxu0 0.0
          %1440 = vmatprep.subr.mxu0 0.0
          %1441 = vmatpush2.msra.mxu0 0.0
          %1442 = vmatprep.subr.mxu0 0.0
          %1443 = vmatpush2.msra.mxu0 0.0
          %1444 = vmatprep.subr.mxu0 0.0
          %1445 = vmatpush2.msra.mxu0 0.0
          %1446 = vmatprep.subr.mxu0 0.0
          %1447 = vmatpush2.msra.mxu0 0.0
          %1448 = vmatprep.subr.mxu0 0.0
          %1449 = vmatpush2.msra.mxu0 0.0
          %1450 = vmatprep.subr.mxu0 0.0
          %1451 = vmatpush2.msra.mxu0 0.0
          %1452 = vmatprep.subr.mxu0 0.0
          %1453 = vmatpush2.msra.mxu0 0.0
          %1454 = vmatprep.subr.mxu0 0.0
          %1455 = vmatpush2.msra.mxu0 0.0
          %1456 = vmatprep.mubr.f32.mxu0 0.0
          %v1457 = vand.u32 %v1209, 4294901760
          %v1458 = vsub.f32 %v1209, %v1457
          %1459 = vmatmul.mubr.f32.gmra.mxu0 %v1458
          %v1460 = vpop.f32.mrf.mxu0
          %v1461 = vadd.f32 %v1379, %v1460
          %v1462 = vpop.f32.mrf.mxu0
          %1463 = vmatprep.mubr.f32.mxu0 0.0
          %v1464 = vand.u32 %v1212, 4294901760
          %v1465 = vsub.f32 %v1212, %v1464
          %1466 = vmatmul.mubr.f32.gmra.mxu0 %v1465
          %v1467 = vpop.f32.mrf.mxu0
          %v1468 = vadd.f32 %v1385, %v1467
          %v1469 = vpop.f32.mrf.mxu0
          %1470 = vdwg.mxu0
          %1471 = vmatprep.subr.mxu0 0.0
          %1472 = vmatpush1.msra.mxu0 0.0
          %1473 = vmatprep.subr.mxu0 0.0
          %1474 = vmatpush1.msra.mxu0 0.0
          %1475 = vmatprep.subr.mxu0 0.0
          %1476 = vmatpush1.msra.mxu0 0.0
          %1477 = vmatprep.subr.mxu0 0.0
          %1478 = vmatpush1.msra.mxu0 0.0
          %1479 = vmatprep.subr.mxu0 0.0
          %1480 = vmatpush1.msra.mxu0 0.0
          %1481 = vmatprep.subr.mxu0 0.0
          %1482 = vmatpush1.msra.mxu0 0.0
          %1483 = vmatprep.subr.mxu0 0.0
          %1484 = vmatpush1.msra.mxu0 0.0
          %1485 = vmatprep.subr.mxu0 0.0
          %1486 = vmatpush1.msra.mxu0 0.0
          %1487 = vmatprep.subr.mxu0 0.0
          %1488 = vmatpush1.msra.mxu0 0.0
          %1489 = vmatprep.subr.mxu0 0.0
          %1490 = vmatpush1.msra.mxu0 0.0
          %1491 = vmatprep.subr.mxu0 0.0
          %1492 = vmatpush1.msra.mxu0 0.0
          %1493 = vmatprep.subr.mxu0 0.0
          %1494 = vmatpush1.msra.mxu0 0.0
          %1495 = vmatprep.subr.mxu0 0.0
          %1496 = vmatpush1.msra.mxu0 0.0
          %1497 = vmatprep.subr.mxu0 0.0
          %1498 = vmatpush1.msra.mxu0 0.0
          %1499 = vmatprep.subr.mxu0 0.0
          %v1500 = vand.u32 %v165, 4294901760
          %1501 = vmatpush1.msra.mxu0 %v1500
          %1502 = vmatprep.subr.mxu0 0.0
          %v1503 = vand.u32 %v164, 4294901760
          %1504 = vmatpush1.msra.mxu0 %v1503
          %1505 = vmatprep.subr.mxu0 0.0
          %1506 = vmatpush2.msra.mxu0 0.0
          %1507 = vmatprep.subr.mxu0 0.0
          %1508 = vmatpush2.msra.mxu0 0.0
          %1509 = vmatprep.subr.mxu0 0.0
          %1510 = vmatpush2.msra.mxu0 0.0
          %1511 = vmatprep.subr.mxu0 0.0
          %1512 = vmatpush2.msra.mxu0 0.0
          %1513 = vmatprep.subr.mxu0 0.0
          %1514 = vmatpush2.msra.mxu0 0.0
          %1515 = vmatprep.subr.mxu0 0.0
          %1516 = vmatpush2.msra.mxu0 0.0
          %1517 = vmatprep.subr.mxu0 0.0
          %1518 = vmatpush2.msra.mxu0 0.0
          %1519 = vmatprep.subr.mxu0 0.0
          %1520 = vmatpush2.msra.mxu0 0.0
          %1521 = vmatprep.subr.mxu0 0.0
          %1522 = vmatpush2.msra.mxu0 0.0
          %1523 = vmatprep.subr.mxu0 0.0
          %1524 = vmatpush2.msra.mxu0 0.0
          %1525 = vmatprep.subr.mxu0 0.0
          %1526 = vmatpush2.msra.mxu0 0.0
          %1527 = vmatprep.subr.mxu0 0.0
          %1528 = vmatpush2.msra.mxu0 0.0
          %1529 = vmatprep.subr.mxu0 0.0
          %1530 = vmatpush2.msra.mxu0 0.0
          %1531 = vmatprep.subr.mxu0 0.0
          %1532 = vmatpush2.msra.mxu0 0.0
          %1533 = vmatprep.subr.mxu0 0.0
          %1534 = vmatpush2.msra.mxu0 0.0
          %1535 = vmatprep.subr.mxu0 0.0
          %1536 = vmatpush2.msra.mxu0 0.0
          %1537 = vmatprep.mubr.f32.mxu0 0.0
          %v1538 = vand.u32 %v1209, 4294901760
          %v1539 = vsub.f32 %v1209, %v1538
          %v1540 = vand.u32 %v1539, 4294901760
          %1541 = vmatmul.mubr.f32.gmra.mxu0 %v1540
          %v1542 = vpop.f32.mrf.mxu0
          %v1543 = vadd.f32 %v1461, %v1542
          %v1544 = vpop.f32.mrf.mxu0
          %1545 = vmatprep.mubr.f32.mxu0 0.0
          %v1546 = vand.u32 %v1212, 4294901760
          %v1547 = vsub.f32 %v1212, %v1546
          %v1548 = vand.u32 %v1547, 4294901760
          %1549 = vmatmul.mubr.f32.gmra.mxu0 %v1548
          %v1550 = vpop.f32.mrf.mxu0
          %v1551 = vadd.f32 %v1468, %v1550
          %v1552 = vpop.f32.mrf.mxu0
          %1553 = vdwg.mxu0
          %1554 = vmatprep.subr.mxu0 0.0
          %1555 = vmatpush1.msra.mxu0 0.0
          %1556 = vmatprep.subr.mxu0 0.0
          %1557 = vmatpush1.msra.mxu0 0.0
          %1558 = vmatprep.subr.mxu0 0.0
          %1559 = vmatpush1.msra.mxu0 0.0
          %1560 = vmatprep.subr.mxu0 0.0
          %1561 = vmatpush1.msra.mxu0 0.0
          %1562 = vmatprep.subr.mxu0 0.0
          %1563 = vmatpush1.msra.mxu0 0.0
          %1564 = vmatprep.subr.mxu0 0.0
          %1565 = vmatpush1.msra.mxu0 0.0
          %1566 = vmatprep.subr.mxu0 0.0
          %1567 = vmatpush1.msra.mxu0 0.0
          %1568 = vmatprep.subr.mxu0 0.0
          %1569 = vmatpush1.msra.mxu0 0.0
          %1570 = vmatprep.subr.mxu0 0.0
          %1571 = vmatpush1.msra.mxu0 0.0
          %1572 = vmatprep.subr.mxu0 0.0
          %1573 = vmatpush1.msra.mxu0 0.0
          %1574 = vmatprep.subr.mxu0 0.0
          %1575 = vmatpush1.msra.mxu0 0.0
          %1576 = vmatprep.subr.mxu0 0.0
          %1577 = vmatpush1.msra.mxu0 0.0
          %1578 = vmatprep.subr.mxu0 0.0
          %1579 = vmatpush1.msra.mxu0 0.0
          %1580 = vmatprep.subr.mxu0 0.0
          %1581 = vmatpush1.msra.mxu0 0.0
          %1582 = vmatprep.subr.mxu0 0.0
          %v1583 = vand.u32 %v165, 4294901760
          %v1584 = vsub.f32 %v165, %v1583
          %v1585 = vand.u32 %v1584, 4294901760
          %1586 = vmatpush1.msra.mxu0 %v1585
          %1587 = vmatprep.subr.mxu0 0.0
          %v1588 = vand.u32 %v164, 4294901760
          %v1589 = vsub.f32 %v164, %v1588
          %v1590 = vand.u32 %v1589, 4294901760
          %1591 = vmatpush1.msra.mxu0 %v1590
          %1592 = vmatprep.subr.mxu0 0.0
          %1593 = vmatpush2.msra.mxu0 0.0
          %1594 = vmatprep.subr.mxu0 0.0
          %1595 = vmatpush2.msra.mxu0 0.0
          %1596 = vmatprep.subr.mxu0 0.0
          %1597 = vmatpush2.msra.mxu0 0.0
          %1598 = vmatprep.subr.mxu0 0.0
          %1599 = vmatpush2.msra.mxu0 0.0
          %1600 = vmatprep.subr.mxu0 0.0
          %1601 = vmatpush2.msra.mxu0 0.0
          %1602 = vmatprep.subr.mxu0 0.0
          %1603 = vmatpush2.msra.mxu0 0.0
          %1604 = vmatprep.subr.mxu0 0.0
          %1605 = vmatpush2.msra.mxu0 0.0
          %1606 = vmatprep.subr.mxu0 0.0
          %1607 = vmatpush2.msra.mxu0 0.0
          %1608 = vmatprep.subr.mxu0 0.0
          %1609 = vmatpush2.msra.mxu0 0.0
          %1610 = vmatprep.subr.mxu0 0.0
          %1611 = vmatpush2.msra.mxu0 0.0
          %1612 = vmatprep.subr.mxu0 0.0
          %1613 = vmatpush2.msra.mxu0 0.0
          %1614 = vmatprep.subr.mxu0 0.0
          %1615 = vmatpush2.msra.mxu0 0.0
          %1616 = vmatprep.subr.mxu0 0.0
          %1617 = vmatpush2.msra.mxu0 0.0
          %1618 = vmatprep.subr.mxu0 0.0
          %1619 = vmatpush2.msra.mxu0 0.0
          %1620 = vmatprep.subr.mxu0 0.0
          %1621 = vmatpush2.msra.mxu0 0.0
          %1622 = vmatprep.subr.mxu0 0.0
          %1623 = vmatpush2.msra.mxu0 0.0
          %1624 = vmatprep.mubr.f32.mxu0 0.0
          %v1625 = vand.u32 %v1209, 4294901760
          %1626 = vmatmul.mubr.f32.gmra.mxu0 %v1625
          %v1627 = vpop.f32.mrf.mxu0
          %v1628 = vadd.f32 %v1543, %v1627
          %v1629 = vpop.f32.mrf.mxu0
          %1630 = vmatprep.mubr.f32.mxu0 0.0
          %v1631 = vand.u32 %v1212, 4294901760
          %1632 = vmatmul.mubr.f32.gmra.mxu0 %v1631
          %v1633 = vpop.f32.mrf.mxu0
          %v1634 = vadd.f32 %v1551, %v1633
          %v1635 = vpop.f32.mrf.mxu0
          %1636 = vdwg.mxu0
          %1637 = vmatprep.subr.mxu0 0.0
          %1638 = vmatpush1.msra.mxu0 0.0
          %1639 = vmatprep.subr.mxu0 0.0
          %1640 = vmatpush1.msra.mxu0 0.0
          %1641 = vmatprep.subr.mxu0 0.0
          %1642 = vmatpush1.msra.mxu0 0.0
          %1643 = vmatprep.subr.mxu0 0.0
          %1644 = vmatpush1.msra.mxu0 0.0
          %1645 = vmatprep.subr.mxu0 0.0
          %1646 = vmatpush1.msra.mxu0 0.0
          %1647 = vmatprep.subr.mxu0 0.0
          %1648 = vmatpush1.msra.mxu0 0.0
          %1649 = vmatprep.subr.mxu0 0.0
          %1650 = vmatpush1.msra.mxu0 0.0
          %1651 = vmatprep.subr.mxu0 0.0
          %1652 = vmatpush1.msra.mxu0 0.0
          %1653 = vmatprep.subr.mxu0 0.0
          %1654 = vmatpush1.msra.mxu0 0.0
          %1655 = vmatprep.subr.mxu0 0.0
          %1656 = vmatpush1.msra.mxu0 0.0
          %1657 = vmatprep.subr.mxu0 0.0
          %1658 = vmatpush1.msra.mxu0 0.0
          %1659 = vmatprep.subr.mxu0 0.0
          %1660 = vmatpush1.msra.mxu0 0.0
          %1661 = vmatprep.subr.mxu0 0.0
          %1662 = vmatpush1.msra.mxu0 0.0
          %1663 = vmatprep.subr.mxu0 0.0
          %1664 = vmatpush1.msra.mxu0 0.0
          %1665 = vmatprep.subr.mxu0 0.0
          %v1666 = vand.u32 %v165, 4294901760
          %1667 = vmatpush1.msra.mxu0 %v1666
          %1668 = vmatprep.subr.mxu0 0.0
          %v1669 = vand.u32 %v164, 4294901760
          %1670 = vmatpush1.msra.mxu0 %v1669
          %1671 = vmatprep.subr.mxu0 0.0
          %1672 = vmatpush2.msra.mxu0 0.0
          %1673 = vmatprep.subr.mxu0 0.0
          %1674 = vmatpush2.msra.mxu0 0.0
          %1675 = vmatprep.subr.mxu0 0.0
          %1676 = vmatpush2.msra.mxu0 0.0
          %1677 = vmatprep.subr.mxu0 0.0
          %1678 = vmatpush2.msra.mxu0 0.0
          %1679 = vmatprep.subr.mxu0 0.0
          %1680 = vmatpush2.msra.mxu0 0.0
          %1681 = vmatprep.subr.mxu0 0.0
          %1682 = vmatpush2.msra.mxu0 0.0
          %1683 = vmatprep.subr.mxu0 0.0
          %1684 = vmatpush2.msra.mxu0 0.0
          %1685 = vmatprep.subr.mxu0 0.0
          %1686 = vmatpush2.msra.mxu0 0.0
          %1687 = vmatprep.subr.mxu0 0.0
          %1688 = vmatpush2.msra.mxu0 0.0
          %1689 = vmatprep.subr.mxu0 0.0
          %1690 = vmatpush2.msra.mxu0 0.0
          %1691 = vmatprep.subr.mxu0 0.0
          %1692 = vmatpush2.msra.mxu0 0.0
          %1693 = vmatprep.subr.mxu0 0.0
          %1694 = vmatpush2.msra.mxu0 0.0
          %1695 = vmatprep.subr.mxu0 0.0
          %1696 = vmatpush2.msra.mxu0 0.0
          %1697 = vmatprep.subr.mxu0 0.0
          %1698 = vmatpush2.msra.mxu0 0.0
          %1699 = vmatprep.subr.mxu0 0.0
          %1700 = vmatpush2.msra.mxu0 0.0
          %1701 = vmatprep.subr.mxu0 0.0
          %1702 = vmatpush2.msra.mxu0 0.0
          %1703 = vmatprep.mubr.f32.mxu0 0.0
          %v1704 = vand.u32 %v1209, 4294901760
          %1705 = vmatmul.mubr.f32.gmra.mxu0 %v1704
          %v1706 = vpop.f32.mrf.mxu0
          %v1707 = vadd.f32 %v1628, %v1706
          %v1708 = vpop.f32.mrf.mxu0
          %1709 = vmatprep.mubr.f32.mxu0 0.0
          %v1710 = vand.u32 %v1212, 4294901760
          %1711 = vmatmul.mubr.f32.gmra.mxu0 %v1710
          %v1712 = vpop.f32.mrf.mxu0
          %v1713 = vadd.f32 %v1634, %v1712
          %v1714 = vpop.f32.mrf.mxu0
          %1715 = vdwg.mxu0
          %1716 = vmatprep.subr.mxu0 0.0
          %1717 = vmatpush1.msra.mxu0 0.0
          %1718 = vmatprep.subr.mxu0 0.0
          %1719 = vmatpush1.msra.mxu0 0.0
          %1720 = vmatprep.subr.mxu0 0.0
          %1721 = vmatpush1.msra.mxu0 0.0
          %1722 = vmatprep.subr.mxu0 0.0
          %1723 = vmatpush1.msra.mxu0 0.0
          %1724 = vmatprep.subr.mxu0 0.0
          %1725 = vmatpush1.msra.mxu0 0.0
          %1726 = vmatprep.subr.mxu0 0.0
          %1727 = vmatpush1.msra.mxu0 0.0
          %1728 = vmatprep.subr.mxu0 0.0
          %1729 = vmatpush1.msra.mxu0 0.0
          %1730 = vmatprep.subr.mxu0 0.0
          %1731 = vmatpush1.msra.mxu0 0.0
          %1732 = vmatprep.subr.mxu0 0.0
          %1733 = vmatpush1.msra.mxu0 0.0
          %1734 = vmatprep.subr.mxu0 0.0
          %1735 = vmatpush1.msra.mxu0 0.0
          %1736 = vmatprep.subr.mxu0 0.0
          %1737 = vmatpush1.msra.mxu0 0.0
          %1738 = vmatprep.subr.mxu0 0.0
          %1739 = vmatpush1.msra.mxu0 0.0
          %1740 = vmatprep.subr.mxu0 0.0
          %1741 = vmatpush1.msra.mxu0 0.0
          %1742 = vmatprep.subr.mxu0 0.0
          %1743 = vmatpush1.msra.mxu0 0.0
          %1744 = vmatprep.subr.mxu0 0.0
          %v1745 = vand.u32 %v1713, 4294901760
          %1746 = vmatpush1.msra.mxu0 %v1745
          %1747 = vmatprep.subr.mxu0 0.0
          %v1748 = vand.u32 %v1707, 4294901760
          %1749 = vmatpush1.msra.mxu0 %v1748
          %1750 = vmatprep.subr.mxu0 0.0
          %1751 = vmatpush2.msra.mxu0 0.0
          %1752 = vmatprep.subr.mxu0 0.0
          %1753 = vmatpush2.msra.mxu0 0.0
          %1754 = vmatprep.subr.mxu0 0.0
          %1755 = vmatpush2.msra.mxu0 0.0
          %1756 = vmatprep.subr.mxu0 0.0
          %1757 = vmatpush2.msra.mxu0 0.0
          %1758 = vmatprep.subr.mxu0 0.0
          %1759 = vmatpush2.msra.mxu0 0.0
          %1760 = vmatprep.subr.mxu0 0.0
          %1761 = vmatpush2.msra.mxu0 0.0
          %1762 = vmatprep.subr.mxu0 0.0
          %1763 = vmatpush2.msra.mxu0 0.0
          %1764 = vmatprep.subr.mxu0 0.0
          %1765 = vmatpush2.msra.mxu0 0.0
          %1766 = vmatprep.subr.mxu0 0.0
          %1767 = vmatpush2.msra.mxu0 0.0
          %1768 = vmatprep.subr.mxu0 0.0
          %1769 = vmatpush2.msra.mxu0 0.0
          %1770 = vmatprep.subr.mxu0 0.0
          %1771 = vmatpush2.msra.mxu0 0.0
          %1772 = vmatprep.subr.mxu0 0.0
          %1773 = vmatpush2.msra.mxu0 0.0
          %1774 = vmatprep.subr.mxu0 0.0
          %1775 = vmatpush2.msra.mxu0 0.0
          %1776 = vmatprep.subr.mxu0 0.0
          %1777 = vmatpush2.msra.mxu0 0.0
          %1778 = vmatprep.subr.mxu0 0.0
          %1779 = vmatpush2.msra.mxu0 0.0
          %1780 = vmatprep.subr.mxu0 0.0
          %1781 = vmatpush2.msra.mxu0 0.0
          %1782 = vmatprep.mubr.f32.mxu0 0.0
          %v1783 = vand.u32 %v696, 4294901760
          %v1784 = vsub.f32 %v696, %v1783
          %v1785 = vand.u32 %v1784, 4294901760
          %v1786 = vsub.f32 %v1784, %v1785
          %v1787 = vand.u32 %v1786, 4294901760
          %1788 = vmatmul.mubr.f32.gmra.mxu0 %v1787
          %v1789 = vpop.f32.mrf.mxu0
          %v1790 = vadd.f32 0.0, %v1789
          %v1791 = vpop.f32.mrf.mxu0
          %1792 = vmatprep.mubr.f32.mxu0 0.0
          %v1793 = vand.u32 %v699, 4294901760
          %v1794 = vsub.f32 %v699, %v1793
          %v1795 = vand.u32 %v1794, 4294901760
          %v1796 = vsub.f32 %v1794, %v1795
          %v1797 = vand.u32 %v1796, 4294901760
          %1798 = vmatmul.mubr.f32.gmra.mxu0 %v1797
          %v1799 = vpop.f32.mrf.mxu0
          %v1800 = vadd.f32 0.0, %v1799
          %v1801 = vpop.f32.mrf.mxu0
          %1802 = vdwg.mxu0
          %1803 = vmatprep.subr.mxu0 0.0
          %1804 = vmatpush1.msra.mxu0 0.0
          %1805 = vmatprep.subr.mxu0 0.0
          %1806 = vmatpush1.msra.mxu0 0.0
          %1807 = vmatprep.subr.mxu0 0.0
          %1808 = vmatpush1.msra.mxu0 0.0
          %1809 = vmatprep.subr.mxu0 0.0
          %1810 = vmatpush1.msra.mxu0 0.0
          %1811 = vmatprep.subr.mxu0 0.0
          %1812 = vmatpush1.msra.mxu0 0.0
          %1813 = vmatprep.subr.mxu0 0.0
          %1814 = vmatpush1.msra.mxu0 0.0
          %1815 = vmatprep.subr.mxu0 0.0
          %1816 = vmatpush1.msra.mxu0 0.0
          %1817 = vmatprep.subr.mxu0 0.0
          %1818 = vmatpush1.msra.mxu0 0.0
          %1819 = vmatprep.subr.mxu0 0.0
          %1820 = vmatpush1.msra.mxu0 0.0
          %1821 = vmatprep.subr.mxu0 0.0
          %1822 = vmatpush1.msra.mxu0 0.0
          %1823 = vmatprep.subr.mxu0 0.0
          %1824 = vmatpush1.msra.mxu0 0.0
          %1825 = vmatprep.subr.mxu0 0.0
          %1826 = vmatpush1.msra.mxu0 0.0
          %1827 = vmatprep.subr.mxu0 0.0
          %1828 = vmatpush1.msra.mxu0 0.0
          %1829 = vmatprep.subr.mxu0 0.0
          %1830 = vmatpush1.msra.mxu0 0.0
          %1831 = vmatprep.subr.mxu0 0.0
          %v1832 = vand.u32 %v1713, 4294901760
          %v1833 = vsub.f32 %v1713, %v1832
          %v1834 = vand.u32 %v1833, 4294901760
          %v1835 = vsub.f32 %v1833, %v1834
          %v1836 = vand.u32 %v1835, 4294901760
          %1837 = vmatpush1.msra.mxu0 %v1836
          %1838 = vmatprep.subr.mxu0 0.0
          %v1839 = vand.u32 %v1707, 4294901760
          %v1840 = vsub.f32 %v1707, %v1839
          %v1841 = vand.u32 %v1840, 4294901760
          %v1842 = vsub.f32 %v1840, %v1841
          %v1843 = vand.u32 %v1842, 4294901760
          %1844 = vmatpush1.msra.mxu0 %v1843
          %1845 = vmatprep.subr.mxu0 0.0
          %1846 = vmatpush2.msra.mxu0 0.0
          %1847 = vmatprep.subr.mxu0 0.0
          %1848 = vmatpush2.msra.mxu0 0.0
          %1849 = vmatprep.subr.mxu0 0.0
          %1850 = vmatpush2.msra.mxu0 0.0
          %1851 = vmatprep.subr.mxu0 0.0
          %1852 = vmatpush2.msra.mxu0 0.0
          %1853 = vmatprep.subr.mxu0 0.0
          %1854 = vmatpush2.msra.mxu0 0.0
          %1855 = vmatprep.subr.mxu0 0.0
          %1856 = vmatpush2.msra.mxu0 0.0
          %1857 = vmatprep.subr.mxu0 0.0
          %1858 = vmatpush2.msra.mxu0 0.0
          %1859 = vmatprep.subr.mxu0 0.0
          %1860 = vmatpush2.msra.mxu0 0.0
          %1861 = vmatprep.subr.mxu0 0.0
          %1862 = vmatpush2.msra.mxu0 0.0
          %1863 = vmatprep.subr.mxu0 0.0
          %1864 = vmatpush2.msra.mxu0 0.0
          %1865 = vmatprep.subr.mxu0 0.0
          %1866 = vmatpush2.msra.mxu0 0.0
          %1867 = vmatprep.subr.mxu0 0.0
          %1868 = vmatpush2.msra.mxu0 0.0
          %1869 = vmatprep.subr.mxu0 0.0
          %1870 = vmatpush2.msra.mxu0 0.0
          %1871 = vmatprep.subr.mxu0 0.0
          %1872 = vmatpush2.msra.mxu0 0.0
          %1873 = vmatprep.subr.mxu0 0.0
          %1874 = vmatpush2.msra.mxu0 0.0
          %1875 = vmatprep.subr.mxu0 0.0
          %1876 = vmatpush2.msra.mxu0 0.0
          %1877 = vmatprep.mubr.f32.mxu0 0.0
          %v1878 = vand.u32 %v696, 4294901760
          %1879 = vmatmul.mubr.f32.gmra.mxu0 %v1878
          %v1880 = vpop.f32.mrf.mxu0
          %v1881 = vadd.f32 %v1790, %v1880
          %v1882 = vpop.f32.mrf.mxu0
          %1883 = vmatprep.mubr.f32.mxu0 0.0
          %v1884 = vand.u32 %v699, 4294901760
          %1885 = vmatmul.mubr.f32.gmra.mxu0 %v1884
          %v1886 = vpop.f32.mrf.mxu0
          %v1887 = vadd.f32 %v1800, %v1886
          %v1888 = vpop.f32.mrf.mxu0
          %1889 = vdwg.mxu0
          %1890 = vmatprep.subr.mxu0 0.0
          %1891 = vmatpush1.msra.mxu0 0.0
          %1892 = vmatprep.subr.mxu0 0.0
          %1893 = vmatpush1.msra.mxu0 0.0
          %1894 = vmatprep.subr.mxu0 0.0
          %1895 = vmatpush1.msra.mxu0 0.0
          %1896 = vmatprep.subr.mxu0 0.0
          %1897 = vmatpush1.msra.mxu0 0.0
          %1898 = vmatprep.subr.mxu0 0.0
          %1899 = vmatpush1.msra.mxu0 0.0
          %1900 = vmatprep.subr.mxu0 0.0
          %1901 = vmatpush1.msra.mxu0 0.0
          %1902 = vmatprep.subr.mxu0 0.0
          %1903 = vmatpush1.msra.mxu0 0.0
          %1904 = vmatprep.subr.mxu0 0.0
          %1905 = vmatpush1.msra.mxu0 0.0
          %1906 = vmatprep.subr.mxu0 0.0
          %1907 = vmatpush1.msra.mxu0 0.0
          %1908 = vmatprep.subr.mxu0 0.0
          %1909 = vmatpush1.msra.mxu0 0.0
          %1910 = vmatprep.subr.mxu0 0.0
          %1911 = vmatpush1.msra.mxu0 0.0
          %1912 = vmatprep.subr.mxu0 0.0
          %1913 = vmatpush1.msra.mxu0 0.0
          %1914 = vmatprep.subr.mxu0 0.0
          %1915 = vmatpush1.msra.mxu0 0.0
          %1916 = vmatprep.subr.mxu0 0.0
          %1917 = vmatpush1.msra.mxu0 0.0
          %1918 = vmatprep.subr.mxu0 0.0
          %v1919 = vand.u32 %v1713, 4294901760
          %v1920 = vsub.f32 %v1713, %v1919
          %1921 = vmatpush1.msra.mxu0 %v1920
          %1922 = vmatprep.subr.mxu0 0.0
          %v1923 = vand.u32 %v1707, 4294901760
          %v1924 = vsub.f32 %v1707, %v1923
          %1925 = vmatpush1.msra.mxu0 %v1924
          %1926 = vmatprep.subr.mxu0 0.0
          %1927 = vmatpush2.msra.mxu0 0.0
          %1928 = vmatprep.subr.mxu0 0.0
          %1929 = vmatpush2.msra.mxu0 0.0
          %1930 = vmatprep.subr.mxu0 0.0
          %1931 = vmatpush2.msra.mxu0 0.0
          %1932 = vmatprep.subr.mxu0 0.0
          %1933 = vmatpush2.msra.mxu0 0.0
          %1934 = vmatprep.subr.mxu0 0.0
          %1935 = vmatpush2.msra.mxu0 0.0
          %1936 = vmatprep.subr.mxu0 0.0
          %1937 = vmatpush2.msra.mxu0 0.0
          %1938 = vmatprep.subr.mxu0 0.0
          %1939 = vmatpush2.msra.mxu0 0.0
          %1940 = vmatprep.subr.mxu0 0.0
          %1941 = vmatpush2.msra.mxu0 0.0
          %1942 = vmatprep.subr.mxu0 0.0
          %1943 = vmatpush2.msra.mxu0 0.0
          %1944 = vmatprep.subr.mxu0 0.0
          %1945 = vmatpush2.msra.mxu0 0.0
          %1946 = vmatprep.subr.mxu0 0.0
          %1947 = vmatpush2.msra.mxu0 0.0
          %1948 = vmatprep.subr.mxu0 0.0
          %1949 = vmatpush2.msra.mxu0 0.0
          %1950 = vmatprep.subr.mxu0 0.0
          %1951 = vmatpush2.msra.mxu0 0.0
          %1952 = vmatprep.subr.mxu0 0.0
          %1953 = vmatpush2.msra.mxu0 0.0
          %1954 = vmatprep.subr.mxu0 0.0
          %1955 = vmatpush2.msra.mxu0 0.0
          %1956 = vmatprep.subr.mxu0 0.0
          %1957 = vmatpush2.msra.mxu0 0.0
          %1958 = vmatprep.mubr.f32.mxu0 0.0
          %v1959 = vand.u32 %v696, 4294901760
          %v1960 = vsub.f32 %v696, %v1959
          %1961 = vmatmul.mubr.f32.gmra.mxu0 %v1960
          %v1962 = vpop.f32.mrf.mxu0
          %v1963 = vadd.f32 %v1881, %v1962
          %v1964 = vpop.f32.mrf.mxu0
          %1965 = vmatprep.mubr.f32.mxu0 0.0
          %v1966 = vand.u32 %v699, 4294901760
          %v1967 = vsub.f32 %v699, %v1966
          %1968 = vmatmul.mubr.f32.gmra.mxu0 %v1967
          %v1969 = vpop.f32.mrf.mxu0
          %v1970 = vadd.f32 %v1887, %v1969
          %v1971 = vpop.f32.mrf.mxu0
          %1972 = vdwg.mxu0
          %1973 = vmatprep.subr.mxu0 0.0
          %1974 = vmatpush1.msra.mxu0 0.0
          %1975 = vmatprep.subr.mxu0 0.0
          %1976 = vmatpush1.msra.mxu0 0.0
          %1977 = vmatprep.subr.mxu0 0.0
          %1978 = vmatpush1.msra.mxu0 0.0
          %1979 = vmatprep.subr.mxu0 0.0
          %1980 = vmatpush1.msra.mxu0 0.0
          %1981 = vmatprep.subr.mxu0 0.0
          %1982 = vmatpush1.msra.mxu0 0.0
          %1983 = vmatprep.subr.mxu0 0.0
          %1984 = vmatpush1.msra.mxu0 0.0
          %1985 = vmatprep.subr.mxu0 0.0
          %1986 = vmatpush1.msra.mxu0 0.0
          %1987 = vmatprep.subr.mxu0 0.0
          %1988 = vmatpush1.msra.mxu0 0.0
          %1989 = vmatprep.subr.mxu0 0.0
          %1990 = vmatpush1.msra.mxu0 0.0
          %1991 = vmatprep.subr.mxu0 0.0
          %1992 = vmatpush1.msra.mxu0 0.0
          %1993 = vmatprep.subr.mxu0 0.0
          %1994 = vmatpush1.msra.mxu0 0.0
          %1995 = vmatprep.subr.mxu0 0.0
          %1996 = vmatpush1.msra.mxu0 0.0
          %1997 = vmatprep.subr.mxu0 0.0
          %1998 = vmatpush1.msra.mxu0 0.0
          %1999 = vmatprep.subr.mxu0 0.0
          %2000 = vmatpush1.msra.mxu0 0.0
          %2001 = vmatprep.subr.mxu0 0.0
          %v2002 = vand.u32 %v1713, 4294901760
          %2003 = vmatpush1.msra.mxu0 %v2002
          %2004 = vmatprep.subr.mxu0 0.0
          %v2005 = vand.u32 %v1707, 4294901760
          %2006 = vmatpush1.msra.mxu0 %v2005
          %2007 = vmatprep.subr.mxu0 0.0
          %2008 = vmatpush2.msra.mxu0 0.0
          %2009 = vmatprep.subr.mxu0 0.0
          %2010 = vmatpush2.msra.mxu0 0.0
          %2011 = vmatprep.subr.mxu0 0.0
          %2012 = vmatpush2.msra.mxu0 0.0
          %2013 = vmatprep.subr.mxu0 0.0
          %2014 = vmatpush2.msra.mxu0 0.0
          %2015 = vmatprep.subr.mxu0 0.0
          %2016 = vmatpush2.msra.mxu0 0.0
          %2017 = vmatprep.subr.mxu0 0.0
          %2018 = vmatpush2.msra.mxu0 0.0
          %2019 = vmatprep.subr.mxu0 0.0
          %2020 = vmatpush2.msra.mxu0 0.0
          %2021 = vmatprep.subr.mxu0 0.0
          %2022 = vmatpush2.msra.mxu0 0.0
          %2023 = vmatprep.subr.mxu0 0.0
          %2024 = vmatpush2.msra.mxu0 0.0
          %2025 = vmatprep.subr.mxu0 0.0
          %2026 = vmatpush2.msra.mxu0 0.0
          %2027 = vmatprep.subr.mxu0 0.0
          %2028 = vmatpush2.msra.mxu0 0.0
          %2029 = vmatprep.subr.mxu0 0.0
          %2030 = vmatpush2.msra.mxu0 0.0
          %2031 = vmatprep.subr.mxu0 0.0
          %2032 = vmatpush2.msra.mxu0 0.0
          %2033 = vmatprep.subr.mxu0 0.0
          %2034 = vmatpush2.msra.mxu0 0.0
          %2035 = vmatprep.subr.mxu0 0.0
          %2036 = vmatpush2.msra.mxu0 0.0
          %2037 = vmatprep.subr.mxu0 0.0
          %2038 = vmatpush2.msra.mxu0 0.0
          %2039 = vmatprep.mubr.f32.mxu0 0.0
          %v2040 = vand.u32 %v696, 4294901760
          %v2041 = vsub.f32 %v696, %v2040
          %v2042 = vand.u32 %v2041, 4294901760
          %2043 = vmatmul.mubr.f32.gmra.mxu0 %v2042
          %v2044 = vpop.f32.mrf.mxu0
          %v2045 = vadd.f32 %v1963, %v2044
          %v2046 = vpop.f32.mrf.mxu0
          %2047 = vmatprep.mubr.f32.mxu0 0.0
          %v2048 = vand.u32 %v699, 4294901760
          %v2049 = vsub.f32 %v699, %v2048
          %v2050 = vand.u32 %v2049, 4294901760
          %2051 = vmatmul.mubr.f32.gmra.mxu0 %v2050
          %v2052 = vpop.f32.mrf.mxu0
          %v2053 = vadd.f32 %v1970, %v2052
          %v2054 = vpop.f32.mrf.mxu0
          %2055 = vdwg.mxu0
          %2056 = vmatprep.subr.mxu0 0.0
          %2057 = vmatpush1.msra.mxu0 0.0
          %2058 = vmatprep.subr.mxu0 0.0
          %2059 = vmatpush1.msra.mxu0 0.0
          %2060 = vmatprep.subr.mxu0 0.0
          %2061 = vmatpush1.msra.mxu0 0.0
          %2062 = vmatprep.subr.mxu0 0.0
          %2063 = vmatpush1.msra.mxu0 0.0
          %2064 = vmatprep.subr.mxu0 0.0
          %2065 = vmatpush1.msra.mxu0 0.0
          %2066 = vmatprep.subr.mxu0 0.0
          %2067 = vmatpush1.msra.mxu0 0.0
          %2068 = vmatprep.subr.mxu0 0.0
          %2069 = vmatpush1.msra.mxu0 0.0
          %2070 = vmatprep.subr.mxu0 0.0
          %2071 = vmatpush1.msra.mxu0 0.0
          %2072 = vmatprep.subr.mxu0 0.0
          %2073 = vmatpush1.msra.mxu0 0.0
          %2074 = vmatprep.subr.mxu0 0.0
          %2075 = vmatpush1.msra.mxu0 0.0
          %2076 = vmatprep.subr.mxu0 0.0
          %2077 = vmatpush1.msra.mxu0 0.0
          %2078 = vmatprep.subr.mxu0 0.0
          %2079 = vmatpush1.msra.mxu0 0.0
          %2080 = vmatprep.subr.mxu0 0.0
          %2081 = vmatpush1.msra.mxu0 0.0
          %2082 = vmatprep.subr.mxu0 0.0
          %2083 = vmatpush1.msra.mxu0 0.0
          %2084 = vmatprep.subr.mxu0 0.0
          %v2085 = vand.u32 %v1713, 4294901760
          %v2086 = vsub.f32 %v1713, %v2085
          %v2087 = vand.u32 %v2086, 4294901760
          %2088 = vmatpush1.msra.mxu0 %v2087
          %2089 = vmatprep.subr.mxu0 0.0
          %v2090 = vand.u32 %v1707, 4294901760
          %v2091 = vsub.f32 %v1707, %v2090
          %v2092 = vand.u32 %v2091, 4294901760
          %2093 = vmatpush1.msra.mxu0 %v2092
          %2094 = vmatprep.subr.mxu0 0.0
          %2095 = vmatpush2.msra.mxu0 0.0
          %2096 = vmatprep.subr.mxu0 0.0
          %2097 = vmatpush2.msra.mxu0 0.0
          %2098 = vmatprep.subr.mxu0 0.0
          %2099 = vmatpush2.msra.mxu0 0.0
          %2100 = vmatprep.subr.mxu0 0.0
          %2101 = vmatpush2.msra.mxu0 0.0
          %2102 = vmatprep.subr.mxu0 0.0
          %2103 = vmatpush2.msra.mxu0 0.0
          %2104 = vmatprep.subr.mxu0 0.0
          %2105 = vmatpush2.msra.mxu0 0.0
          %2106 = vmatprep.subr.mxu0 0.0
          %2107 = vmatpush2.msra.mxu0 0.0
          %2108 = vmatprep.subr.mxu0 0.0
          %2109 = vmatpush2.msra.mxu0 0.0
          %2110 = vmatprep.subr.mxu0 0.0
          %2111 = vmatpush2.msra.mxu0 0.0
          %2112 = vmatprep.subr.mxu0 0.0
          %2113 = vmatpush2.msra.mxu0 0.0
          %2114 = vmatprep.subr.mxu0 0.0
          %2115 = vmatpush2.msra.mxu0 0.0
          %2116 = vmatprep.subr.mxu0 0.0
          %2117 = vmatpush2.msra.mxu0 0.0
          %2118 = vmatprep.subr.mxu0 0.0
          %2119 = vmatpush2.msra.mxu0 0.0
          %2120 = vmatprep.subr.mxu0 0.0
          %2121 = vmatpush2.msra.mxu0 0.0
          %2122 = vmatprep.subr.mxu0 0.0
          %2123 = vmatpush2.msra.mxu0 0.0
          %2124 = vmatprep.subr.mxu0 0.0
          %2125 = vmatpush2.msra.mxu0 0.0
          %2126 = vmatprep.mubr.f32.mxu0 0.0
          %v2127 = vand.u32 %v696, 4294901760
          %2128 = vmatmul.mubr.f32.gmra.mxu0 %v2127
          %v2129 = vpop.f32.mrf.mxu0
          %v2130 = vadd.f32 %v2045, %v2129
          %v2131 = vpop.f32.mrf.mxu0
          %2132 = vmatprep.mubr.f32.mxu0 0.0
          %v2133 = vand.u32 %v699, 4294901760
          %2134 = vmatmul.mubr.f32.gmra.mxu0 %v2133
          %v2135 = vpop.f32.mrf.mxu0
          %v2136 = vadd.f32 %v2053, %v2135
          %v2137 = vpop.f32.mrf.mxu0
          %2138 = vdwg.mxu0
          %2139 = vmatprep.subr.mxu0 0.0
          %2140 = vmatpush1.msra.mxu0 0.0
          %2141 = vmatprep.subr.mxu0 0.0
          %2142 = vmatpush1.msra.mxu0 0.0
          %2143 = vmatprep.subr.mxu0 0.0
          %2144 = vmatpush1.msra.mxu0 0.0
          %2145 = vmatprep.subr.mxu0 0.0
          %2146 = vmatpush1.msra.mxu0 0.0
          %2147 = vmatprep.subr.mxu0 0.0
          %2148 = vmatpush1.msra.mxu0 0.0
          %2149 = vmatprep.subr.mxu0 0.0
          %2150 = vmatpush1.msra.mxu0 0.0
          %2151 = vmatprep.subr.mxu0 0.0
          %2152 = vmatpush1.msra.mxu0 0.0
          %2153 = vmatprep.subr.mxu0 0.0
          %2154 = vmatpush1.msra.mxu0 0.0
          %2155 = vmatprep.subr.mxu0 0.0
          %2156 = vmatpush1.msra.mxu0 0.0
          %2157 = vmatprep.subr.mxu0 0.0
          %2158 = vmatpush1.msra.mxu0 0.0
          %2159 = vmatprep.subr.mxu0 0.0
          %2160 = vmatpush1.msra.mxu0 0.0
          %2161 = vmatprep.subr.mxu0 0.0
          %2162 = vmatpush1.msra.mxu0 0.0
          %2163 = vmatprep.subr.mxu0 0.0
          %2164 = vmatpush1.msra.mxu0 0.0
          %2165 = vmatprep.subr.mxu0 0.0
          %2166 = vmatpush1.msra.mxu0 0.0
          %2167 = vmatprep.subr.mxu0 0.0
          %v2168 = vand.u32 %v1713, 4294901760
          %2169 = vmatpush1.msra.mxu0 %v2168
          %2170 = vmatprep.subr.mxu0 0.0
          %v2171 = vand.u32 %v1707, 4294901760
          %2172 = vmatpush1.msra.mxu0 %v2171
          %2173 = vmatprep.subr.mxu0 0.0
          %2174 = vmatpush2.msra.mxu0 0.0
          %2175 = vmatprep.subr.mxu0 0.0
          %2176 = vmatpush2.msra.mxu0 0.0
          %2177 = vmatprep.subr.mxu0 0.0
          %2178 = vmatpush2.msra.mxu0 0.0
          %2179 = vmatprep.subr.mxu0 0.0
          %2180 = vmatpush2.msra.mxu0 0.0
          %2181 = vmatprep.subr.mxu0 0.0
          %2182 = vmatpush2.msra.mxu0 0.0
          %2183 = vmatprep.subr.mxu0 0.0
          %2184 = vmatpush2.msra.mxu0 0.0
          %2185 = vmatprep.subr.mxu0 0.0
          %2186 = vmatpush2.msra.mxu0 0.0
          %2187 = vmatprep.subr.mxu0 0.0
          %2188 = vmatpush2.msra.mxu0 0.0
          %2189 = vmatprep.subr.mxu0 0.0
          %2190 = vmatpush2.msra.mxu0 0.0
          %2191 = vmatprep.subr.mxu0 0.0
          %2192 = vmatpush2.msra.mxu0 0.0
          %2193 = vmatprep.subr.mxu0 0.0
          %2194 = vmatpush2.msra.mxu0 0.0
          %2195 = vmatprep.subr.mxu0 0.0
          %2196 = vmatpush2.msra.mxu0 0.0
          %2197 = vmatprep.subr.mxu0 0.0
          %2198 = vmatpush2.msra.mxu0 0.0
          %2199 = vmatprep.subr.mxu0 0.0
          %2200 = vmatpush2.msra.mxu0 0.0
          %2201 = vmatprep.subr.mxu0 0.0
          %2202 = vmatpush2.msra.mxu0 0.0
          %2203 = vmatprep.subr.mxu0 0.0
          %2204 = vmatpush2.msra.mxu0 0.0
          %2205 = vmatprep.mubr.f32.mxu0 0.0
          %v2206 = vand.u32 %v696, 4294901760
          %2207 = vmatmul.mubr.f32.gmra.mxu0 %v2206
          %v2208 = vpop.f32.mrf.mxu0
          %v2209 = vadd.f32 %v2130, %v2208
          %v2210 = vpop.f32.mrf.mxu0
          %2211 = vmatprep.mubr.f32.mxu0 0.0
          %v2212 = vand.u32 %v699, 4294901760
          %2213 = vmatmul.mubr.f32.gmra.mxu0 %v2212
          %v2214 = vpop.f32.mrf.mxu0
          %v2215 = vadd.f32 %v2136, %v2214
          %v2216 = vpop.f32.mrf.mxu0
          %2217 = vdwg.mxu0
          %s2218 = scalar_lea.vmem %s139, 16 [#allocation7]
          %2219 = vst.msk [vmem:[%s2218] sm:$0xff] %vm186, %v2209
          %2220 = vst.msk [vmem:[%s2218 + $0x8] sm:$0xff] %vm186, %v2215
          %s2221 = scalar_lea.vmem %s121, 32 [#allocation4]
          %v2222 = vld [vmem:[%s2221] sm:$0xff]
          %v2223 = vld [vmem:[%s2221 + $0x8] sm:$0xff]
          %v2225 = vsel %vm186, %v2222, 0
          %v2228 = vsel %vm186, %v2223, 0
          %2230 = vmatprep.subr.mxu0 0.0
          %2231 = vmatpush1.msra.mxu0 0.0
          %2232 = vmatprep.subr.mxu0 0.0
          %2233 = vmatpush1.msra.mxu0 0.0
          %2234 = vmatprep.subr.mxu0 0.0
          %2235 = vmatpush1.msra.mxu0 0.0
          %2236 = vmatprep.subr.mxu0 0.0
          %2237 = vmatpush1.msra.mxu0 0.0
          %2238 = vmatprep.subr.mxu0 0.0
          %2239 = vmatpush1.msra.mxu0 0.0
          %2240 = vmatprep.subr.mxu0 0.0
          %2241 = vmatpush1.msra.mxu0 0.0
          %2242 = vmatprep.subr.mxu0 0.0
          %2243 = vmatpush1.msra.mxu0 0.0
          %2244 = vmatprep.subr.mxu0 0.0
          %2245 = vmatpush1.msra.mxu0 0.0
          %2246 = vmatprep.subr.mxu0 0.0
          %2247 = vmatpush1.msra.mxu0 0.0
          %2248 = vmatprep.subr.mxu0 0.0
          %2249 = vmatpush1.msra.mxu0 0.0
          %2250 = vmatprep.subr.mxu0 0.0
          %2251 = vmatpush1.msra.mxu0 0.0
          %2252 = vmatprep.subr.mxu0 0.0
          %2253 = vmatpush1.msra.mxu0 0.0
          %2254 = vmatprep.subr.mxu0 0.0
          %2255 = vmatpush1.msra.mxu0 0.0
          %2256 = vmatprep.subr.mxu0 0.0
          %2257 = vmatpush1.msra.mxu0 0.0
          %2258 = vmatprep.subr.mxu0 0.0
          %v2259 = vand.u32 %v165, 4294901760
          %2260 = vmatpush1.msra.mxu0 %v2259
          %2261 = vmatprep.subr.mxu0 0.0
          %v2262 = vand.u32 %v164, 4294901760
          %2263 = vmatpush1.msra.mxu0 %v2262
          %2264 = vmatprep.subr.mxu0 0.0
          %2265 = vmatpush2.msra.mxu0 0.0
          %2266 = vmatprep.subr.mxu0 0.0
          %2267 = vmatpush2.msra.mxu0 0.0
          %2268 = vmatprep.subr.mxu0 0.0
          %2269 = vmatpush2.msra.mxu0 0.0
          %2270 = vmatprep.subr.mxu0 0.0
          %2271 = vmatpush2.msra.mxu0 0.0
          %2272 = vmatprep.subr.mxu0 0.0
          %2273 = vmatpush2.msra.mxu0 0.0
          %2274 = vmatprep.subr.mxu0 0.0
          %2275 = vmatpush2.msra.mxu0 0.0
          %2276 = vmatprep.subr.mxu0 0.0
          %2277 = vmatpush2.msra.mxu0 0.0
          %2278 = vmatprep.subr.mxu0 0.0
          %2279 = vmatpush2.msra.mxu0 0.0
          %2280 = vmatprep.subr.mxu0 0.0
          %2281 = vmatpush2.msra.mxu0 0.0
          %2282 = vmatprep.subr.mxu0 0.0
          %2283 = vmatpush2.msra.mxu0 0.0
          %2284 = vmatprep.subr.mxu0 0.0
          %2285 = vmatpush2.msra.mxu0 0.0
          %2286 = vmatprep.subr.mxu0 0.0
          %2287 = vmatpush2.msra.mxu0 0.0
          %2288 = vmatprep.subr.mxu0 0.0
          %2289 = vmatpush2.msra.mxu0 0.0
          %2290 = vmatprep.subr.mxu0 0.0
          %2291 = vmatpush2.msra.mxu0 0.0
          %2292 = vmatprep.subr.mxu0 0.0
          %2293 = vmatpush2.msra.mxu0 0.0
          %2294 = vmatprep.subr.mxu0 0.0
          %2295 = vmatpush2.msra.mxu0 0.0
          %2296 = vmatprep.mubr.f32.mxu0 0.0
          %v2297 = vand.u32 %v2225, 4294901760
          %v2298 = vsub.f32 %v2225, %v2297
          %v2299 = vand.u32 %v2298, 4294901760
          %v2300 = vsub.f32 %v2298, %v2299
          %v2301 = vand.u32 %v2300, 4294901760
          %2302 = vmatmul.mubr.f32.gmra.mxu0 %v2301
          %v2303 = vpop.f32.mrf.mxu0
          %v2304 = vadd.f32 0.0, %v2303
          %v2305 = vpop.f32.mrf.mxu0
          %2306 = vmatprep.mubr.f32.mxu0 0.0
          %v2307 = vand.u32 %v2228, 4294901760
          %v2308 = vsub.f32 %v2228, %v2307
          %v2309 = vand.u32 %v2308, 4294901760
          %v2310 = vsub.f32 %v2308, %v2309
          %v2311 = vand.u32 %v2310, 4294901760
          %2312 = vmatmul.mubr.f32.gmra.mxu0 %v2311
          %v2313 = vpop.f32.mrf.mxu0
          %v2314 = vadd.f32 0.0, %v2313
          %v2315 = vpop.f32.mrf.mxu0
          %2316 = vdwg.mxu0
          %2317 = vmatprep.subr.mxu0 0.0
          %2318 = vmatpush1.msra.mxu0 0.0
          %2319 = vmatprep.subr.mxu0 0.0
          %2320 = vmatpush1.msra.mxu0 0.0
          %2321 = vmatprep.subr.mxu0 0.0
          %2322 = vmatpush1.msra.mxu0 0.0
          %2323 = vmatprep.subr.mxu0 0.0
          %2324 = vmatpush1.msra.mxu0 0.0
          %2325 = vmatprep.subr.mxu0 0.0
          %2326 = vmatpush1.msra.mxu0 0.0
          %2327 = vmatprep.subr.mxu0 0.0
          %2328 = vmatpush1.msra.mxu0 0.0
          %2329 = vmatprep.subr.mxu0 0.0
          %2330 = vmatpush1.msra.mxu0 0.0
          %2331 = vmatprep.subr.mxu0 0.0
          %2332 = vmatpush1.msra.mxu0 0.0
          %2333 = vmatprep.subr.mxu0 0.0
          %2334 = vmatpush1.msra.mxu0 0.0
          %2335 = vmatprep.subr.mxu0 0.0
          %2336 = vmatpush1.msra.mxu0 0.0
          %2337 = vmatprep.subr.mxu0 0.0
          %2338 = vmatpush1.msra.mxu0 0.0
          %2339 = vmatprep.subr.mxu0 0.0
          %2340 = vmatpush1.msra.mxu0 0.0
          %2341 = vmatprep.subr.mxu0 0.0
          %2342 = vmatpush1.msra.mxu0 0.0
          %2343 = vmatprep.subr.mxu0 0.0
          %2344 = vmatpush1.msra.mxu0 0.0
          %2345 = vmatprep.subr.mxu0 0.0
          %v2346 = vand.u32 %v165, 4294901760
          %v2347 = vsub.f32 %v165, %v2346
          %v2348 = vand.u32 %v2347, 4294901760
          %v2349 = vsub.f32 %v2347, %v2348
          %v2350 = vand.u32 %v2349, 4294901760
          %2351 = vmatpush1.msra.mxu0 %v2350
          %2352 = vmatprep.subr.mxu0 0.0
          %v2353 = vand.u32 %v164, 4294901760
          %v2354 = vsub.f32 %v164, %v2353
          %v2355 = vand.u32 %v2354, 4294901760
          %v2356 = vsub.f32 %v2354, %v2355
          %v2357 = vand.u32 %v2356, 4294901760
          %2358 = vmatpush1.msra.mxu0 %v2357
          %2359 = vmatprep.subr.mxu0 0.0
          %2360 = vmatpush2.msra.mxu0 0.0
          %2361 = vmatprep.subr.mxu0 0.0
          %2362 = vmatpush2.msra.mxu0 0.0
          %2363 = vmatprep.subr.mxu0 0.0
          %2364 = vmatpush2.msra.mxu0 0.0
          %2365 = vmatprep.subr.mxu0 0.0
          %2366 = vmatpush2.msra.mxu0 0.0
          %2367 = vmatprep.subr.mxu0 0.0
          %2368 = vmatpush2.msra.mxu0 0.0
          %2369 = vmatprep.subr.mxu0 0.0
          %2370 = vmatpush2.msra.mxu0 0.0
          %2371 = vmatprep.subr.mxu0 0.0
          %2372 = vmatpush2.msra.mxu0 0.0
          %2373 = vmatprep.subr.mxu0 0.0
          %2374 = vmatpush2.msra.mxu0 0.0
          %2375 = vmatprep.subr.mxu0 0.0
          %2376 = vmatpush2.msra.mxu0 0.0
          %2377 = vmatprep.subr.mxu0 0.0
          %2378 = vmatpush2.msra.mxu0 0.0
          %2379 = vmatprep.subr.mxu0 0.0
          %2380 = vmatpush2.msra.mxu0 0.0
          %2381 = vmatprep.subr.mxu0 0.0
          %2382 = vmatpush2.msra.mxu0 0.0
          %2383 = vmatprep.subr.mxu0 0.0
          %2384 = vmatpush2.msra.mxu0 0.0
          %2385 = vmatprep.subr.mxu0 0.0
          %2386 = vmatpush2.msra.mxu0 0.0
          %2387 = vmatprep.subr.mxu0 0.0
          %2388 = vmatpush2.msra.mxu0 0.0
          %2389 = vmatprep.subr.mxu0 0.0
          %2390 = vmatpush2.msra.mxu0 0.0
          %2391 = vmatprep.mubr.f32.mxu0 0.0
          %v2392 = vand.u32 %v2225, 4294901760
          %2393 = vmatmul.mubr.f32.gmra.mxu0 %v2392
          %v2394 = vpop.f32.mrf.mxu0
          %v2395 = vadd.f32 %v2304, %v2394
          %v2396 = vpop.f32.mrf.mxu0
          %2397 = vmatprep.mubr.f32.mxu0 0.0
          %v2398 = vand.u32 %v2228, 4294901760
          %2399 = vmatmul.mubr.f32.gmra.mxu0 %v2398
          %v2400 = vpop.f32.mrf.mxu0
          %v2401 = vadd.f32 %v2314, %v2400
          %v2402 = vpop.f32.mrf.mxu0
          %2403 = vdwg.mxu0
          %2404 = vmatprep.subr.mxu0 0.0
          %2405 = vmatpush1.msra.mxu0 0.0
          %2406 = vmatprep.subr.mxu0 0.0
          %2407 = vmatpush1.msra.mxu0 0.0
          %2408 = vmatprep.subr.mxu0 0.0
          %2409 = vmatpush1.msra.mxu0 0.0
          %2410 = vmatprep.subr.mxu0 0.0
          %2411 = vmatpush1.msra.mxu0 0.0
          %2412 = vmatprep.subr.mxu0 0.0
          %2413 = vmatpush1.msra.mxu0 0.0
          %2414 = vmatprep.subr.mxu0 0.0
          %2415 = vmatpush1.msra.mxu0 0.0
          %2416 = vmatprep.subr.mxu0 0.0
          %2417 = vmatpush1.msra.mxu0 0.0
          %2418 = vmatprep.subr.mxu0 0.0
          %2419 = vmatpush1.msra.mxu0 0.0
          %2420 = vmatprep.subr.mxu0 0.0
          %2421 = vmatpush1.msra.mxu0 0.0
          %2422 = vmatprep.subr.mxu0 0.0
          %2423 = vmatpush1.msra.mxu0 0.0
          %2424 = vmatprep.subr.mxu0 0.0
          %2425 = vmatpush1.msra.mxu0 0.0
          %2426 = vmatprep.subr.mxu0 0.0
          %2427 = vmatpush1.msra.mxu0 0.0
          %2428 = vmatprep.subr.mxu0 0.0
          %2429 = vmatpush1.msra.mxu0 0.0
          %2430 = vmatprep.subr.mxu0 0.0
          %2431 = vmatpush1.msra.mxu0 0.0
          %2432 = vmatprep.subr.mxu0 0.0
          %v2433 = vand.u32 %v165, 4294901760
          %v2434 = vsub.f32 %v165, %v2433
          %2435 = vmatpush1.msra.mxu0 %v2434
          %2436 = vmatprep.subr.mxu0 0.0
          %v2437 = vand.u32 %v164, 4294901760
          %v2438 = vsub.f32 %v164, %v2437
          %2439 = vmatpush1.msra.mxu0 %v2438
          %2440 = vmatprep.subr.mxu0 0.0
          %2441 = vmatpush2.msra.mxu0 0.0
          %2442 = vmatprep.subr.mxu0 0.0
          %2443 = vmatpush2.msra.mxu0 0.0
          %2444 = vmatprep.subr.mxu0 0.0
          %2445 = vmatpush2.msra.mxu0 0.0
          %2446 = vmatprep.subr.mxu0 0.0
          %2447 = vmatpush2.msra.mxu0 0.0
          %2448 = vmatprep.subr.mxu0 0.0
          %2449 = vmatpush2.msra.mxu0 0.0
          %2450 = vmatprep.subr.mxu0 0.0
          %2451 = vmatpush2.msra.mxu0 0.0
          %2452 = vmatprep.subr.mxu0 0.0
          %2453 = vmatpush2.msra.mxu0 0.0
          %2454 = vmatprep.subr.mxu0 0.0
          %2455 = vmatpush2.msra.mxu0 0.0
          %2456 = vmatprep.subr.mxu0 0.0
          %2457 = vmatpush2.msra.mxu0 0.0
          %2458 = vmatprep.subr.mxu0 0.0
          %2459 = vmatpush2.msra.mxu0 0.0
          %2460 = vmatprep.subr.mxu0 0.0
          %2461 = vmatpush2.msra.mxu0 0.0
          %2462 = vmatprep.subr.mxu0 0.0
          %2463 = vmatpush2.msra.mxu0 0.0
          %2464 = vmatprep.subr.mxu0 0.0
          %2465 = vmatpush2.msra.mxu0 0.0
          %2466 = vmatprep.subr.mxu0 0.0
          %2467 = vmatpush2.msra.mxu0 0.0
          %2468 = vmatprep.subr.mxu0 0.0
          %2469 = vmatpush2.msra.mxu0 0.0
          %2470 = vmatprep.subr.mxu0 0.0
          %2471 = vmatpush2.msra.mxu0 0.0
          %2472 = vmatprep.mubr.f32.mxu0 0.0
          %v2473 = vand.u32 %v2225, 4294901760
          %v2474 = vsub.f32 %v2225, %v2473
          %2475 = vmatmul.mubr.f32.gmra.mxu0 %v2474
          %v2476 = vpop.f32.mrf.mxu0
          %v2477 = vadd.f32 %v2395, %v2476
          %v2478 = vpop.f32.mrf.mxu0
          %2479 = vmatprep.mubr.f32.mxu0 0.0
          %v2480 = vand.u32 %v2228, 4294901760
          %v2481 = vsub.f32 %v2228, %v2480
          %2482 = vmatmul.mubr.f32.gmra.mxu0 %v2481
          %v2483 = vpop.f32.mrf.mxu0
          %v2484 = vadd.f32 %v2401, %v2483
          %v2485 = vpop.f32.mrf.mxu0
          %2486 = vdwg.mxu0
          %2487 = vmatprep.subr.mxu0 0.0
          %2488 = vmatpush1.msra.mxu0 0.0
          %2489 = vmatprep.subr.mxu0 0.0
          %2490 = vmatpush1.msra.mxu0 0.0
          %2491 = vmatprep.subr.mxu0 0.0
          %2492 = vmatpush1.msra.mxu0 0.0
          %2493 = vmatprep.subr.mxu0 0.0
          %2494 = vmatpush1.msra.mxu0 0.0
          %2495 = vmatprep.subr.mxu0 0.0
          %2496 = vmatpush1.msra.mxu0 0.0
          %2497 = vmatprep.subr.mxu0 0.0
          %2498 = vmatpush1.msra.mxu0 0.0
          %2499 = vmatprep.subr.mxu0 0.0
          %2500 = vmatpush1.msra.mxu0 0.0
          %2501 = vmatprep.subr.mxu0 0.0
          %2502 = vmatpush1.msra.mxu0 0.0
          %2503 = vmatprep.subr.mxu0 0.0
          %2504 = vmatpush1.msra.mxu0 0.0
          %2505 = vmatprep.subr.mxu0 0.0
          %2506 = vmatpush1.msra.mxu0 0.0
          %2507 = vmatprep.subr.mxu0 0.0
          %2508 = vmatpush1.msra.mxu0 0.0
          %2509 = vmatprep.subr.mxu0 0.0
          %2510 = vmatpush1.msra.mxu0 0.0
          %2511 = vmatprep.subr.mxu0 0.0
          %2512 = vmatpush1.msra.mxu0 0.0
          %2513 = vmatprep.subr.mxu0 0.0
          %2514 = vmatpush1.msra.mxu0 0.0
          %2515 = vmatprep.subr.mxu0 0.0
          %v2516 = vand.u32 %v165, 4294901760
          %2517 = vmatpush1.msra.mxu0 %v2516
          %2518 = vmatprep.subr.mxu0 0.0
          %v2519 = vand.u32 %v164, 4294901760
          %2520 = vmatpush1.msra.mxu0 %v2519
          %2521 = vmatprep.subr.mxu0 0.0
          %2522 = vmatpush2.msra.mxu0 0.0
          %2523 = vmatprep.subr.mxu0 0.0
          %2524 = vmatpush2.msra.mxu0 0.0
          %2525 = vmatprep.subr.mxu0 0.0
          %2526 = vmatpush2.msra.mxu0 0.0
          %2527 = vmatprep.subr.mxu0 0.0
          %2528 = vmatpush2.msra.mxu0 0.0
          %2529 = vmatprep.subr.mxu0 0.0
          %2530 = vmatpush2.msra.mxu0 0.0
          %2531 = vmatprep.subr.mxu0 0.0
          %2532 = vmatpush2.msra.mxu0 0.0
          %2533 = vmatprep.subr.mxu0 0.0
          %2534 = vmatpush2.msra.mxu0 0.0
          %2535 = vmatprep.subr.mxu0 0.0
          %2536 = vmatpush2.msra.mxu0 0.0
          %2537 = vmatprep.subr.mxu0 0.0
          %2538 = vmatpush2.msra.mxu0 0.0
          %2539 = vmatprep.subr.mxu0 0.0
          %2540 = vmatpush2.msra.mxu0 0.0
          %2541 = vmatprep.subr.mxu0 0.0
          %2542 = vmatpush2.msra.mxu0 0.0
          %2543 = vmatprep.subr.mxu0 0.0
          %2544 = vmatpush2.msra.mxu0 0.0
          %2545 = vmatprep.subr.mxu0 0.0
          %2546 = vmatpush2.msra.mxu0 0.0
          %2547 = vmatprep.subr.mxu0 0.0
          %2548 = vmatpush2.msra.mxu0 0.0
          %2549 = vmatprep.subr.mxu0 0.0
          %2550 = vmatpush2.msra.mxu0 0.0
          %2551 = vmatprep.subr.mxu0 0.0
          %2552 = vmatpush2.msra.mxu0 0.0
          %2553 = vmatprep.mubr.f32.mxu0 0.0
          %v2554 = vand.u32 %v2225, 4294901760
          %v2555 = vsub.f32 %v2225, %v2554
          %v2556 = vand.u32 %v2555, 4294901760
          %2557 = vmatmul.mubr.f32.gmra.mxu0 %v2556
          %v2558 = vpop.f32.mrf.mxu0
          %v2559 = vadd.f32 %v2477, %v2558
          %v2560 = vpop.f32.mrf.mxu0
          %2561 = vmatprep.mubr.f32.mxu0 0.0
          %v2562 = vand.u32 %v2228, 4294901760
          %v2563 = vsub.f32 %v2228, %v2562
          %v2564 = vand.u32 %v2563, 4294901760
          %2565 = vmatmul.mubr.f32.gmra.mxu0 %v2564
          %v2566 = vpop.f32.mrf.mxu0
          %v2567 = vadd.f32 %v2484, %v2566
          %v2568 = vpop.f32.mrf.mxu0
          %2569 = vdwg.mxu0
          %2570 = vmatprep.subr.mxu0 0.0
          %2571 = vmatpush1.msra.mxu0 0.0
          %2572 = vmatprep.subr.mxu0 0.0
          %2573 = vmatpush1.msra.mxu0 0.0
          %2574 = vmatprep.subr.mxu0 0.0
          %2575 = vmatpush1.msra.mxu0 0.0
          %2576 = vmatprep.subr.mxu0 0.0
          %2577 = vmatpush1.msra.mxu0 0.0
          %2578 = vmatprep.subr.mxu0 0.0
          %2579 = vmatpush1.msra.mxu0 0.0
          %2580 = vmatprep.subr.mxu0 0.0
          %2581 = vmatpush1.msra.mxu0 0.0
          %2582 = vmatprep.subr.mxu0 0.0
          %2583 = vmatpush1.msra.mxu0 0.0
          %2584 = vmatprep.subr.mxu0 0.0
          %2585 = vmatpush1.msra.mxu0 0.0
          %2586 = vmatprep.subr.mxu0 0.0
          %2587 = vmatpush1.msra.mxu0 0.0
          %2588 = vmatprep.subr.mxu0 0.0
          %2589 = vmatpush1.msra.mxu0 0.0
          %2590 = vmatprep.subr.mxu0 0.0
          %2591 = vmatpush1.msra.mxu0 0.0
          %2592 = vmatprep.subr.mxu0 0.0
          %2593 = vmatpush1.msra.mxu0 0.0
          %2594 = vmatprep.subr.mxu0 0.0
          %2595 = vmatpush1.msra.mxu0 0.0
          %2596 = vmatprep.subr.mxu0 0.0
          %2597 = vmatpush1.msra.mxu0 0.0
          %2598 = vmatprep.subr.mxu0 0.0
          %v2599 = vand.u32 %v165, 4294901760
          %v2600 = vsub.f32 %v165, %v2599
          %v2601 = vand.u32 %v2600, 4294901760
          %2602 = vmatpush1.msra.mxu0 %v2601
          %2603 = vmatprep.subr.mxu0 0.0
          %v2604 = vand.u32 %v164, 4294901760
          %v2605 = vsub.f32 %v164, %v2604
          %v2606 = vand.u32 %v2605, 4294901760
          %2607 = vmatpush1.msra.mxu0 %v2606
          %2608 = vmatprep.subr.mxu0 0.0
          %2609 = vmatpush2.msra.mxu0 0.0
          %2610 = vmatprep.subr.mxu0 0.0
          %2611 = vmatpush2.msra.mxu0 0.0
          %2612 = vmatprep.subr.mxu0 0.0
          %2613 = vmatpush2.msra.mxu0 0.0
          %2614 = vmatprep.subr.mxu0 0.0
          %2615 = vmatpush2.msra.mxu0 0.0
          %2616 = vmatprep.subr.mxu0 0.0
          %2617 = vmatpush2.msra.mxu0 0.0
          %2618 = vmatprep.subr.mxu0 0.0
          %2619 = vmatpush2.msra.mxu0 0.0
          %2620 = vmatprep.subr.mxu0 0.0
          %2621 = vmatpush2.msra.mxu0 0.0
          %2622 = vmatprep.subr.mxu0 0.0
          %2623 = vmatpush2.msra.mxu0 0.0
          %2624 = vmatprep.subr.mxu0 0.0
          %2625 = vmatpush2.msra.mxu0 0.0
          %2626 = vmatprep.subr.mxu0 0.0
          %2627 = vmatpush2.msra.mxu0 0.0
          %2628 = vmatprep.subr.mxu0 0.0
          %2629 = vmatpush2.msra.mxu0 0.0
          %2630 = vmatprep.subr.mxu0 0.0
          %2631 = vmatpush2.msra.mxu0 0.0
          %2632 = vmatprep.subr.mxu0 0.0
          %2633 = vmatpush2.msra.mxu0 0.0
          %2634 = vmatprep.subr.mxu0 0.0
          %2635 = vmatpush2.msra.mxu0 0.0
          %2636 = vmatprep.subr.mxu0 0.0
          %2637 = vmatpush2.msra.mxu0 0.0
          %2638 = vmatprep.subr.mxu0 0.0
          %2639 = vmatpush2.msra.mxu0 0.0
          %2640 = vmatprep.mubr.f32.mxu0 0.0
          %v2641 = vand.u32 %v2225, 4294901760
          %2642 = vmatmul.mubr.f32.gmra.mxu0 %v2641
          %v2643 = vpop.f32.mrf.mxu0
          %v2644 = vadd.f32 %v2559, %v2643
          %v2645 = vpop.f32.mrf.mxu0
          %2646 = vmatprep.mubr.f32.mxu0 0.0
          %v2647 = vand.u32 %v2228, 4294901760
          %2648 = vmatmul.mubr.f32.gmra.mxu0 %v2647
          %v2649 = vpop.f32.mrf.mxu0
          %v2650 = vadd.f32 %v2567, %v2649
          %v2651 = vpop.f32.mrf.mxu0
          %2652 = vdwg.mxu0
          %2653 = vmatprep.subr.mxu0 0.0
          %2654 = vmatpush1.msra.mxu0 0.0
          %2655 = vmatprep.subr.mxu0 0.0
          %2656 = vmatpush1.msra.mxu0 0.0
          %2657 = vmatprep.subr.mxu0 0.0
          %2658 = vmatpush1.msra.mxu0 0.0
          %2659 = vmatprep.subr.mxu0 0.0
          %2660 = vmatpush1.msra.mxu0 0.0
          %2661 = vmatprep.subr.mxu0 0.0
          %2662 = vmatpush1.msra.mxu0 0.0
          %2663 = vmatprep.subr.mxu0 0.0
          %2664 = vmatpush1.msra.mxu0 0.0
          %2665 = vmatprep.subr.mxu0 0.0
          %2666 = vmatpush1.msra.mxu0 0.0
          %2667 = vmatprep.subr.mxu0 0.0
          %2668 = vmatpush1.msra.mxu0 0.0
          %2669 = vmatprep.subr.mxu0 0.0
          %2670 = vmatpush1.msra.mxu0 0.0
          %2671 = vmatprep.subr.mxu0 0.0
          %2672 = vmatpush1.msra.mxu0 0.0
          %2673 = vmatprep.subr.mxu0 0.0
          %2674 = vmatpush1.msra.mxu0 0.0
          %2675 = vmatprep.subr.mxu0 0.0
          %2676 = vmatpush1.msra.mxu0 0.0
          %2677 = vmatprep.subr.mxu0 0.0
          %2678 = vmatpush1.msra.mxu0 0.0
          %2679 = vmatprep.subr.mxu0 0.0
          %2680 = vmatpush1.msra.mxu0 0.0
          %2681 = vmatprep.subr.mxu0 0.0
          %v2682 = vand.u32 %v165, 4294901760
          %2683 = vmatpush1.msra.mxu0 %v2682
          %2684 = vmatprep.subr.mxu0 0.0
          %v2685 = vand.u32 %v164, 4294901760
          %2686 = vmatpush1.msra.mxu0 %v2685
          %2687 = vmatprep.subr.mxu0 0.0
          %2688 = vmatpush2.msra.mxu0 0.0
          %2689 = vmatprep.subr.mxu0 0.0
          %2690 = vmatpush2.msra.mxu0 0.0
          %2691 = vmatprep.subr.mxu0 0.0
          %2692 = vmatpush2.msra.mxu0 0.0
          %2693 = vmatprep.subr.mxu0 0.0
          %2694 = vmatpush2.msra.mxu0 0.0
          %2695 = vmatprep.subr.mxu0 0.0
          %2696 = vmatpush2.msra.mxu0 0.0
          %2697 = vmatprep.subr.mxu0 0.0
          %2698 = vmatpush2.msra.mxu0 0.0
          %2699 = vmatprep.subr.mxu0 0.0
          %2700 = vmatpush2.msra.mxu0 0.0
          %2701 = vmatprep.subr.mxu0 0.0
          %2702 = vmatpush2.msra.mxu0 0.0
          %2703 = vmatprep.subr.mxu0 0.0
          %2704 = vmatpush2.msra.mxu0 0.0
          %2705 = vmatprep.subr.mxu0 0.0
          %2706 = vmatpush2.msra.mxu0 0.0
          %2707 = vmatprep.subr.mxu0 0.0
          %2708 = vmatpush2.msra.mxu0 0.0
          %2709 = vmatprep.subr.mxu0 0.0
          %2710 = vmatpush2.msra.mxu0 0.0
          %2711 = vmatprep.subr.mxu0 0.0
          %2712 = vmatpush2.msra.mxu0 0.0
          %2713 = vmatprep.subr.mxu0 0.0
          %2714 = vmatpush2.msra.mxu0 0.0
          %2715 = vmatprep.subr.mxu0 0.0
          %2716 = vmatpush2.msra.mxu0 0.0
          %2717 = vmatprep.subr.mxu0 0.0
          %2718 = vmatpush2.msra.mxu0 0.0
          %2719 = vmatprep.mubr.f32.mxu0 0.0
          %v2720 = vand.u32 %v2225, 4294901760
          %2721 = vmatmul.mubr.f32.gmra.mxu0 %v2720
          %v2722 = vpop.f32.mrf.mxu0
          %v2723 = vadd.f32 %v2644, %v2722
          %v2724 = vpop.f32.mrf.mxu0
          %2725 = vmatprep.mubr.f32.mxu0 0.0
          %v2726 = vand.u32 %v2228, 4294901760
          %2727 = vmatmul.mubr.f32.gmra.mxu0 %v2726
          %v2728 = vpop.f32.mrf.mxu0
          %v2729 = vadd.f32 %v2650, %v2728
          %v2730 = vpop.f32.mrf.mxu0
          %2731 = vdwg.mxu0
          %2732 = vmatprep.subr.mxu0 0.0
          %2733 = vmatpush1.msra.mxu0 0.0
          %2734 = vmatprep.subr.mxu0 0.0
          %2735 = vmatpush1.msra.mxu0 0.0
          %2736 = vmatprep.subr.mxu0 0.0
          %2737 = vmatpush1.msra.mxu0 0.0
          %2738 = vmatprep.subr.mxu0 0.0
          %2739 = vmatpush1.msra.mxu0 0.0
          %2740 = vmatprep.subr.mxu0 0.0
          %2741 = vmatpush1.msra.mxu0 0.0
          %2742 = vmatprep.subr.mxu0 0.0
          %2743 = vmatpush1.msra.mxu0 0.0
          %2744 = vmatprep.subr.mxu0 0.0
          %2745 = vmatpush1.msra.mxu0 0.0
          %2746 = vmatprep.subr.mxu0 0.0
          %2747 = vmatpush1.msra.mxu0 0.0
          %2748 = vmatprep.subr.mxu0 0.0
          %2749 = vmatpush1.msra.mxu0 0.0
          %2750 = vmatprep.subr.mxu0 0.0
          %2751 = vmatpush1.msra.mxu0 0.0
          %2752 = vmatprep.subr.mxu0 0.0
          %2753 = vmatpush1.msra.mxu0 0.0
          %2754 = vmatprep.subr.mxu0 0.0
          %2755 = vmatpush1.msra.mxu0 0.0
          %2756 = vmatprep.subr.mxu0 0.0
          %2757 = vmatpush1.msra.mxu0 0.0
          %2758 = vmatprep.subr.mxu0 0.0
          %2759 = vmatpush1.msra.mxu0 0.0
          %2760 = vmatprep.subr.mxu0 0.0
          %v2761 = vand.u32 %v2729, 4294901760
          %2762 = vmatpush1.msra.mxu0 %v2761
          %2763 = vmatprep.subr.mxu0 0.0
          %v2764 = vand.u32 %v2723, 4294901760
          %2765 = vmatpush1.msra.mxu0 %v2764
          %2766 = vmatprep.subr.mxu0 0.0
          %2767 = vmatpush2.msra.mxu0 0.0
          %2768 = vmatprep.subr.mxu0 0.0
          %2769 = vmatpush2.msra.mxu0 0.0
          %2770 = vmatprep.subr.mxu0 0.0
          %2771 = vmatpush2.msra.mxu0 0.0
          %2772 = vmatprep.subr.mxu0 0.0
          %2773 = vmatpush2.msra.mxu0 0.0
          %2774 = vmatprep.subr.mxu0 0.0
          %2775 = vmatpush2.msra.mxu0 0.0
          %2776 = vmatprep.subr.mxu0 0.0
          %2777 = vmatpush2.msra.mxu0 0.0
          %2778 = vmatprep.subr.mxu0 0.0
          %2779 = vmatpush2.msra.mxu0 0.0
          %2780 = vmatprep.subr.mxu0 0.0
          %2781 = vmatpush2.msra.mxu0 0.0
          %2782 = vmatprep.subr.mxu0 0.0
          %2783 = vmatpush2.msra.mxu0 0.0
          %2784 = vmatprep.subr.mxu0 0.0
          %2785 = vmatpush2.msra.mxu0 0.0
          %2786 = vmatprep.subr.mxu0 0.0
          %2787 = vmatpush2.msra.mxu0 0.0
          %2788 = vmatprep.subr.mxu0 0.0
          %2789 = vmatpush2.msra.mxu0 0.0
          %2790 = vmatprep.subr.mxu0 0.0
          %2791 = vmatpush2.msra.mxu0 0.0
          %2792 = vmatprep.subr.mxu0 0.0
          %2793 = vmatpush2.msra.mxu0 0.0
          %2794 = vmatprep.subr.mxu0 0.0
          %2795 = vmatpush2.msra.mxu0 0.0
          %2796 = vmatprep.subr.mxu0 0.0
          %2797 = vmatpush2.msra.mxu0 0.0
          %2798 = vmatprep.mubr.f32.mxu0 0.0
          %v2799 = vand.u32 %v696, 4294901760
          %v2800 = vsub.f32 %v696, %v2799
          %v2801 = vand.u32 %v2800, 4294901760
          %v2802 = vsub.f32 %v2800, %v2801
          %v2803 = vand.u32 %v2802, 4294901760
          %2804 = vmatmul.mubr.f32.gmra.mxu0 %v2803
          %v2805 = vpop.f32.mrf.mxu0
          %v2806 = vadd.f32 0.0, %v2805
          %v2807 = vpop.f32.mrf.mxu0
          %2808 = vmatprep.mubr.f32.mxu0 0.0
          %v2809 = vand.u32 %v699, 4294901760
          %v2810 = vsub.f32 %v699, %v2809
          %v2811 = vand.u32 %v2810, 4294901760
          %v2812 = vsub.f32 %v2810, %v2811
          %v2813 = vand.u32 %v2812, 4294901760
          %2814 = vmatmul.mubr.f32.gmra.mxu0 %v2813
          %v2815 = vpop.f32.mrf.mxu0
          %v2816 = vadd.f32 0.0, %v2815
          %v2817 = vpop.f32.mrf.mxu0
          %2818 = vdwg.mxu0
          %2819 = vmatprep.subr.mxu0 0.0
          %2820 = vmatpush1.msra.mxu0 0.0
          %2821 = vmatprep.subr.mxu0 0.0
          %2822 = vmatpush1.msra.mxu0 0.0
          %2823 = vmatprep.subr.mxu0 0.0
          %2824 = vmatpush1.msra.mxu0 0.0
          %2825 = vmatprep.subr.mxu0 0.0
          %2826 = vmatpush1.msra.mxu0 0.0
          %2827 = vmatprep.subr.mxu0 0.0
          %2828 = vmatpush1.msra.mxu0 0.0
          %2829 = vmatprep.subr.mxu0 0.0
          %2830 = vmatpush1.msra.mxu0 0.0
          %2831 = vmatprep.subr.mxu0 0.0
          %2832 = vmatpush1.msra.mxu0 0.0
          %2833 = vmatprep.subr.mxu0 0.0
          %2834 = vmatpush1.msra.mxu0 0.0
          %2835 = vmatprep.subr.mxu0 0.0
          %2836 = vmatpush1.msra.mxu0 0.0
          %2837 = vmatprep.subr.mxu0 0.0
          %2838 = vmatpush1.msra.mxu0 0.0
          %2839 = vmatprep.subr.mxu0 0.0
          %2840 = vmatpush1.msra.mxu0 0.0
          %2841 = vmatprep.subr.mxu0 0.0
          %2842 = vmatpush1.msra.mxu0 0.0
          %2843 = vmatprep.subr.mxu0 0.0
          %2844 = vmatpush1.msra.mxu0 0.0
          %2845 = vmatprep.subr.mxu0 0.0
          %2846 = vmatpush1.msra.mxu0 0.0
          %2847 = vmatprep.subr.mxu0 0.0
          %v2848 = vand.u32 %v2729, 4294901760
          %v2849 = vsub.f32 %v2729, %v2848
          %v2850 = vand.u32 %v2849, 4294901760
          %v2851 = vsub.f32 %v2849, %v2850
          %v2852 = vand.u32 %v2851, 4294901760
          %2853 = vmatpush1.msra.mxu0 %v2852
          %2854 = vmatprep.subr.mxu0 0.0
          %v2855 = vand.u32 %v2723, 4294901760
          %v2856 = vsub.f32 %v2723, %v2855
          %v2857 = vand.u32 %v2856, 4294901760
          %v2858 = vsub.f32 %v2856, %v2857
          %v2859 = vand.u32 %v2858, 4294901760
          %2860 = vmatpush1.msra.mxu0 %v2859
          %2861 = vmatprep.subr.mxu0 0.0
          %2862 = vmatpush2.msra.mxu0 0.0
          %2863 = vmatprep.subr.mxu0 0.0
          %2864 = vmatpush2.msra.mxu0 0.0
          %2865 = vmatprep.subr.mxu0 0.0
          %2866 = vmatpush2.msra.mxu0 0.0
          %2867 = vmatprep.subr.mxu0 0.0
          %2868 = vmatpush2.msra.mxu0 0.0
          %2869 = vmatprep.subr.mxu0 0.0
          %2870 = vmatpush2.msra.mxu0 0.0
          %2871 = vmatprep.subr.mxu0 0.0
          %2872 = vmatpush2.msra.mxu0 0.0
          %2873 = vmatprep.subr.mxu0 0.0
          %2874 = vmatpush2.msra.mxu0 0.0
          %2875 = vmatprep.subr.mxu0 0.0
          %2876 = vmatpush2.msra.mxu0 0.0
          %2877 = vmatprep.subr.mxu0 0.0
          %2878 = vmatpush2.msra.mxu0 0.0
          %2879 = vmatprep.subr.mxu0 0.0
          %2880 = vmatpush2.msra.mxu0 0.0
          %2881 = vmatprep.subr.mxu0 0.0
          %2882 = vmatpush2.msra.mxu0 0.0
          %2883 = vmatprep.subr.mxu0 0.0
          %2884 = vmatpush2.msra.mxu0 0.0
          %2885 = vmatprep.subr.mxu0 0.0
          %2886 = vmatpush2.msra.mxu0 0.0
          %2887 = vmatprep.subr.mxu0 0.0
          %2888 = vmatpush2.msra.mxu0 0.0
          %2889 = vmatprep.subr.mxu0 0.0
          %2890 = vmatpush2.msra.mxu0 0.0
          %2891 = vmatprep.subr.mxu0 0.0
          %2892 = vmatpush2.msra.mxu0 0.0
          %2893 = vmatprep.mubr.f32.mxu0 0.0
          %v2894 = vand.u32 %v696, 4294901760
          %2895 = vmatmul.mubr.f32.gmra.mxu0 %v2894
          %v2896 = vpop.f32.mrf.mxu0
          %v2897 = vadd.f32 %v2806, %v2896
          %v2898 = vpop.f32.mrf.mxu0
          %2899 = vmatprep.mubr.f32.mxu0 0.0
          %v2900 = vand.u32 %v699, 4294901760
          %2901 = vmatmul.mubr.f32.gmra.mxu0 %v2900
          %v2902 = vpop.f32.mrf.mxu0
          %v2903 = vadd.f32 %v2816, %v2902
          %v2904 = vpop.f32.mrf.mxu0
          %2905 = vdwg.mxu0
          %2906 = vmatprep.subr.mxu0 0.0
          %2907 = vmatpush1.msra.mxu0 0.0
          %2908 = vmatprep.subr.mxu0 0.0
          %2909 = vmatpush1.msra.mxu0 0.0
          %2910 = vmatprep.subr.mxu0 0.0
          %2911 = vmatpush1.msra.mxu0 0.0
          %2912 = vmatprep.subr.mxu0 0.0
          %2913 = vmatpush1.msra.mxu0 0.0
          %2914 = vmatprep.subr.mxu0 0.0
          %2915 = vmatpush1.msra.mxu0 0.0
          %2916 = vmatprep.subr.mxu0 0.0
          %2917 = vmatpush1.msra.mxu0 0.0
          %2918 = vmatprep.subr.mxu0 0.0
          %2919 = vmatpush1.msra.mxu0 0.0
          %2920 = vmatprep.subr.mxu0 0.0
          %2921 = vmatpush1.msra.mxu0 0.0
          %2922 = vmatprep.subr.mxu0 0.0
          %2923 = vmatpush1.msra.mxu0 0.0
          %2924 = vmatprep.subr.mxu0 0.0
          %2925 = vmatpush1.msra.mxu0 0.0
          %2926 = vmatprep.subr.mxu0 0.0
          %2927 = vmatpush1.msra.mxu0 0.0
          %2928 = vmatprep.subr.mxu0 0.0
          %2929 = vmatpush1.msra.mxu0 0.0
          %2930 = vmatprep.subr.mxu0 0.0
          %2931 = vmatpush1.msra.mxu0 0.0
          %2932 = vmatprep.subr.mxu0 0.0
          %2933 = vmatpush1.msra.mxu0 0.0
          %2934 = vmatprep.subr.mxu0 0.0
          %v2935 = vand.u32 %v2729, 4294901760
          %v2936 = vsub.f32 %v2729, %v2935
          %2937 = vmatpush1.msra.mxu0 %v2936
          %2938 = vmatprep.subr.mxu0 0.0
          %v2939 = vand.u32 %v2723, 4294901760
          %v2940 = vsub.f32 %v2723, %v2939
          %2941 = vmatpush1.msra.mxu0 %v2940
          %2942 = vmatprep.subr.mxu0 0.0
          %2943 = vmatpush2.msra.mxu0 0.0
          %2944 = vmatprep.subr.mxu0 0.0
          %2945 = vmatpush2.msra.mxu0 0.0
          %2946 = vmatprep.subr.mxu0 0.0
          %2947 = vmatpush2.msra.mxu0 0.0
          %2948 = vmatprep.subr.mxu0 0.0
          %2949 = vmatpush2.msra.mxu0 0.0
          %2950 = vmatprep.subr.mxu0 0.0
          %2951 = vmatpush2.msra.mxu0 0.0
          %2952 = vmatprep.subr.mxu0 0.0
          %2953 = vmatpush2.msra.mxu0 0.0
          %2954 = vmatprep.subr.mxu0 0.0
          %2955 = vmatpush2.msra.mxu0 0.0
          %2956 = vmatprep.subr.mxu0 0.0
          %2957 = vmatpush2.msra.mxu0 0.0
          %2958 = vmatprep.subr.mxu0 0.0
          %2959 = vmatpush2.msra.mxu0 0.0
          %2960 = vmatprep.subr.mxu0 0.0
          %2961 = vmatpush2.msra.mxu0 0.0
          %2962 = vmatprep.subr.mxu0 0.0
          %2963 = vmatpush2.msra.mxu0 0.0
          %2964 = vmatprep.subr.mxu0 0.0
          %2965 = vmatpush2.msra.mxu0 0.0
          %2966 = vmatprep.subr.mxu0 0.0
          %2967 = vmatpush2.msra.mxu0 0.0
          %2968 = vmatprep.subr.mxu0 0.0
          %2969 = vmatpush2.msra.mxu0 0.0
          %2970 = vmatprep.subr.mxu0 0.0
          %2971 = vmatpush2.msra.mxu0 0.0
          %2972 = vmatprep.subr.mxu0 0.0
          %2973 = vmatpush2.msra.mxu0 0.0
          %2974 = vmatprep.mubr.f32.mxu0 0.0
          %v2975 = vand.u32 %v696, 4294901760
          %v2976 = vsub.f32 %v696, %v2975
          %2977 = vmatmul.mubr.f32.gmra.mxu0 %v2976
          %v2978 = vpop.f32.mrf.mxu0
          %v2979 = vadd.f32 %v2897, %v2978
          %v2980 = vpop.f32.mrf.mxu0
          %2981 = vmatprep.mubr.f32.mxu0 0.0
          %v2982 = vand.u32 %v699, 4294901760
          %v2983 = vsub.f32 %v699, %v2982
          %2984 = vmatmul.mubr.f32.gmra.mxu0 %v2983
          %v2985 = vpop.f32.mrf.mxu0
          %v2986 = vadd.f32 %v2903, %v2985
          %v2987 = vpop.f32.mrf.mxu0
          %2988 = vdwg.mxu0
          %2989 = vmatprep.subr.mxu0 0.0
          %2990 = vmatpush1.msra.mxu0 0.0
          %2991 = vmatprep.subr.mxu0 0.0
          %2992 = vmatpush1.msra.mxu0 0.0
          %2993 = vmatprep.subr.mxu0 0.0
          %2994 = vmatpush1.msra.mxu0 0.0
          %2995 = vmatprep.subr.mxu0 0.0
          %2996 = vmatpush1.msra.mxu0 0.0
          %2997 = vmatprep.subr.mxu0 0.0
          %2998 = vmatpush1.msra.mxu0 0.0
          %2999 = vmatprep.subr.mxu0 0.0
          %3000 = vmatpush1.msra.mxu0 0.0
          %3001 = vmatprep.subr.mxu0 0.0
          %3002 = vmatpush1.msra.mxu0 0.0
          %3003 = vmatprep.subr.mxu0 0.0
          %3004 = vmatpush1.msra.mxu0 0.0
          %3005 = vmatprep.subr.mxu0 0.0
          %3006 = vmatpush1.msra.mxu0 0.0
          %3007 = vmatprep.subr.mxu0 0.0
          %3008 = vmatpush1.msra.mxu0 0.0
          %3009 = vmatprep.subr.mxu0 0.0
          %3010 = vmatpush1.msra.mxu0 0.0
          %3011 = vmatprep.subr.mxu0 0.0
          %3012 = vmatpush1.msra.mxu0 0.0
          %3013 = vmatprep.subr.mxu0 0.0
          %3014 = vmatpush1.msra.mxu0 0.0
          %3015 = vmatprep.subr.mxu0 0.0
          %3016 = vmatpush1.msra.mxu0 0.0
          %3017 = vmatprep.subr.mxu0 0.0
          %v3018 = vand.u32 %v2729, 4294901760
          %3019 = vmatpush1.msra.mxu0 %v3018
          %3020 = vmatprep.subr.mxu0 0.0
          %v3021 = vand.u32 %v2723, 4294901760
          %3022 = vmatpush1.msra.mxu0 %v3021
          %3023 = vmatprep.subr.mxu0 0.0
          %3024 = vmatpush2.msra.mxu0 0.0
          %3025 = vmatprep.subr.mxu0 0.0
          %3026 = vmatpush2.msra.mxu0 0.0
          %3027 = vmatprep.subr.mxu0 0.0
          %3028 = vmatpush2.msra.mxu0 0.0
          %3029 = vmatprep.subr.mxu0 0.0
          %3030 = vmatpush2.msra.mxu0 0.0
          %3031 = vmatprep.subr.mxu0 0.0
          %3032 = vmatpush2.msra.mxu0 0.0
          %3033 = vmatprep.subr.mxu0 0.0
          %3034 = vmatpush2.msra.mxu0 0.0
          %3035 = vmatprep.subr.mxu0 0.0
          %3036 = vmatpush2.msra.mxu0 0.0
          %3037 = vmatprep.subr.mxu0 0.0
          %3038 = vmatpush2.msra.mxu0 0.0
          %3039 = vmatprep.subr.mxu0 0.0
          %3040 = vmatpush2.msra.mxu0 0.0
          %3041 = vmatprep.subr.mxu0 0.0
          %3042 = vmatpush2.msra.mxu0 0.0
          %3043 = vmatprep.subr.mxu0 0.0
          %3044 = vmatpush2.msra.mxu0 0.0
          %3045 = vmatprep.subr.mxu0 0.0
          %3046 = vmatpush2.msra.mxu0 0.0
          %3047 = vmatprep.subr.mxu0 0.0
          %3048 = vmatpush2.msra.mxu0 0.0
          %3049 = vmatprep.subr.mxu0 0.0
          %3050 = vmatpush2.msra.mxu0 0.0
          %3051 = vmatprep.subr.mxu0 0.0
          %3052 = vmatpush2.msra.mxu0 0.0
          %3053 = vmatprep.subr.mxu0 0.0
          %3054 = vmatpush2.msra.mxu0 0.0
          %3055 = vmatprep.mubr.f32.mxu0 0.0
          %v3056 = vand.u32 %v696, 4294901760
          %v3057 = vsub.f32 %v696, %v3056
          %v3058 = vand.u32 %v3057, 4294901760
          %3059 = vmatmul.mubr.f32.gmra.mxu0 %v3058
          %v3060 = vpop.f32.mrf.mxu0
          %v3061 = vadd.f32 %v2979, %v3060
          %v3062 = vpop.f32.mrf.mxu0
          %3063 = vmatprep.mubr.f32.mxu0 0.0
          %v3064 = vand.u32 %v699, 4294901760
          %v3065 = vsub.f32 %v699, %v3064
          %v3066 = vand.u32 %v3065, 4294901760
          %3067 = vmatmul.mubr.f32.gmra.mxu0 %v3066
          %v3068 = vpop.f32.mrf.mxu0
          %v3069 = vadd.f32 %v2986, %v3068
          %v3070 = vpop.f32.mrf.mxu0
          %3071 = vdwg.mxu0
          %3072 = vmatprep.subr.mxu0 0.0
          %3073 = vmatpush1.msra.mxu0 0.0
          %3074 = vmatprep.subr.mxu0 0.0
          %3075 = vmatpush1.msra.mxu0 0.0
          %3076 = vmatprep.subr.mxu0 0.0
          %3077 = vmatpush1.msra.mxu0 0.0
          %3078 = vmatprep.subr.mxu0 0.0
          %3079 = vmatpush1.msra.mxu0 0.0
          %3080 = vmatprep.subr.mxu0 0.0
          %3081 = vmatpush1.msra.mxu0 0.0
          %3082 = vmatprep.subr.mxu0 0.0
          %3083 = vmatpush1.msra.mxu0 0.0
          %3084 = vmatprep.subr.mxu0 0.0
          %3085 = vmatpush1.msra.mxu0 0.0
          %3086 = vmatprep.subr.mxu0 0.0
          %3087 = vmatpush1.msra.mxu0 0.0
          %3088 = vmatprep.subr.mxu0 0.0
          %3089 = vmatpush1.msra.mxu0 0.0
          %3090 = vmatprep.subr.mxu0 0.0
          %3091 = vmatpush1.msra.mxu0 0.0
          %3092 = vmatprep.subr.mxu0 0.0
          %3093 = vmatpush1.msra.mxu0 0.0
          %3094 = vmatprep.subr.mxu0 0.0
          %3095 = vmatpush1.msra.mxu0 0.0
          %3096 = vmatprep.subr.mxu0 0.0
          %3097 = vmatpush1.msra.mxu0 0.0
          %3098 = vmatprep.subr.mxu0 0.0
          %3099 = vmatpush1.msra.mxu0 0.0
          %3100 = vmatprep.subr.mxu0 0.0
          %v3101 = vand.u32 %v2729, 4294901760
          %v3102 = vsub.f32 %v2729, %v3101
          %v3103 = vand.u32 %v3102, 4294901760
          %3104 = vmatpush1.msra.mxu0 %v3103
          %3105 = vmatprep.subr.mxu0 0.0
          %v3106 = vand.u32 %v2723, 4294901760
          %v3107 = vsub.f32 %v2723, %v3106
          %v3108 = vand.u32 %v3107, 4294901760
          %3109 = vmatpush1.msra.mxu0 %v3108
          %3110 = vmatprep.subr.mxu0 0.0
          %3111 = vmatpush2.msra.mxu0 0.0
          %3112 = vmatprep.subr.mxu0 0.0
          %3113 = vmatpush2.msra.mxu0 0.0
          %3114 = vmatprep.subr.mxu0 0.0
          %3115 = vmatpush2.msra.mxu0 0.0
          %3116 = vmatprep.subr.mxu0 0.0
          %3117 = vmatpush2.msra.mxu0 0.0
          %3118 = vmatprep.subr.mxu0 0.0
          %3119 = vmatpush2.msra.mxu0 0.0
          %3120 = vmatprep.subr.mxu0 0.0
          %3121 = vmatpush2.msra.mxu0 0.0
          %3122 = vmatprep.subr.mxu0 0.0
          %3123 = vmatpush2.msra.mxu0 0.0
          %3124 = vmatprep.subr.mxu0 0.0
          %3125 = vmatpush2.msra.mxu0 0.0
          %3126 = vmatprep.subr.mxu0 0.0
          %3127 = vmatpush2.msra.mxu0 0.0
          %3128 = vmatprep.subr.mxu0 0.0
          %3129 = vmatpush2.msra.mxu0 0.0
          %3130 = vmatprep.subr.mxu0 0.0
          %3131 = vmatpush2.msra.mxu0 0.0
          %3132 = vmatprep.subr.mxu0 0.0
          %3133 = vmatpush2.msra.mxu0 0.0
          %3134 = vmatprep.subr.mxu0 0.0
          %3135 = vmatpush2.msra.mxu0 0.0
          %3136 = vmatprep.subr.mxu0 0.0
          %3137 = vmatpush2.msra.mxu0 0.0
          %3138 = vmatprep.subr.mxu0 0.0
          %3139 = vmatpush2.msra.mxu0 0.0
          %3140 = vmatprep.subr.mxu0 0.0
          %3141 = vmatpush2.msra.mxu0 0.0
          %3142 = vmatprep.mubr.f32.mxu0 0.0
          %v3143 = vand.u32 %v696, 4294901760
          %3144 = vmatmul.mubr.f32.gmra.mxu0 %v3143
          %v3145 = vpop.f32.mrf.mxu0
          %v3146 = vadd.f32 %v3061, %v3145
          %v3147 = vpop.f32.mrf.mxu0
          %3148 = vmatprep.mubr.f32.mxu0 0.0
          %v3149 = vand.u32 %v699, 4294901760
          %3150 = vmatmul.mubr.f32.gmra.mxu0 %v3149
          %v3151 = vpop.f32.mrf.mxu0
          %v3152 = vadd.f32 %v3069, %v3151
          %v3153 = vpop.f32.mrf.mxu0
          %3154 = vdwg.mxu0
          %3155 = vmatprep.subr.mxu0 0.0
          %3156 = vmatpush1.msra.mxu0 0.0
          %3157 = vmatprep.subr.mxu0 0.0
          %3158 = vmatpush1.msra.mxu0 0.0
          %3159 = vmatprep.subr.mxu0 0.0
          %3160 = vmatpush1.msra.mxu0 0.0
          %3161 = vmatprep.subr.mxu0 0.0
          %3162 = vmatpush1.msra.mxu0 0.0
          %3163 = vmatprep.subr.mxu0 0.0
          %3164 = vmatpush1.msra.mxu0 0.0
          %3165 = vmatprep.subr.mxu0 0.0
          %3166 = vmatpush1.msra.mxu0 0.0
          %3167 = vmatprep.subr.mxu0 0.0
          %3168 = vmatpush1.msra.mxu0 0.0
          %3169 = vmatprep.subr.mxu0 0.0
          %3170 = vmatpush1.msra.mxu0 0.0
          %3171 = vmatprep.subr.mxu0 0.0
          %3172 = vmatpush1.msra.mxu0 0.0
          %3173 = vmatprep.subr.mxu0 0.0
          %3174 = vmatpush1.msra.mxu0 0.0
          %3175 = vmatprep.subr.mxu0 0.0
          %3176 = vmatpush1.msra.mxu0 0.0
          %3177 = vmatprep.subr.mxu0 0.0
          %3178 = vmatpush1.msra.mxu0 0.0
          %3179 = vmatprep.subr.mxu0 0.0
          %3180 = vmatpush1.msra.mxu0 0.0
          %3181 = vmatprep.subr.mxu0 0.0
          %3182 = vmatpush1.msra.mxu0 0.0
          %3183 = vmatprep.subr.mxu0 0.0
          %v3184 = vand.u32 %v2729, 4294901760
          %3185 = vmatpush1.msra.mxu0 %v3184
          %3186 = vmatprep.subr.mxu0 0.0
          %v3187 = vand.u32 %v2723, 4294901760
          %3188 = vmatpush1.msra.mxu0 %v3187
          %3189 = vmatprep.subr.mxu0 0.0
          %3190 = vmatpush2.msra.mxu0 0.0
          %3191 = vmatprep.subr.mxu0 0.0
          %3192 = vmatpush2.msra.mxu0 0.0
          %3193 = vmatprep.subr.mxu0 0.0
          %3194 = vmatpush2.msra.mxu0 0.0
          %3195 = vmatprep.subr.mxu0 0.0
          %3196 = vmatpush2.msra.mxu0 0.0
          %3197 = vmatprep.subr.mxu0 0.0
          %3198 = vmatpush2.msra.mxu0 0.0
          %3199 = vmatprep.subr.mxu0 0.0
          %3200 = vmatpush2.msra.mxu0 0.0
          %3201 = vmatprep.subr.mxu0 0.0
          %3202 = vmatpush2.msra.mxu0 0.0
          %3203 = vmatprep.subr.mxu0 0.0
          %3204 = vmatpush2.msra.mxu0 0.0
          %3205 = vmatprep.subr.mxu0 0.0
          %3206 = vmatpush2.msra.mxu0 0.0
          %3207 = vmatprep.subr.mxu0 0.0
          %3208 = vmatpush2.msra.mxu0 0.0
          %3209 = vmatprep.subr.mxu0 0.0
          %3210 = vmatpush2.msra.mxu0 0.0
          %3211 = vmatprep.subr.mxu0 0.0
          %3212 = vmatpush2.msra.mxu0 0.0
          %3213 = vmatprep.subr.mxu0 0.0
          %3214 = vmatpush2.msra.mxu0 0.0
          %3215 = vmatprep.subr.mxu0 0.0
          %3216 = vmatpush2.msra.mxu0 0.0
          %3217 = vmatprep.subr.mxu0 0.0
          %3218 = vmatpush2.msra.mxu0 0.0
          %3219 = vmatprep.subr.mxu0 0.0
          %3220 = vmatpush2.msra.mxu0 0.0
          %3221 = vmatprep.mubr.f32.mxu0 0.0
          %v3222 = vand.u32 %v696, 4294901760
          %3223 = vmatmul.mubr.f32.gmra.mxu0 %v3222
          %v3224 = vpop.f32.mrf.mxu0
          %v3225 = vadd.f32 %v3146, %v3224
          %v3226 = vpop.f32.mrf.mxu0
          %3227 = vmatprep.mubr.f32.mxu0 0.0
          %v3228 = vand.u32 %v699, 4294901760
          %3229 = vmatmul.mubr.f32.gmra.mxu0 %v3228
          %v3230 = vpop.f32.mrf.mxu0
          %v3231 = vadd.f32 %v3152, %v3230
          %v3232 = vpop.f32.mrf.mxu0
          %3233 = vdwg.mxu0
          %s3234 = scalar_lea.vmem %s139, 32 [#allocation7]
          %3235 = vst.msk [vmem:[%s3234] sm:$0xff] %vm186, %v3225
          %3236 = vst.msk [vmem:[%s3234 + $0x8] sm:$0xff] %vm186, %v3231
          %s3237 = scalar_lea.vmem %s121, 48 [#allocation4]
          %v3238 = vld [vmem:[%s3237] sm:$0xff]
          %v3239 = vld [vmem:[%s3237 + $0x8] sm:$0xff]
          %v3241 = vsel %vm186, %v3238, 0
          %v3244 = vsel %vm186, %v3239, 0
          %3246 = vmatprep.subr.mxu0 0.0
          %3247 = vmatpush1.msra.mxu0 0.0
          %3248 = vmatprep.subr.mxu0 0.0
          %3249 = vmatpush1.msra.mxu0 0.0
          %3250 = vmatprep.subr.mxu0 0.0
          %3251 = vmatpush1.msra.mxu0 0.0
          %3252 = vmatprep.subr.mxu0 0.0
          %3253 = vmatpush1.msra.mxu0 0.0
          %3254 = vmatprep.subr.mxu0 0.0
          %3255 = vmatpush1.msra.mxu0 0.0
          %3256 = vmatprep.subr.mxu0 0.0
          %3257 = vmatpush1.msra.mxu0 0.0
          %3258 = vmatprep.subr.mxu0 0.0
          %3259 = vmatpush1.msra.mxu0 0.0
          %3260 = vmatprep.subr.mxu0 0.0
          %3261 = vmatpush1.msra.mxu0 0.0
          %3262 = vmatprep.subr.mxu0 0.0
          %3263 = vmatpush1.msra.mxu0 0.0
          %3264 = vmatprep.subr.mxu0 0.0
          %3265 = vmatpush1.msra.mxu0 0.0
          %3266 = vmatprep.subr.mxu0 0.0
          %3267 = vmatpush1.msra.mxu0 0.0
          %3268 = vmatprep.subr.mxu0 0.0
          %3269 = vmatpush1.msra.mxu0 0.0
          %3270 = vmatprep.subr.mxu0 0.0
          %3271 = vmatpush1.msra.mxu0 0.0
          %3272 = vmatprep.subr.mxu0 0.0
          %3273 = vmatpush1.msra.mxu0 0.0
          %3274 = vmatprep.subr.mxu0 0.0
          %v3275 = vand.u32 %v165, 4294901760
          %3276 = vmatpush1.msra.mxu0 %v3275
          %3277 = vmatprep.subr.mxu0 0.0
          %v3278 = vand.u32 %v164, 4294901760
          %3279 = vmatpush1.msra.mxu0 %v3278
          %3280 = vmatprep.subr.mxu0 0.0
          %3281 = vmatpush2.msra.mxu0 0.0
          %3282 = vmatprep.subr.mxu0 0.0
          %3283 = vmatpush2.msra.mxu0 0.0
          %3284 = vmatprep.subr.mxu0 0.0
          %3285 = vmatpush2.msra.mxu0 0.0
          %3286 = vmatprep.subr.mxu0 0.0
          %3287 = vmatpush2.msra.mxu0 0.0
          %3288 = vmatprep.subr.mxu0 0.0
          %3289 = vmatpush2.msra.mxu0 0.0
          %3290 = vmatprep.subr.mxu0 0.0
          %3291 = vmatpush2.msra.mxu0 0.0
          %3292 = vmatprep.subr.mxu0 0.0
          %3293 = vmatpush2.msra.mxu0 0.0
          %3294 = vmatprep.subr.mxu0 0.0
          %3295 = vmatpush2.msra.mxu0 0.0
          %3296 = vmatprep.subr.mxu0 0.0
          %3297 = vmatpush2.msra.mxu0 0.0
          %3298 = vmatprep.subr.mxu0 0.0
          %3299 = vmatpush2.msra.mxu0 0.0
          %3300 = vmatprep.subr.mxu0 0.0
          %3301 = vmatpush2.msra.mxu0 0.0
          %3302 = vmatprep.subr.mxu0 0.0
          %3303 = vmatpush2.msra.mxu0 0.0
          %3304 = vmatprep.subr.mxu0 0.0
          %3305 = vmatpush2.msra.mxu0 0.0
          %3306 = vmatprep.subr.mxu0 0.0
          %3307 = vmatpush2.msra.mxu0 0.0
          %3308 = vmatprep.subr.mxu0 0.0
          %3309 = vmatpush2.msra.mxu0 0.0
          %3310 = vmatprep.subr.mxu0 0.0
          %3311 = vmatpush2.msra.mxu0 0.0
          %3312 = vmatprep.mubr.f32.mxu0 0.0
          %v3313 = vand.u32 %v3241, 4294901760
          %v3314 = vsub.f32 %v3241, %v3313
          %v3315 = vand.u32 %v3314, 4294901760
          %v3316 = vsub.f32 %v3314, %v3315
          %v3317 = vand.u32 %v3316, 4294901760
          %3318 = vmatmul.mubr.f32.gmra.mxu0 %v3317
          %v3319 = vpop.f32.mrf.mxu0
          %v3320 = vadd.f32 0.0, %v3319
          %v3321 = vpop.f32.mrf.mxu0
          %3322 = vmatprep.mubr.f32.mxu0 0.0
          %v3323 = vand.u32 %v3244, 4294901760
          %v3324 = vsub.f32 %v3244, %v3323
          %v3325 = vand.u32 %v3324, 4294901760
          %v3326 = vsub.f32 %v3324, %v3325
          %v3327 = vand.u32 %v3326, 4294901760
          %3328 = vmatmul.mubr.f32.gmra.mxu0 %v3327
          %v3329 = vpop.f32.mrf.mxu0
          %v3330 = vadd.f32 0.0, %v3329
          %v3331 = vpop.f32.mrf.mxu0
          %3332 = vdwg.mxu0
          %3333 = vmatprep.subr.mxu0 0.0
          %3334 = vmatpush1.msra.mxu0 0.0
          %3335 = vmatprep.subr.mxu0 0.0
          %3336 = vmatpush1.msra.mxu0 0.0
          %3337 = vmatprep.subr.mxu0 0.0
          %3338 = vmatpush1.msra.mxu0 0.0
          %3339 = vmatprep.subr.mxu0 0.0
          %3340 = vmatpush1.msra.mxu0 0.0
          %3341 = vmatprep.subr.mxu0 0.0
          %3342 = vmatpush1.msra.mxu0 0.0
          %3343 = vmatprep.subr.mxu0 0.0
          %3344 = vmatpush1.msra.mxu0 0.0
          %3345 = vmatprep.subr.mxu0 0.0
          %3346 = vmatpush1.msra.mxu0 0.0
          %3347 = vmatprep.subr.mxu0 0.0
          %3348 = vmatpush1.msra.mxu0 0.0
          %3349 = vmatprep.subr.mxu0 0.0
          %3350 = vmatpush1.msra.mxu0 0.0
          %3351 = vmatprep.subr.mxu0 0.0
          %3352 = vmatpush1.msra.mxu0 0.0
          %3353 = vmatprep.subr.mxu0 0.0
          %3354 = vmatpush1.msra.mxu0 0.0
          %3355 = vmatprep.subr.mxu0 0.0
          %3356 = vmatpush1.msra.mxu0 0.0
          %3357 = vmatprep.subr.mxu0 0.0
          %3358 = vmatpush1.msra.mxu0 0.0
          %3359 = vmatprep.subr.mxu0 0.0
          %3360 = vmatpush1.msra.mxu0 0.0
          %3361 = vmatprep.subr.mxu0 0.0
          %v3362 = vand.u32 %v165, 4294901760
          %v3363 = vsub.f32 %v165, %v3362
          %v3364 = vand.u32 %v3363, 4294901760
          %v3365 = vsub.f32 %v3363, %v3364
          %v3366 = vand.u32 %v3365, 4294901760
          %3367 = vmatpush1.msra.mxu0 %v3366
          %3368 = vmatprep.subr.mxu0 0.0
          %v3369 = vand.u32 %v164, 4294901760
          %v3370 = vsub.f32 %v164, %v3369
          %v3371 = vand.u32 %v3370, 4294901760
          %v3372 = vsub.f32 %v3370, %v3371
          %v3373 = vand.u32 %v3372, 4294901760
          %3374 = vmatpush1.msra.mxu0 %v3373
          %3375 = vmatprep.subr.mxu0 0.0
          %3376 = vmatpush2.msra.mxu0 0.0
          %3377 = vmatprep.subr.mxu0 0.0
          %3378 = vmatpush2.msra.mxu0 0.0
          %3379 = vmatprep.subr.mxu0 0.0
          %3380 = vmatpush2.msra.mxu0 0.0
          %3381 = vmatprep.subr.mxu0 0.0
          %3382 = vmatpush2.msra.mxu0 0.0
          %3383 = vmatprep.subr.mxu0 0.0
          %3384 = vmatpush2.msra.mxu0 0.0
          %3385 = vmatprep.subr.mxu0 0.0
          %3386 = vmatpush2.msra.mxu0 0.0
          %3387 = vmatprep.subr.mxu0 0.0
          %3388 = vmatpush2.msra.mxu0 0.0
          %3389 = vmatprep.subr.mxu0 0.0
          %3390 = vmatpush2.msra.mxu0 0.0
          %3391 = vmatprep.subr.mxu0 0.0
          %3392 = vmatpush2.msra.mxu0 0.0
          %3393 = vmatprep.subr.mxu0 0.0
          %3394 = vmatpush2.msra.mxu0 0.0
          %3395 = vmatprep.subr.mxu0 0.0
          %3396 = vmatpush2.msra.mxu0 0.0
          %3397 = vmatprep.subr.mxu0 0.0
          %3398 = vmatpush2.msra.mxu0 0.0
          %3399 = vmatprep.subr.mxu0 0.0
          %3400 = vmatpush2.msra.mxu0 0.0
          %3401 = vmatprep.subr.mxu0 0.0
          %3402 = vmatpush2.msra.mxu0 0.0
          %3403 = vmatprep.subr.mxu0 0.0
          %3404 = vmatpush2.msra.mxu0 0.0
          %3405 = vmatprep.subr.mxu0 0.0
          %3406 = vmatpush2.msra.mxu0 0.0
          %3407 = vmatprep.mubr.f32.mxu0 0.0
          %v3408 = vand.u32 %v3241, 4294901760
          %3409 = vmatmul.mubr.f32.gmra.mxu0 %v3408
          %v3410 = vpop.f32.mrf.mxu0
          %v3411 = vadd.f32 %v3320, %v3410
          %v3412 = vpop.f32.mrf.mxu0
          %3413 = vmatprep.mubr.f32.mxu0 0.0
          %v3414 = vand.u32 %v3244, 4294901760
          %3415 = vmatmul.mubr.f32.gmra.mxu0 %v3414
          %v3416 = vpop.f32.mrf.mxu0
          %v3417 = vadd.f32 %v3330, %v3416
          %v3418 = vpop.f32.mrf.mxu0
          %3419 = vdwg.mxu0
          %3420 = vmatprep.subr.mxu0 0.0
          %3421 = vmatpush1.msra.mxu0 0.0
          %3422 = vmatprep.subr.mxu0 0.0
          %3423 = vmatpush1.msra.mxu0 0.0
          %3424 = vmatprep.subr.mxu0 0.0
          %3425 = vmatpush1.msra.mxu0 0.0
          %3426 = vmatprep.subr.mxu0 0.0
          %3427 = vmatpush1.msra.mxu0 0.0
          %3428 = vmatprep.subr.mxu0 0.0
          %3429 = vmatpush1.msra.mxu0 0.0
          %3430 = vmatprep.subr.mxu0 0.0
          %3431 = vmatpush1.msra.mxu0 0.0
          %3432 = vmatprep.subr.mxu0 0.0
          %3433 = vmatpush1.msra.mxu0 0.0
          %3434 = vmatprep.subr.mxu0 0.0
          %3435 = vmatpush1.msra.mxu0 0.0
          %3436 = vmatprep.subr.mxu0 0.0
          %3437 = vmatpush1.msra.mxu0 0.0
          %3438 = vmatprep.subr.mxu0 0.0
          %3439 = vmatpush1.msra.mxu0 0.0
          %3440 = vmatprep.subr.mxu0 0.0
          %3441 = vmatpush1.msra.mxu0 0.0
          %3442 = vmatprep.subr.mxu0 0.0
          %3443 = vmatpush1.msra.mxu0 0.0
          %3444 = vmatprep.subr.mxu0 0.0
          %3445 = vmatpush1.msra.mxu0 0.0
          %3446 = vmatprep.subr.mxu0 0.0
          %3447 = vmatpush1.msra.mxu0 0.0
          %3448 = vmatprep.subr.mxu0 0.0
          %v3449 = vand.u32 %v165, 4294901760
          %v3450 = vsub.f32 %v165, %v3449
          %3451 = vmatpush1.msra.mxu0 %v3450
          %3452 = vmatprep.subr.mxu0 0.0
          %v3453 = vand.u32 %v164, 4294901760
          %v3454 = vsub.f32 %v164, %v3453
          %3455 = vmatpush1.msra.mxu0 %v3454
          %3456 = vmatprep.subr.mxu0 0.0
          %3457 = vmatpush2.msra.mxu0 0.0
          %3458 = vmatprep.subr.mxu0 0.0
          %3459 = vmatpush2.msra.mxu0 0.0
          %3460 = vmatprep.subr.mxu0 0.0
          %3461 = vmatpush2.msra.mxu0 0.0
          %3462 = vmatprep.subr.mxu0 0.0
          %3463 = vmatpush2.msra.mxu0 0.0
          %3464 = vmatprep.subr.mxu0 0.0
          %3465 = vmatpush2.msra.mxu0 0.0
          %3466 = vmatprep.subr.mxu0 0.0
          %3467 = vmatpush2.msra.mxu0 0.0
          %3468 = vmatprep.subr.mxu0 0.0
          %3469 = vmatpush2.msra.mxu0 0.0
          %3470 = vmatprep.subr.mxu0 0.0
          %3471 = vmatpush2.msra.mxu0 0.0
          %3472 = vmatprep.subr.mxu0 0.0
          %3473 = vmatpush2.msra.mxu0 0.0
          %3474 = vmatprep.subr.mxu0 0.0
          %3475 = vmatpush2.msra.mxu0 0.0
          %3476 = vmatprep.subr.mxu0 0.0
          %3477 = vmatpush2.msra.mxu0 0.0
          %3478 = vmatprep.subr.mxu0 0.0
          %3479 = vmatpush2.msra.mxu0 0.0
          %3480 = vmatprep.subr.mxu0 0.0
          %3481 = vmatpush2.msra.mxu0 0.0
          %3482 = vmatprep.subr.mxu0 0.0
          %3483 = vmatpush2.msra.mxu0 0.0
          %3484 = vmatprep.subr.mxu0 0.0
          %3485 = vmatpush2.msra.mxu0 0.0
          %3486 = vmatprep.subr.mxu0 0.0
          %3487 = vmatpush2.msra.mxu0 0.0
          %3488 = vmatprep.mubr.f32.mxu0 0.0
          %v3489 = vand.u32 %v3241, 4294901760
          %v3490 = vsub.f32 %v3241, %v3489
          %3491 = vmatmul.mubr.f32.gmra.mxu0 %v3490
          %v3492 = vpop.f32.mrf.mxu0
          %v3493 = vadd.f32 %v3411, %v3492
          %v3494 = vpop.f32.mrf.mxu0
          %3495 = vmatprep.mubr.f32.mxu0 0.0
          %v3496 = vand.u32 %v3244, 4294901760
          %v3497 = vsub.f32 %v3244, %v3496
          %3498 = vmatmul.mubr.f32.gmra.mxu0 %v3497
          %v3499 = vpop.f32.mrf.mxu0
          %v3500 = vadd.f32 %v3417, %v3499
          %v3501 = vpop.f32.mrf.mxu0
          %3502 = vdwg.mxu0
          %3503 = vmatprep.subr.mxu0 0.0
          %3504 = vmatpush1.msra.mxu0 0.0
          %3505 = vmatprep.subr.mxu0 0.0
          %3506 = vmatpush1.msra.mxu0 0.0
          %3507 = vmatprep.subr.mxu0 0.0
          %3508 = vmatpush1.msra.mxu0 0.0
          %3509 = vmatprep.subr.mxu0 0.0
          %3510 = vmatpush1.msra.mxu0 0.0
          %3511 = vmatprep.subr.mxu0 0.0
          %3512 = vmatpush1.msra.mxu0 0.0
          %3513 = vmatprep.subr.mxu0 0.0
          %3514 = vmatpush1.msra.mxu0 0.0
          %3515 = vmatprep.subr.mxu0 0.0
          %3516 = vmatpush1.msra.mxu0 0.0
          %3517 = vmatprep.subr.mxu0 0.0
          %3518 = vmatpush1.msra.mxu0 0.0
          %3519 = vmatprep.subr.mxu0 0.0
          %3520 = vmatpush1.msra.mxu0 0.0
          %3521 = vmatprep.subr.mxu0 0.0
          %3522 = vmatpush1.msra.mxu0 0.0
          %3523 = vmatprep.subr.mxu0 0.0
          %3524 = vmatpush1.msra.mxu0 0.0
          %3525 = vmatprep.subr.mxu0 0.0
          %3526 = vmatpush1.msra.mxu0 0.0
          %3527 = vmatprep.subr.mxu0 0.0
          %3528 = vmatpush1.msra.mxu0 0.0
          %3529 = vmatprep.subr.mxu0 0.0
          %3530 = vmatpush1.msra.mxu0 0.0
          %3531 = vmatprep.subr.mxu0 0.0
          %v3532 = vand.u32 %v165, 4294901760
          %3533 = vmatpush1.msra.mxu0 %v3532
          %3534 = vmatprep.subr.mxu0 0.0
          %v3535 = vand.u32 %v164, 4294901760
          %3536 = vmatpush1.msra.mxu0 %v3535
          %3537 = vmatprep.subr.mxu0 0.0
          %3538 = vmatpush2.msra.mxu0 0.0
          %3539 = vmatprep.subr.mxu0 0.0
          %3540 = vmatpush2.msra.mxu0 0.0
          %3541 = vmatprep.subr.mxu0 0.0
          %3542 = vmatpush2.msra.mxu0 0.0
          %3543 = vmatprep.subr.mxu0 0.0
          %3544 = vmatpush2.msra.mxu0 0.0
          %3545 = vmatprep.subr.mxu0 0.0
          %3546 = vmatpush2.msra.mxu0 0.0
          %3547 = vmatprep.subr.mxu0 0.0
          %3548 = vmatpush2.msra.mxu0 0.0
          %3549 = vmatprep.subr.mxu0 0.0
          %3550 = vmatpush2.msra.mxu0 0.0
          %3551 = vmatprep.subr.mxu0 0.0
          %3552 = vmatpush2.msra.mxu0 0.0
          %3553 = vmatprep.subr.mxu0 0.0
          %3554 = vmatpush2.msra.mxu0 0.0
          %3555 = vmatprep.subr.mxu0 0.0
          %3556 = vmatpush2.msra.mxu0 0.0
          %3557 = vmatprep.subr.mxu0 0.0
          %3558 = vmatpush2.msra.mxu0 0.0
          %3559 = vmatprep.subr.mxu0 0.0
          %3560 = vmatpush2.msra.mxu0 0.0
          %3561 = vmatprep.subr.mxu0 0.0
          %3562 = vmatpush2.msra.mxu0 0.0
          %3563 = vmatprep.subr.mxu0 0.0
          %3564 = vmatpush2.msra.mxu0 0.0
          %3565 = vmatprep.subr.mxu0 0.0
          %3566 = vmatpush2.msra.mxu0 0.0
          %3567 = vmatprep.subr.mxu0 0.0
          %3568 = vmatpush2.msra.mxu0 0.0
          %3569 = vmatprep.mubr.f32.mxu0 0.0
          %v3570 = vand.u32 %v3241, 4294901760
          %v3571 = vsub.f32 %v3241, %v3570
          %v3572 = vand.u32 %v3571, 4294901760
          %3573 = vmatmul.mubr.f32.gmra.mxu0 %v3572
          %v3574 = vpop.f32.mrf.mxu0
          %v3575 = vadd.f32 %v3493, %v3574
          %v3576 = vpop.f32.mrf.mxu0
          %3577 = vmatprep.mubr.f32.mxu0 0.0
          %v3578 = vand.u32 %v3244, 4294901760
          %v3579 = vsub.f32 %v3244, %v3578
          %v3580 = vand.u32 %v3579, 4294901760
          %3581 = vmatmul.mubr.f32.gmra.mxu0 %v3580
          %v3582 = vpop.f32.mrf.mxu0
          %v3583 = vadd.f32 %v3500, %v3582
          %v3584 = vpop.f32.mrf.mxu0
          %3585 = vdwg.mxu0
          %3586 = vmatprep.subr.mxu0 0.0
          %3587 = vmatpush1.msra.mxu0 0.0
          %3588 = vmatprep.subr.mxu0 0.0
          %3589 = vmatpush1.msra.mxu0 0.0
          %3590 = vmatprep.subr.mxu0 0.0
          %3591 = vmatpush1.msra.mxu0 0.0
          %3592 = vmatprep.subr.mxu0 0.0
          %3593 = vmatpush1.msra.mxu0 0.0
          %3594 = vmatprep.subr.mxu0 0.0
          %3595 = vmatpush1.msra.mxu0 0.0
          %3596 = vmatprep.subr.mxu0 0.0
          %3597 = vmatpush1.msra.mxu0 0.0
          %3598 = vmatprep.subr.mxu0 0.0
          %3599 = vmatpush1.msra.mxu0 0.0
          %3600 = vmatprep.subr.mxu0 0.0
          %3601 = vmatpush1.msra.mxu0 0.0
          %3602 = vmatprep.subr.mxu0 0.0
          %3603 = vmatpush1.msra.mxu0 0.0
          %3604 = vmatprep.subr.mxu0 0.0
          %3605 = vmatpush1.msra.mxu0 0.0
          %3606 = vmatprep.subr.mxu0 0.0
          %3607 = vmatpush1.msra.mxu0 0.0
          %3608 = vmatprep.subr.mxu0 0.0
          %3609 = vmatpush1.msra.mxu0 0.0
          %3610 = vmatprep.subr.mxu0 0.0
          %3611 = vmatpush1.msra.mxu0 0.0
          %3612 = vmatprep.subr.mxu0 0.0
          %3613 = vmatpush1.msra.mxu0 0.0
          %3614 = vmatprep.subr.mxu0 0.0
          %v3615 = vand.u32 %v165, 4294901760
          %v3616 = vsub.f32 %v165, %v3615
          %v3617 = vand.u32 %v3616, 4294901760
          %3618 = vmatpush1.msra.mxu0 %v3617
          %3619 = vmatprep.subr.mxu0 0.0
          %v3620 = vand.u32 %v164, 4294901760
          %v3621 = vsub.f32 %v164, %v3620
          %v3622 = vand.u32 %v3621, 4294901760
          %3623 = vmatpush1.msra.mxu0 %v3622
          %3624 = vmatprep.subr.mxu0 0.0
          %3625 = vmatpush2.msra.mxu0 0.0
          %3626 = vmatprep.subr.mxu0 0.0
          %3627 = vmatpush2.msra.mxu0 0.0
          %3628 = vmatprep.subr.mxu0 0.0
          %3629 = vmatpush2.msra.mxu0 0.0
          %3630 = vmatprep.subr.mxu0 0.0
          %3631 = vmatpush2.msra.mxu0 0.0
          %3632 = vmatprep.subr.mxu0 0.0
          %3633 = vmatpush2.msra.mxu0 0.0
          %3634 = vmatprep.subr.mxu0 0.0
          %3635 = vmatpush2.msra.mxu0 0.0
          %3636 = vmatprep.subr.mxu0 0.0
          %3637 = vmatpush2.msra.mxu0 0.0
          %3638 = vmatprep.subr.mxu0 0.0
          %3639 = vmatpush2.msra.mxu0 0.0
          %3640 = vmatprep.subr.mxu0 0.0
          %3641 = vmatpush2.msra.mxu0 0.0
          %3642 = vmatprep.subr.mxu0 0.0
          %3643 = vmatpush2.msra.mxu0 0.0
          %3644 = vmatprep.subr.mxu0 0.0
          %3645 = vmatpush2.msra.mxu0 0.0
          %3646 = vmatprep.subr.mxu0 0.0
          %3647 = vmatpush2.msra.mxu0 0.0
          %3648 = vmatprep.subr.mxu0 0.0
          %3649 = vmatpush2.msra.mxu0 0.0
          %3650 = vmatprep.subr.mxu0 0.0
          %3651 = vmatpush2.msra.mxu0 0.0
          %3652 = vmatprep.subr.mxu0 0.0
          %3653 = vmatpush2.msra.mxu0 0.0
          %3654 = vmatprep.subr.mxu0 0.0
          %3655 = vmatpush2.msra.mxu0 0.0
          %3656 = vmatprep.mubr.f32.mxu0 0.0
          %v3657 = vand.u32 %v3241, 4294901760
          %3658 = vmatmul.mubr.f32.gmra.mxu0 %v3657
          %v3659 = vpop.f32.mrf.mxu0
          %v3660 = vadd.f32 %v3575, %v3659
          %v3661 = vpop.f32.mrf.mxu0
          %3662 = vmatprep.mubr.f32.mxu0 0.0
          %v3663 = vand.u32 %v3244, 4294901760
          %3664 = vmatmul.mubr.f32.gmra.mxu0 %v3663
          %v3665 = vpop.f32.mrf.mxu0
          %v3666 = vadd.f32 %v3583, %v3665
          %v3667 = vpop.f32.mrf.mxu0
          %3668 = vdwg.mxu0
          %3669 = vmatprep.subr.mxu0 0.0
          %3670 = vmatpush1.msra.mxu0 0.0
          %3671 = vmatprep.subr.mxu0 0.0
          %3672 = vmatpush1.msra.mxu0 0.0
          %3673 = vmatprep.subr.mxu0 0.0
          %3674 = vmatpush1.msra.mxu0 0.0
          %3675 = vmatprep.subr.mxu0 0.0
          %3676 = vmatpush1.msra.mxu0 0.0
          %3677 = vmatprep.subr.mxu0 0.0
          %3678 = vmatpush1.msra.mxu0 0.0
          %3679 = vmatprep.subr.mxu0 0.0
          %3680 = vmatpush1.msra.mxu0 0.0
          %3681 = vmatprep.subr.mxu0 0.0
          %3682 = vmatpush1.msra.mxu0 0.0
          %3683 = vmatprep.subr.mxu0 0.0
          %3684 = vmatpush1.msra.mxu0 0.0
          %3685 = vmatprep.subr.mxu0 0.0
          %3686 = vmatpush1.msra.mxu0 0.0
          %3687 = vmatprep.subr.mxu0 0.0
          %3688 = vmatpush1.msra.mxu0 0.0
          %3689 = vmatprep.subr.mxu0 0.0
          %3690 = vmatpush1.msra.mxu0 0.0
          %3691 = vmatprep.subr.mxu0 0.0
          %3692 = vmatpush1.msra.mxu0 0.0
          %3693 = vmatprep.subr.mxu0 0.0
          %3694 = vmatpush1.msra.mxu0 0.0
          %3695 = vmatprep.subr.mxu0 0.0
          %3696 = vmatpush1.msra.mxu0 0.0
          %3697 = vmatprep.subr.mxu0 0.0
          %v3698 = vand.u32 %v165, 4294901760
          %3699 = vmatpush1.msra.mxu0 %v3698
          %3700 = vmatprep.subr.mxu0 0.0
          %v3701 = vand.u32 %v164, 4294901760
          %3702 = vmatpush1.msra.mxu0 %v3701
          %3703 = vmatprep.subr.mxu0 0.0
          %3704 = vmatpush2.msra.mxu0 0.0
          %3705 = vmatprep.subr.mxu0 0.0
          %3706 = vmatpush2.msra.mxu0 0.0
          %3707 = vmatprep.subr.mxu0 0.0
          %3708 = vmatpush2.msra.mxu0 0.0
          %3709 = vmatprep.subr.mxu0 0.0
          %3710 = vmatpush2.msra.mxu0 0.0
          %3711 = vmatprep.subr.mxu0 0.0
          %3712 = vmatpush2.msra.mxu0 0.0
          %3713 = vmatprep.subr.mxu0 0.0
          %3714 = vmatpush2.msra.mxu0 0.0
          %3715 = vmatprep.subr.mxu0 0.0
          %3716 = vmatpush2.msra.mxu0 0.0
          %3717 = vmatprep.subr.mxu0 0.0
          %3718 = vmatpush2.msra.mxu0 0.0
          %3719 = vmatprep.subr.mxu0 0.0
          %3720 = vmatpush2.msra.mxu0 0.0
          %3721 = vmatprep.subr.mxu0 0.0
          %3722 = vmatpush2.msra.mxu0 0.0
          %3723 = vmatprep.subr.mxu0 0.0
          %3724 = vmatpush2.msra.mxu0 0.0
          %3725 = vmatprep.subr.mxu0 0.0
          %3726 = vmatpush2.msra.mxu0 0.0
          %3727 = vmatprep.subr.mxu0 0.0
          %3728 = vmatpush2.msra.mxu0 0.0
          %3729 = vmatprep.subr.mxu0 0.0
          %3730 = vmatpush2.msra.mxu0 0.0
          %3731 = vmatprep.subr.mxu0 0.0
          %3732 = vmatpush2.msra.mxu0 0.0
          %3733 = vmatprep.subr.mxu0 0.0
          %3734 = vmatpush2.msra.mxu0 0.0
          %3735 = vmatprep.mubr.f32.mxu0 0.0
          %v3736 = vand.u32 %v3241, 4294901760
          %3737 = vmatmul.mubr.f32.gmra.mxu0 %v3736
          %v3738 = vpop.f32.mrf.mxu0
          %v3739 = vadd.f32 %v3660, %v3738
          %v3740 = vpop.f32.mrf.mxu0
          %3741 = vmatprep.mubr.f32.mxu0 0.0
          %v3742 = vand.u32 %v3244, 4294901760
          %3743 = vmatmul.mubr.f32.gmra.mxu0 %v3742
          %v3744 = vpop.f32.mrf.mxu0
          %v3745 = vadd.f32 %v3666, %v3744
          %v3746 = vpop.f32.mrf.mxu0
          %3747 = vdwg.mxu0
          %3748 = vmatprep.subr.mxu0 0.0
          %3749 = vmatpush1.msra.mxu0 0.0
          %3750 = vmatprep.subr.mxu0 0.0
          %3751 = vmatpush1.msra.mxu0 0.0
          %3752 = vmatprep.subr.mxu0 0.0
          %3753 = vmatpush1.msra.mxu0 0.0
          %3754 = vmatprep.subr.mxu0 0.0
          %3755 = vmatpush1.msra.mxu0 0.0
          %3756 = vmatprep.subr.mxu0 0.0
          %3757 = vmatpush1.msra.mxu0 0.0
          %3758 = vmatprep.subr.mxu0 0.0
          %3759 = vmatpush1.msra.mxu0 0.0
          %3760 = vmatprep.subr.mxu0 0.0
          %3761 = vmatpush1.msra.mxu0 0.0
          %3762 = vmatprep.subr.mxu0 0.0
          %3763 = vmatpush1.msra.mxu0 0.0
          %3764 = vmatprep.subr.mxu0 0.0
          %3765 = vmatpush1.msra.mxu0 0.0
          %3766 = vmatprep.subr.mxu0 0.0
          %3767 = vmatpush1.msra.mxu0 0.0
          %3768 = vmatprep.subr.mxu0 0.0
          %3769 = vmatpush1.msra.mxu0 0.0
          %3770 = vmatprep.subr.mxu0 0.0
          %3771 = vmatpush1.msra.mxu0 0.0
          %3772 = vmatprep.subr.mxu0 0.0
          %3773 = vmatpush1.msra.mxu0 0.0
          %3774 = vmatprep.subr.mxu0 0.0
          %3775 = vmatpush1.msra.mxu0 0.0
          %3776 = vmatprep.subr.mxu0 0.0
          %v3777 = vand.u32 %v3745, 4294901760
          %3778 = vmatpush1.msra.mxu0 %v3777
          %3779 = vmatprep.subr.mxu0 0.0
          %v3780 = vand.u32 %v3739, 4294901760
          %3781 = vmatpush1.msra.mxu0 %v3780
          %3782 = vmatprep.subr.mxu0 0.0
          %3783 = vmatpush2.msra.mxu0 0.0
          %3784 = vmatprep.subr.mxu0 0.0
          %3785 = vmatpush2.msra.mxu0 0.0
          %3786 = vmatprep.subr.mxu0 0.0
          %3787 = vmatpush2.msra.mxu0 0.0
          %3788 = vmatprep.subr.mxu0 0.0
          %3789 = vmatpush2.msra.mxu0 0.0
          %3790 = vmatprep.subr.mxu0 0.0
          %3791 = vmatpush2.msra.mxu0 0.0
          %3792 = vmatprep.subr.mxu0 0.0
          %3793 = vmatpush2.msra.mxu0 0.0
          %3794 = vmatprep.subr.mxu0 0.0
          %3795 = vmatpush2.msra.mxu0 0.0
          %3796 = vmatprep.subr.mxu0 0.0
          %3797 = vmatpush2.msra.mxu0 0.0
          %3798 = vmatprep.subr.mxu0 0.0
          %3799 = vmatpush2.msra.mxu0 0.0
          %3800 = vmatprep.subr.mxu0 0.0
          %3801 = vmatpush2.msra.mxu0 0.0
          %3802 = vmatprep.subr.mxu0 0.0
          %3803 = vmatpush2.msra.mxu0 0.0
          %3804 = vmatprep.subr.mxu0 0.0
          %3805 = vmatpush2.msra.mxu0 0.0
          %3806 = vmatprep.subr.mxu0 0.0
          %3807 = vmatpush2.msra.mxu0 0.0
          %3808 = vmatprep.subr.mxu0 0.0
          %3809 = vmatpush2.msra.mxu0 0.0
          %3810 = vmatprep.subr.mxu0 0.0
          %3811 = vmatpush2.msra.mxu0 0.0
          %3812 = vmatprep.subr.mxu0 0.0
          %3813 = vmatpush2.msra.mxu0 0.0
          %3814 = vmatprep.mubr.f32.mxu0 0.0
          %v3815 = vand.u32 %v696, 4294901760
          %v3816 = vsub.f32 %v696, %v3815
          %v3817 = vand.u32 %v3816, 4294901760
          %v3818 = vsub.f32 %v3816, %v3817
          %v3819 = vand.u32 %v3818, 4294901760
          %3820 = vmatmul.mubr.f32.gmra.mxu0 %v3819
          %v3821 = vpop.f32.mrf.mxu0
          %v3822 = vadd.f32 0.0, %v3821
          %v3823 = vpop.f32.mrf.mxu0
          %3824 = vmatprep.mubr.f32.mxu0 0.0
          %v3825 = vand.u32 %v699, 4294901760
          %v3826 = vsub.f32 %v699, %v3825
          %v3827 = vand.u32 %v3826, 4294901760
          %v3828 = vsub.f32 %v3826, %v3827
          %v3829 = vand.u32 %v3828, 4294901760
          %3830 = vmatmul.mubr.f32.gmra.mxu0 %v3829
          %v3831 = vpop.f32.mrf.mxu0
          %v3832 = vadd.f32 0.0, %v3831
          %v3833 = vpop.f32.mrf.mxu0
          %3834 = vdwg.mxu0
          %3835 = vmatprep.subr.mxu0 0.0
          %3836 = vmatpush1.msra.mxu0 0.0
          %3837 = vmatprep.subr.mxu0 0.0
          %3838 = vmatpush1.msra.mxu0 0.0
          %3839 = vmatprep.subr.mxu0 0.0
          %3840 = vmatpush1.msra.mxu0 0.0
          %3841 = vmatprep.subr.mxu0 0.0
          %3842 = vmatpush1.msra.mxu0 0.0
          %3843 = vmatprep.subr.mxu0 0.0
          %3844 = vmatpush1.msra.mxu0 0.0
          %3845 = vmatprep.subr.mxu0 0.0
          %3846 = vmatpush1.msra.mxu0 0.0
          %3847 = vmatprep.subr.mxu0 0.0
          %3848 = vmatpush1.msra.mxu0 0.0
          %3849 = vmatprep.subr.mxu0 0.0
          %3850 = vmatpush1.msra.mxu0 0.0
          %3851 = vmatprep.subr.mxu0 0.0
          %3852 = vmatpush1.msra.mxu0 0.0
          %3853 = vmatprep.subr.mxu0 0.0
          %3854 = vmatpush1.msra.mxu0 0.0
          %3855 = vmatprep.subr.mxu0 0.0
          %3856 = vmatpush1.msra.mxu0 0.0
          %3857 = vmatprep.subr.mxu0 0.0
          %3858 = vmatpush1.msra.mxu0 0.0
          %3859 = vmatprep.subr.mxu0 0.0
          %3860 = vmatpush1.msra.mxu0 0.0
          %3861 = vmatprep.subr.mxu0 0.0
          %3862 = vmatpush1.msra.mxu0 0.0
          %3863 = vmatprep.subr.mxu0 0.0
          %v3864 = vand.u32 %v3745, 4294901760
          %v3865 = vsub.f32 %v3745, %v3864
          %v3866 = vand.u32 %v3865, 4294901760
          %v3867 = vsub.f32 %v3865, %v3866
          %v3868 = vand.u32 %v3867, 4294901760
          %3869 = vmatpush1.msra.mxu0 %v3868
          %3870 = vmatprep.subr.mxu0 0.0
          %v3871 = vand.u32 %v3739, 4294901760
          %v3872 = vsub.f32 %v3739, %v3871
          %v3873 = vand.u32 %v3872, 4294901760
          %v3874 = vsub.f32 %v3872, %v3873
          %v3875 = vand.u32 %v3874, 4294901760
          %3876 = vmatpush1.msra.mxu0 %v3875
          %3877 = vmatprep.subr.mxu0 0.0
          %3878 = vmatpush2.msra.mxu0 0.0
          %3879 = vmatprep.subr.mxu0 0.0
          %3880 = vmatpush2.msra.mxu0 0.0
          %3881 = vmatprep.subr.mxu0 0.0
          %3882 = vmatpush2.msra.mxu0 0.0
          %3883 = vmatprep.subr.mxu0 0.0
          %3884 = vmatpush2.msra.mxu0 0.0
          %3885 = vmatprep.subr.mxu0 0.0
          %3886 = vmatpush2.msra.mxu0 0.0
          %3887 = vmatprep.subr.mxu0 0.0
          %3888 = vmatpush2.msra.mxu0 0.0
          %3889 = vmatprep.subr.mxu0 0.0
          %3890 = vmatpush2.msra.mxu0 0.0
          %3891 = vmatprep.subr.mxu0 0.0
          %3892 = vmatpush2.msra.mxu0 0.0
          %3893 = vmatprep.subr.mxu0 0.0
          %3894 = vmatpush2.msra.mxu0 0.0
          %3895 = vmatprep.subr.mxu0 0.0
          %3896 = vmatpush2.msra.mxu0 0.0
          %3897 = vmatprep.subr.mxu0 0.0
          %3898 = vmatpush2.msra.mxu0 0.0
          %3899 = vmatprep.subr.mxu0 0.0
          %3900 = vmatpush2.msra.mxu0 0.0
          %3901 = vmatprep.subr.mxu0 0.0
          %3902 = vmatpush2.msra.mxu0 0.0
          %3903 = vmatprep.subr.mxu0 0.0
          %3904 = vmatpush2.msra.mxu0 0.0
          %3905 = vmatprep.subr.mxu0 0.0
          %3906 = vmatpush2.msra.mxu0 0.0
          %3907 = vmatprep.subr.mxu0 0.0
          %3908 = vmatpush2.msra.mxu0 0.0
          %3909 = vmatprep.mubr.f32.mxu0 0.0
          %v3910 = vand.u32 %v696, 4294901760
          %3911 = vmatmul.mubr.f32.gmra.mxu0 %v3910
          %v3912 = vpop.f32.mrf.mxu0
          %v3913 = vadd.f32 %v3822, %v3912
          %v3914 = vpop.f32.mrf.mxu0
          %3915 = vmatprep.mubr.f32.mxu0 0.0
          %v3916 = vand.u32 %v699, 4294901760
          %3917 = vmatmul.mubr.f32.gmra.mxu0 %v3916
          %v3918 = vpop.f32.mrf.mxu0
          %v3919 = vadd.f32 %v3832, %v3918
          %v3920 = vpop.f32.mrf.mxu0
          %3921 = vdwg.mxu0
          %3922 = vmatprep.subr.mxu0 0.0
          %3923 = vmatpush1.msra.mxu0 0.0
          %3924 = vmatprep.subr.mxu0 0.0
          %3925 = vmatpush1.msra.mxu0 0.0
          %3926 = vmatprep.subr.mxu0 0.0
          %3927 = vmatpush1.msra.mxu0 0.0
          %3928 = vmatprep.subr.mxu0 0.0
          %3929 = vmatpush1.msra.mxu0 0.0
          %3930 = vmatprep.subr.mxu0 0.0
          %3931 = vmatpush1.msra.mxu0 0.0
          %3932 = vmatprep.subr.mxu0 0.0
          %3933 = vmatpush1.msra.mxu0 0.0
          %3934 = vmatprep.subr.mxu0 0.0
          %3935 = vmatpush1.msra.mxu0 0.0
          %3936 = vmatprep.subr.mxu0 0.0
          %3937 = vmatpush1.msra.mxu0 0.0
          %3938 = vmatprep.subr.mxu0 0.0
          %3939 = vmatpush1.msra.mxu0 0.0
          %3940 = vmatprep.subr.mxu0 0.0
          %3941 = vmatpush1.msra.mxu0 0.0
          %3942 = vmatprep.subr.mxu0 0.0
          %3943 = vmatpush1.msra.mxu0 0.0
          %3944 = vmatprep.subr.mxu0 0.0
          %3945 = vmatpush1.msra.mxu0 0.0
          %3946 = vmatprep.subr.mxu0 0.0
          %3947 = vmatpush1.msra.mxu0 0.0
          %3948 = vmatprep.subr.mxu0 0.0
          %3949 = vmatpush1.msra.mxu0 0.0
          %3950 = vmatprep.subr.mxu0 0.0
          %v3951 = vand.u32 %v3745, 4294901760
          %v3952 = vsub.f32 %v3745, %v3951
          %3953 = vmatpush1.msra.mxu0 %v3952
          %3954 = vmatprep.subr.mxu0 0.0
          %v3955 = vand.u32 %v3739, 4294901760
          %v3956 = vsub.f32 %v3739, %v3955
          %3957 = vmatpush1.msra.mxu0 %v3956
          %3958 = vmatprep.subr.mxu0 0.0
          %3959 = vmatpush2.msra.mxu0 0.0
          %3960 = vmatprep.subr.mxu0 0.0
          %3961 = vmatpush2.msra.mxu0 0.0
          %3962 = vmatprep.subr.mxu0 0.0
          %3963 = vmatpush2.msra.mxu0 0.0
          %3964 = vmatprep.subr.mxu0 0.0
          %3965 = vmatpush2.msra.mxu0 0.0
          %3966 = vmatprep.subr.mxu0 0.0
          %3967 = vmatpush2.msra.mxu0 0.0
          %3968 = vmatprep.subr.mxu0 0.0
          %3969 = vmatpush2.msra.mxu0 0.0
          %3970 = vmatprep.subr.mxu0 0.0
          %3971 = vmatpush2.msra.mxu0 0.0
          %3972 = vmatprep.subr.mxu0 0.0
          %3973 = vmatpush2.msra.mxu0 0.0
          %3974 = vmatprep.subr.mxu0 0.0
          %3975 = vmatpush2.msra.mxu0 0.0
          %3976 = vmatprep.subr.mxu0 0.0
          %3977 = vmatpush2.msra.mxu0 0.0
          %3978 = vmatprep.subr.mxu0 0.0
          %3979 = vmatpush2.msra.mxu0 0.0
          %3980 = vmatprep.subr.mxu0 0.0
          %3981 = vmatpush2.msra.mxu0 0.0
          %3982 = vmatprep.subr.mxu0 0.0
          %3983 = vmatpush2.msra.mxu0 0.0
          %3984 = vmatprep.subr.mxu0 0.0
          %3985 = vmatpush2.msra.mxu0 0.0
          %3986 = vmatprep.subr.mxu0 0.0
          %3987 = vmatpush2.msra.mxu0 0.0
          %3988 = vmatprep.subr.mxu0 0.0
          %3989 = vmatpush2.msra.mxu0 0.0
          %3990 = vmatprep.mubr.f32.mxu0 0.0
          %v3991 = vand.u32 %v696, 4294901760
          %v3992 = vsub.f32 %v696, %v3991
          %3993 = vmatmul.mubr.f32.gmra.mxu0 %v3992
          %v3994 = vpop.f32.mrf.mxu0
          %v3995 = vadd.f32 %v3913, %v3994
          %v3996 = vpop.f32.mrf.mxu0
          %3997 = vmatprep.mubr.f32.mxu0 0.0
          %v3998 = vand.u32 %v699, 4294901760
          %v3999 = vsub.f32 %v699, %v3998
          %4000 = vmatmul.mubr.f32.gmra.mxu0 %v3999
          %v4001 = vpop.f32.mrf.mxu0
          %v4002 = vadd.f32 %v3919, %v4001
          %v4003 = vpop.f32.mrf.mxu0
          %4004 = vdwg.mxu0
          %4005 = vmatprep.subr.mxu0 0.0
          %4006 = vmatpush1.msra.mxu0 0.0
          %4007 = vmatprep.subr.mxu0 0.0
          %4008 = vmatpush1.msra.mxu0 0.0
          %4009 = vmatprep.subr.mxu0 0.0
          %4010 = vmatpush1.msra.mxu0 0.0
          %4011 = vmatprep.subr.mxu0 0.0
          %4012 = vmatpush1.msra.mxu0 0.0
          %4013 = vmatprep.subr.mxu0 0.0
          %4014 = vmatpush1.msra.mxu0 0.0
          %4015 = vmatprep.subr.mxu0 0.0
          %4016 = vmatpush1.msra.mxu0 0.0
          %4017 = vmatprep.subr.mxu0 0.0
          %4018 = vmatpush1.msra.mxu0 0.0
          %4019 = vmatprep.subr.mxu0 0.0
          %4020 = vmatpush1.msra.mxu0 0.0
          %4021 = vmatprep.subr.mxu0 0.0
          %4022 = vmatpush1.msra.mxu0 0.0
          %4023 = vmatprep.subr.mxu0 0.0
          %4024 = vmatpush1.msra.mxu0 0.0
          %4025 = vmatprep.subr.mxu0 0.0
          %4026 = vmatpush1.msra.mxu0 0.0
          %4027 = vmatprep.subr.mxu0 0.0
          %4028 = vmatpush1.msra.mxu0 0.0
          %4029 = vmatprep.subr.mxu0 0.0
          %4030 = vmatpush1.msra.mxu0 0.0
          %4031 = vmatprep.subr.mxu0 0.0
          %4032 = vmatpush1.msra.mxu0 0.0
          %4033 = vmatprep.subr.mxu0 0.0
          %v4034 = vand.u32 %v3745, 4294901760
          %4035 = vmatpush1.msra.mxu0 %v4034
          %4036 = vmatprep.subr.mxu0 0.0
          %v4037 = vand.u32 %v3739, 4294901760
          %4038 = vmatpush1.msra.mxu0 %v4037
          %4039 = vmatprep.subr.mxu0 0.0
          %4040 = vmatpush2.msra.mxu0 0.0
          %4041 = vmatprep.subr.mxu0 0.0
          %4042 = vmatpush2.msra.mxu0 0.0
          %4043 = vmatprep.subr.mxu0 0.0
          %4044 = vmatpush2.msra.mxu0 0.0
          %4045 = vmatprep.subr.mxu0 0.0
          %4046 = vmatpush2.msra.mxu0 0.0
          %4047 = vmatprep.subr.mxu0 0.0
          %4048 = vmatpush2.msra.mxu0 0.0
          %4049 = vmatprep.subr.mxu0 0.0
          %4050 = vmatpush2.msra.mxu0 0.0
          %4051 = vmatprep.subr.mxu0 0.0
          %4052 = vmatpush2.msra.mxu0 0.0
          %4053 = vmatprep.subr.mxu0 0.0
          %4054 = vmatpush2.msra.mxu0 0.0
          %4055 = vmatprep.subr.mxu0 0.0
          %4056 = vmatpush2.msra.mxu0 0.0
          %4057 = vmatprep.subr.mxu0 0.0
          %4058 = vmatpush2.msra.mxu0 0.0
          %4059 = vmatprep.subr.mxu0 0.0
          %4060 = vmatpush2.msra.mxu0 0.0
          %4061 = vmatprep.subr.mxu0 0.0
          %4062 = vmatpush2.msra.mxu0 0.0
          %4063 = vmatprep.subr.mxu0 0.0
          %4064 = vmatpush2.msra.mxu0 0.0
          %4065 = vmatprep.subr.mxu0 0.0
          %4066 = vmatpush2.msra.mxu0 0.0
          %4067 = vmatprep.subr.mxu0 0.0
          %4068 = vmatpush2.msra.mxu0 0.0
          %4069 = vmatprep.subr.mxu0 0.0
          %4070 = vmatpush2.msra.mxu0 0.0
          %4071 = vmatprep.mubr.f32.mxu0 0.0
          %v4072 = vand.u32 %v696, 4294901760
          %v4073 = vsub.f32 %v696, %v4072
          %v4074 = vand.u32 %v4073, 4294901760
          %4075 = vmatmul.mubr.f32.gmra.mxu0 %v4074
          %v4076 = vpop.f32.mrf.mxu0
          %v4077 = vadd.f32 %v3995, %v4076
          %v4078 = vpop.f32.mrf.mxu0
          %4079 = vmatprep.mubr.f32.mxu0 0.0
          %v4080 = vand.u32 %v699, 4294901760
          %v4081 = vsub.f32 %v699, %v4080
          %v4082 = vand.u32 %v4081, 4294901760
          %4083 = vmatmul.mubr.f32.gmra.mxu0 %v4082
          %v4084 = vpop.f32.mrf.mxu0
          %v4085 = vadd.f32 %v4002, %v4084
          %v4086 = vpop.f32.mrf.mxu0
          %4087 = vdwg.mxu0
          %4088 = vmatprep.subr.mxu0 0.0
          %4089 = vmatpush1.msra.mxu0 0.0
          %4090 = vmatprep.subr.mxu0 0.0
          %4091 = vmatpush1.msra.mxu0 0.0
          %4092 = vmatprep.subr.mxu0 0.0
          %4093 = vmatpush1.msra.mxu0 0.0
          %4094 = vmatprep.subr.mxu0 0.0
          %4095 = vmatpush1.msra.mxu0 0.0
          %4096 = vmatprep.subr.mxu0 0.0
          %4097 = vmatpush1.msra.mxu0 0.0
          %4098 = vmatprep.subr.mxu0 0.0
          %4099 = vmatpush1.msra.mxu0 0.0
          %4100 = vmatprep.subr.mxu0 0.0
          %4101 = vmatpush1.msra.mxu0 0.0
          %4102 = vmatprep.subr.mxu0 0.0
          %4103 = vmatpush1.msra.mxu0 0.0
          %4104 = vmatprep.subr.mxu0 0.0
          %4105 = vmatpush1.msra.mxu0 0.0
          %4106 = vmatprep.subr.mxu0 0.0
          %4107 = vmatpush1.msra.mxu0 0.0
          %4108 = vmatprep.subr.mxu0 0.0
          %4109 = vmatpush1.msra.mxu0 0.0
          %4110 = vmatprep.subr.mxu0 0.0
          %4111 = vmatpush1.msra.mxu0 0.0
          %4112 = vmatprep.subr.mxu0 0.0
          %4113 = vmatpush1.msra.mxu0 0.0
          %4114 = vmatprep.subr.mxu0 0.0
          %4115 = vmatpush1.msra.mxu0 0.0
          %4116 = vmatprep.subr.mxu0 0.0
          %v4117 = vand.u32 %v3745, 4294901760
          %v4118 = vsub.f32 %v3745, %v4117
          %v4119 = vand.u32 %v4118, 4294901760
          %4120 = vmatpush1.msra.mxu0 %v4119
          %4121 = vmatprep.subr.mxu0 0.0
          %v4122 = vand.u32 %v3739, 4294901760
          %v4123 = vsub.f32 %v3739, %v4122
          %v4124 = vand.u32 %v4123, 4294901760
          %4125 = vmatpush1.msra.mxu0 %v4124
          %4126 = vmatprep.subr.mxu0 0.0
          %4127 = vmatpush2.msra.mxu0 0.0
          %4128 = vmatprep.subr.mxu0 0.0
          %4129 = vmatpush2.msra.mxu0 0.0
          %4130 = vmatprep.subr.mxu0 0.0
          %4131 = vmatpush2.msra.mxu0 0.0
          %4132 = vmatprep.subr.mxu0 0.0
          %4133 = vmatpush2.msra.mxu0 0.0
          %4134 = vmatprep.subr.mxu0 0.0
          %4135 = vmatpush2.msra.mxu0 0.0
          %4136 = vmatprep.subr.mxu0 0.0
          %4137 = vmatpush2.msra.mxu0 0.0
          %4138 = vmatprep.subr.mxu0 0.0
          %4139 = vmatpush2.msra.mxu0 0.0
          %4140 = vmatprep.subr.mxu0 0.0
          %4141 = vmatpush2.msra.mxu0 0.0
          %4142 = vmatprep.subr.mxu0 0.0
          %4143 = vmatpush2.msra.mxu0 0.0
          %4144 = vmatprep.subr.mxu0 0.0
          %4145 = vmatpush2.msra.mxu0 0.0
          %4146 = vmatprep.subr.mxu0 0.0
          %4147 = vmatpush2.msra.mxu0 0.0
          %4148 = vmatprep.subr.mxu0 0.0
          %4149 = vmatpush2.msra.mxu0 0.0
          %4150 = vmatprep.subr.mxu0 0.0
          %4151 = vmatpush2.msra.mxu0 0.0
          %4152 = vmatprep.subr.mxu0 0.0
          %4153 = vmatpush2.msra.mxu0 0.0
          %4154 = vmatprep.subr.mxu0 0.0
          %4155 = vmatpush2.msra.mxu0 0.0
          %4156 = vmatprep.subr.mxu0 0.0
          %4157 = vmatpush2.msra.mxu0 0.0
          %4158 = vmatprep.mubr.f32.mxu0 0.0
          %v4159 = vand.u32 %v696, 4294901760
          %4160 = vmatmul.mubr.f32.gmra.mxu0 %v4159
          %v4161 = vpop.f32.mrf.mxu0
          %v4162 = vadd.f32 %v4077, %v4161
          %v4163 = vpop.f32.mrf.mxu0
          %4164 = vmatprep.mubr.f32.mxu0 0.0
          %v4165 = vand.u32 %v699, 4294901760
          %4166 = vmatmul.mubr.f32.gmra.mxu0 %v4165
          %v4167 = vpop.f32.mrf.mxu0
          %v4168 = vadd.f32 %v4085, %v4167
          %v4169 = vpop.f32.mrf.mxu0
          %4170 = vdwg.mxu0
          %4171 = vmatprep.subr.mxu0 0.0
          %4172 = vmatpush1.msra.mxu0 0.0
          %4173 = vmatprep.subr.mxu0 0.0
          %4174 = vmatpush1.msra.mxu0 0.0
          %4175 = vmatprep.subr.mxu0 0.0
          %4176 = vmatpush1.msra.mxu0 0.0
          %4177 = vmatprep.subr.mxu0 0.0
          %4178 = vmatpush1.msra.mxu0 0.0
          %4179 = vmatprep.subr.mxu0 0.0
          %4180 = vmatpush1.msra.mxu0 0.0
          %4181 = vmatprep.subr.mxu0 0.0
          %4182 = vmatpush1.msra.mxu0 0.0
          %4183 = vmatprep.subr.mxu0 0.0
          %4184 = vmatpush1.msra.mxu0 0.0
          %4185 = vmatprep.subr.mxu0 0.0
          %4186 = vmatpush1.msra.mxu0 0.0
          %4187 = vmatprep.subr.mxu0 0.0
          %4188 = vmatpush1.msra.mxu0 0.0
          %4189 = vmatprep.subr.mxu0 0.0
          %4190 = vmatpush1.msra.mxu0 0.0
          %4191 = vmatprep.subr.mxu0 0.0
          %4192 = vmatpush1.msra.mxu0 0.0
          %4193 = vmatprep.subr.mxu0 0.0
          %4194 = vmatpush1.msra.mxu0 0.0
          %4195 = vmatprep.subr.mxu0 0.0
          %4196 = vmatpush1.msra.mxu0 0.0
          %4197 = vmatprep.subr.mxu0 0.0
          %4198 = vmatpush1.msra.mxu0 0.0
          %4199 = vmatprep.subr.mxu0 0.0
          %v4200 = vand.u32 %v3745, 4294901760
          %4201 = vmatpush1.msra.mxu0 %v4200
          %4202 = vmatprep.subr.mxu0 0.0
          %v4203 = vand.u32 %v3739, 4294901760
          %4204 = vmatpush1.msra.mxu0 %v4203
          %4205 = vmatprep.subr.mxu0 0.0
          %4206 = vmatpush2.msra.mxu0 0.0
          %4207 = vmatprep.subr.mxu0 0.0
          %4208 = vmatpush2.msra.mxu0 0.0
          %4209 = vmatprep.subr.mxu0 0.0
          %4210 = vmatpush2.msra.mxu0 0.0
          %4211 = vmatprep.subr.mxu0 0.0
          %4212 = vmatpush2.msra.mxu0 0.0
          %4213 = vmatprep.subr.mxu0 0.0
          %4214 = vmatpush2.msra.mxu0 0.0
          %4215 = vmatprep.subr.mxu0 0.0
          %4216 = vmatpush2.msra.mxu0 0.0
          %4217 = vmatprep.subr.mxu0 0.0
          %4218 = vmatpush2.msra.mxu0 0.0
          %4219 = vmatprep.subr.mxu0 0.0
          %4220 = vmatpush2.msra.mxu0 0.0
          %4221 = vmatprep.subr.mxu0 0.0
          %4222 = vmatpush2.msra.mxu0 0.0
          %4223 = vmatprep.subr.mxu0 0.0
          %4224 = vmatpush2.msra.mxu0 0.0
          %4225 = vmatprep.subr.mxu0 0.0
          %4226 = vmatpush2.msra.mxu0 0.0
          %4227 = vmatprep.subr.mxu0 0.0
          %4228 = vmatpush2.msra.mxu0 0.0
          %4229 = vmatprep.subr.mxu0 0.0
          %4230 = vmatpush2.msra.mxu0 0.0
          %4231 = vmatprep.subr.mxu0 0.0
          %4232 = vmatpush2.msra.mxu0 0.0
          %4233 = vmatprep.subr.mxu0 0.0
          %4234 = vmatpush2.msra.mxu0 0.0
          %4235 = vmatprep.subr.mxu0 0.0
          %4236 = vmatpush2.msra.mxu0 0.0
          %4237 = vmatprep.mubr.f32.mxu0 0.0
          %v4238 = vand.u32 %v696, 4294901760
          %4239 = vmatmul.mubr.f32.gmra.mxu0 %v4238
          %v4240 = vpop.f32.mrf.mxu0
          %v4241 = vadd.f32 %v4162, %v4240
          %v4242 = vpop.f32.mrf.mxu0
          %4243 = vmatprep.mubr.f32.mxu0 0.0
          %v4244 = vand.u32 %v699, 4294901760
          %4245 = vmatmul.mubr.f32.gmra.mxu0 %v4244
          %v4246 = vpop.f32.mrf.mxu0
          %v4247 = vadd.f32 %v4168, %v4246
          %v4248 = vpop.f32.mrf.mxu0
          %4249 = vdwg.mxu0
          %s4250 = scalar_lea.vmem %s139, 48 [#allocation7]
          %4251 = vst.msk [vmem:[%s4250] sm:$0xff] %vm186, %v4241
          %4252 = vst.msk [vmem:[%s4250 + $0x8] sm:$0xff] %vm186, %v4247
        $region32: #{tpu_custom_call.1} parent=23 // pred_fallthru
          _
        %s4253 = sand.u32 %s57, 1
        %s4254 = scalar_lea.sflag [#allocation6], %s4253
        %s4255 = sand.u32 %s57, 1
        %s4256 = smul.addr %s4255, 64
        %s4257 = scalar_lea.vmem [#allocation7], %s4256
        // Predicated region
        $region33: #{tpu_custom_call.1} parent=23 // pred_check
          %p4258 = pneg %p67
        $region34: #{tpu_custom_call.1} parent=23 // pred_check_branch
          %4260 = sbr.rel (%p4258) target = $region36
        $region35: #{tpu_custom_call.1} parent=23 // pred_region
          %s4262 = ssub.s32 1024, 1024
          %4263 = vsyncadd %s4254, %s4262
          %s4264 = smul.addr %s23, 8
          %s4265 = smul.addr %s4264, 128
          %s4266 = scalar_lea.hbm %s2, %s4265
          %s4267 = sshll.u32 %s4257, 4
          %s4268 = int_to_ptr.vmem [resolvable:$true] %s4267
          %4273 = dma.vmem_to_hbm [thread:$0]  %s4268, 1024, %s4266, %s4254, 128, 128, 8
        $region36: #{tpu_custom_call.1} parent=23 // pred_fallthru
          _
      $region24: #{tpu_custom_call.1} parent=5 // pred_fallthru
        _
      %p4274 = scmp.le.s32.totalorder 2, %s18
      // Predicated region
      $region37: #{tpu_custom_call.1} parent=5 // pred_check
        %p4275 = pneg %p4274
      $region38: #{tpu_custom_call.1} parent=5 // pred_check_branch
        %4277 = sbr.rel (%p4275) target = $region40
      $region39: #{tpu_custom_call.1} parent=5 // pred_region
        %s4278 = ssub.s32 %s18, 2
        // Predicated region
        $region41: #{tpu_custom_call.1} parent=39 // pred_check
          %p4279 = pneg %p73
        $region42: #{tpu_custom_call.1} parent=39 // pred_check_branch
          %4281 = sbr.rel (%p4279) target = $region44
        $region43: #{tpu_custom_call.1} parent=39 // pred_region
          %s4282 = sand.u32 %s58, 1
          %s4283 = scalar_lea.sflag [#allocation6], %s4282
          %s4284 = sand.u32 %s58, 1
          %s4285 = smul.addr %s4284, 64
          %s4286 = scalar_lea.vmem [#allocation7], %s4285
          %4287 = dma.done %s4283, 1024
        $region44: #{tpu_custom_call.1} parent=39 // pred_fallthru
          _
      $region40: #{tpu_custom_call.1} parent=5 // pred_fallthru
        _
    $region6: #{tpu_custom_call.1} parent=1 // loop_footer
      %s22 = sadd.s32 1, %s18
    $region7: #{tpu_custom_call.1} parent=1 // loop_footer_branch
      %17 = sbr.rel target = $region3
    $region8: #{tpu_custom_call.1} parent=1 // loop_exit
      _
    %4288 = vsyncpa [#allocation5], 1
    %s4289 = scalar_lea.sflag [#allocation5], 1
    %4290 = vsyncpa %s4289, 1
    %4291 = vsyncpa [#allocation6], 1
    %s4292 = scalar_lea.sflag [#allocation6], 1
    %4293 = vsyncpa %s4292, 1

</llo_original>
